<compile_context>
chip_gen: v7x
topology: tpu7x:2x2x1
jax: 0.10.0
libtpu: 0.0.40
codegen_flags: <defaults>
</compile_context>

<pallas_src>
import functools

import jax
import jax.numpy as jnp
from jax.experimental import pallas as pl
from jax.experimental.pallas import tpu as pltpu


def _round_up(x, m):
    return (x + m - 1) // m * m


# ----------------------------------------------------------------------------
# Fused kernel: per (batch-tile, time-chunk) grid step it runs
#   layer 1 recurrence (gates pre-projected via the embedding gate table)
#   -> layer l>=2: fused input projection (chunk matmul) + recurrence
#   -> final FC on the chunk, stored batch-major.
# h/c for every layer live in VMEM scratch across time chunks.
# ----------------------------------------------------------------------------
def _fused_lstm_kernel(g1_ref, whh_ref, wih_ref, brest_ref, fcw_ref, fcb_ref,
                       out_ref, h_sc, c_sc, x_sc, gx_sc, *,
                       num_layers, hidden, tc, bt, mxu_bf16):
    H = hidden
    # Optional bf16 MXU feeds (review item 5); elementwise math stays f32.
    mx = (lambda v: v.astype(jnp.bfloat16)) if mxu_bf16 else (lambda v: v)

    @pl.when(pl.program_id(1) == 0)          # new sequence (per batch tile)
    def _init():
        h_sc[...] = jnp.zeros_like(h_sc)
        c_sc[...] = jnp.zeros_like(c_sc)

    for layer in range(num_layers):           # static Python loop over layers
        if layer == 0:
            # Layer 1: gates_x already pre-projected (embedding gate table).
            def read_gates(s):
                return g1_ref[s]                                   # (bt, 4H)
        else:
            # Fused input projection (review item 1): one lane-dense matmul
            # per chunk, result staged in VMEM scratch.
            gx_sc[...] = (jnp.dot(mx(x_sc[...]), mx(wih_ref[layer - 1]),
                                  preferred_element_type=jnp.float32)
                          + brest_ref[layer - 1])

            def read_gates(s):
                idx = pl.multiple_of(s * bt, bt)
                return gx_sc[pl.ds(idx, bt)]                       # (bt, 4H)

        w_hh = mx(whh_ref[layer])              # (H, 4H) loaded once per chunk

        def step(s, carry):
            h, c = carry
            gates = read_gates(s) + jnp.dot(mx(h), w_hh,
                                            preferred_element_type=jnp.float32)
            # 32-lane gate windows of the 128-lane gates vreg; these are
            # in-vreg lane selects.  (Review item 10: if the bundle dump ever
            # shows per-slice vst/vld pairs, switch to pltpu.roll extraction.)
            i_g = jax.nn.sigmoid(gates[:, 0 * H:1 * H])
            f_g = jax.nn.sigmoid(gates[:, 1 * H:2 * H])
            g_g = jnp.tanh(gates[:, 2 * H:3 * H])
            o_g = jax.nn.sigmoid(gates[:, 3 * H:4 * H])
            c_new = f_g * c + i_g * g_g
            h_new = o_g * jnp.tanh(c_new)
            x_sc[pl.ds(pl.multiple_of(s * bt, bt), bt)] = h_new
            return h_new, c_new

        # Capped unroll (review item 3): unroll<=8 keeps vreg pressure bounded
        # while still giving the LLO scheduler a window.
        h_new, c_new = jax.lax.fori_loop(0, tc, step,
                                         (h_sc[layer], c_sc[layer]),
                                         unroll=min(8, tc))
        h_sc[layer] = h_new
        c_sc[layer] = c_new

    # Final FC fused on the chunk (review items 1/9/11): one matmul off the
    # serial critical path, then batch-major stores so no XLA transpose is
    # needed downstream.
    logits = (jnp.dot(mx(x_sc[...]), mx(fcw_ref[...]),
                      preferred_element_type=jnp.float32) + fcb_ref[...])
    for s in range(tc):                        # static loop: (bt, V_pad) rows
        out_ref[:, s, :] = logits[s * bt:(s + 1) * bt, :]


# ----------------------------------------------------------------------------
# Parameters (deterministic init, same logical shapes as the PyTorch module,
# with the 4 gates concatenated along the last axis in i,f,g,o order).
# ----------------------------------------------------------------------------
def init_params(key, vocab_size, embed_size, hidden_size, num_layers):
    params = {}
    key, k_emb = jax.random.split(key)
    params["embedding"] = jax.random.normal(
        k_emb, (vocab_size, embed_size), jnp.float32)

    bound = 1.0 / (hidden_size ** 0.5)
    layers = []
    in_size = embed_size
    for _ in range(num_layers):
        key, k1, k2, k3, k4 = jax.random.split(key, 5)
        w_ih = jax.random.uniform(k1, (in_size, 4 * hidden_size),
                                  jnp.float32, -bound, bound)
        w_hh = jax.random.uniform(k2, (hidden_size, 4 * hidden_size),
                                  jnp.float32, -bound, bound)
        b_ih = jax.random.uniform(k3, (1, 4 * hidden_size),
                                  jnp.float32, -bound, bound)
        b_hh = jax.random.uniform(k4, (1, 4 * hidden_size),
                                  jnp.float32, -bound, bound)
        layers.append((w_ih, w_hh, b_ih + b_hh))   # nn.LSTM adds both biases
        in_size = hidden_size
    params["lstm"] = layers

    key, k5, k6 = jax.random.split(key, 3)
    params["fc_w"] = jax.random.uniform(k5, (hidden_size, vocab_size),
                                        jnp.float32, -bound, bound)
    params["fc_b"] = jax.random.uniform(k6, (1, vocab_size),
                                        jnp.float32, -bound, bound)
    return params


# ----------------------------------------------------------------------------
# Full forward pass (single pallas_call) and a pure-JAX reference
# ----------------------------------------------------------------------------
def shakespeare_lstm_forward(params, tokens, *, time_chunk=32, batch_tile=None,
                             mxu_bf16=False):
    """tokens: (B, T) int32 -> logits (B, T, vocab) f32."""
    B, T = tokens.shape
    H = params["lstm"][0][1].shape[0]
    V = params["fc_w"].shape[1]
    L = len(params["lstm"])

    b_pad = _round_up(B, 8)                           # full sublanes
    tc = _round_up(min(time_chunk, _round_up(T, 8)), 8)
    t_pad = _round_up(T, tc)
    v_pad = _round_up(V, 128)                         # lane-dense FC output
    bt = batch_tile or b_pad                          # v7x: pass b_pad//2 when B_pad>=16
    assert b_pad % bt == 0 and bt % 8 == 0

    # Review item 2: layer-1 gate table folds the embedding gather and the
    # layer-1 input projection into a tiny (V, 4H) table + per-token gather.
    w_ih0, w_hh0, bias0 = params["lstm"][0]
    gate_table = params["embedding"] @ w_ih0 + bias0              # (V, 4H)
    g1 = jnp.take(gate_table, tokens.T, axis=0)                   # (T, B, 4H)
    g1 = jnp.pad(g1, ((0, t_pad - T), (0, b_pad - B), (0, 0)))    # inert pads

    w_hh_all = jnp.stack([w for (_, w, _) in params["lstm"]])     # (L, H, 4H)
    if L > 1:
        w_ih_rest = jnp.stack([w for (w, _, _) in params["lstm"][1:]])
        b_rest = jnp.stack([b for (_, _, b) in params["lstm"][1:]])
    else:                                    # dummies; never read when L == 1
        w_ih_rest = jnp.zeros((1, H, 4 * H), jnp.float32)
        b_rest = jnp.zeros((1, 1, 4 * H), jnp.float32)

    fc_w = jnp.pad(params["fc_w"], ((0, 0), (0, v_pad - V)))
    fc_b = jnp.pad(params["fc_b"], ((0, 0), (0, v_pad - V)))

    kernel = functools.partial(_fused_lstm_kernel, num_layers=L, hidden=H,
                               tc=tc, bt=bt, mxu_bf16=mxu_bf16)

    logits = pl.pallas_call(
        kernel,
        out_shape=jax.ShapeDtypeStruct((b_pad, t_pad, v_pad), jnp.float32),
        grid=(b_pad // bt, t_pad // tc),
        in_specs=[
            # Layer-1 gates chunk (the only per-chunk HBM input).
            pl.BlockSpec((tc, bt, 4 * H), lambda b, t: (t, b, 0)),
            # Grid-invariant weights: constant index_map -> fetched once.
            pl.BlockSpec((L, H, 4 * H), lambda b, t: (0, 0, 0)),
            pl.BlockSpec((w_ih_rest.shape[0], H, 4 * H), lambda b, t: (0, 0, 0)),
            pl.BlockSpec((b_rest.shape[0], 1, 4 * H), lambda b, t: (0, 0, 0)),
            pl.BlockSpec((H, v_pad), lambda b, t: (0, 0)),
            pl.BlockSpec((1, v_pad), lambda b, t: (0, 0)),
        ],
        # Batch-major output written directly (no trailing XLA transpose).
        out_specs=pl.BlockSpec((bt, tc, v_pad), lambda b, t: (b, t, 0)),
        scratch_shapes=[
            pltpu.VMEM((L, bt, H), jnp.float32),        # h carry, all layers
            pltpu.VMEM((L, bt, H), jnp.float32),        # c carry, all layers
            pltpu.VMEM((tc * bt, H), jnp.float32),      # current layer's chunk
            pltpu.VMEM((tc * bt, 4 * H), jnp.float32),  # fused gx chunk
        ],
        # Batch tiles are independent ("parallel", sharded across TCs on v7x);
        # time is a true recurrence ("arbitrary", sequential).
        compiler_params=pltpu.CompilerParams(
            dimension_semantics=("parallel", "arbitrary")),
    )(g1, w_hh_all, w_ih_rest, b_rest, fc_w, fc_b)

    return logits[:B, :T, :V]                           # (B, T, V)


def reference_forward(params, tokens):
    B, T = tokens.shape
    x = jnp.transpose(jnp.take(params["embedding"], tokens, axis=0), (1, 0, 2))
    for w_ih, w_hh, b in params["lstm"]:
        H = w_hh.shape[0]

        def step(carry, x_t, w_ih=w_ih, w_hh=w_hh, b=b, H=H):
            h, c = carry
            gates = x_t @ w_ih + h @ w_hh + b
            i = jax.nn.sigmoid(gates[:, :H])
            f = jax.nn.sigmoid(gates[:, H:2 * H])
            g = jnp.tanh(gates[:, 2 * H:3 * H])
            o = jax.nn.sigmoid(gates[:, 3 * H:])
            c = f * c + i * g
            h = o * jnp.tanh(c)
            return (h, c), h

        init = (jnp.zeros((B, H), jnp.float32), jnp.zeros((B, H), jnp.float32))
        _, hs = jax.lax.scan(step, init, x)
        x = hs
    out = jnp.einsum("tbh,hv->tbv", x, params["fc_w"]) + params["fc_b"][0]
    return jnp.transpose(out, (1, 0, 2))


if __name__ == "__main__":
    VOCAB, EMBED, HIDDEN, LAYERS = 32, 16, 32, 2   # 4H = 128 -> lane-dense gates
    B, T = 2, 8

    key = jax.random.PRNGKey(0)
    key, k_tok = jax.random.split(key)
    params = init_params(key, VOCAB, EMBED, HIDDEN, LAYERS)
    tokens = jax.random.randint(k_tok, (B, T), 0, VOCAB, dtype=jnp.int32)

    out = jax.block_until_ready(shakespeare_lstm_forward(params, tokens))
    ref = jax.block_until_ready(reference_forward(params, tokens))

    assert out.shape == (B, T, VOCAB), out.shape
    # f32 validation path (enable mxu_bf16=True only with a looser tolerance).
    assert jnp.allclose(out, ref, atol=1e-4, rtol=1e-4), \
        float(jnp.max(jnp.abs(out - ref)))
    print("KERNEL_OK")
</pallas_src>

<mosaic_0001>
module attributes {stable_mosaic.version = 11 : i64} {
  func.func @_fused_lstm_kernel(%arg0: i32, %arg1: i32, %arg2: memref<8x8x128xf32, #tpu.memory_space<vmem>>, %arg3: memref<2x32x128xf32, #tpu.memory_space<vmem>>, %arg4: memref<1x32x128xf32, #tpu.memory_space<vmem>>, %arg5: memref<1x1x128xf32, #tpu.memory_space<vmem>>, %arg6: memref<32x128xf32, #tpu.memory_space<vmem>>, %arg7: memref<1x128xf32, #tpu.memory_space<vmem>>, %arg8: memref<8x8x128xf32, #tpu.memory_space<vmem>>, %arg9: memref<2x8x32xf32, #tpu.memory_space<vmem>>, %arg10: memref<2x8x32xf32, #tpu.memory_space<vmem>>, %arg11: memref<64x32xf32, #tpu.memory_space<vmem>>, %arg12: memref<64x128xf32, #tpu.memory_space<vmem>>) attributes {dimension_semantics = [#tpu.dimension_semantics<parallel>, #tpu.dimension_semantics<arbitrary>], iteration_bounds = array<i64: 1, 1>, scalar_prefetch = 0 : i64, scratch_operands = 4 : i64, tpu.core_type = #tpu.core_type<tc>, window_params = [{transform_indices = @transform_0, window_bounds = array<i64: 8, 8, 128>}, {pipeline_mode = #tpu.pipeline_mode<synchronous>, transform_indices = @transform_1, window_bounds = array<i64: 2, 32, 128>}, {pipeline_mode = #tpu.pipeline_mode<synchronous>, transform_indices = @transform_2, window_bounds = array<i64: 1, 32, 128>}, {pipeline_mode = #tpu.pipeline_mode<synchronous>, transform_indices = @transform_3, window_bounds = array<i64: 1, 1, 128>}, {pipeline_mode = #tpu.pipeline_mode<synchronous>, transform_indices = @transform_4, window_bounds = array<i64: 32, 128>}, {pipeline_mode = #tpu.pipeline_mode<synchronous>, transform_indices = @transform_5, window_bounds = array<i64: 1, 128>}, {transform_indices = @transform_6, window_bounds = array<i64: 8, 8, 128>}]} {
    %c0_i32 = arith.constant 0 : i32
    %0 = arith.cmpi eq, %arg1, %c0_i32 : i32
    %1 = arith.extui %0 : i1 to i32
    %c0_i32_0 = arith.constant 0 : i32
    %2 = arith.cmpi ne, %1, %c0_i32_0 : i32
    scf.if %2 {
      %cst_202 = arith.constant 0.000000e+00 : f32
      %626 = vector.broadcast %cst_202 : f32 to vector<2x8x32xf32>
      %c0_203 = arith.constant 0 : index
      %c0_204 = arith.constant 0 : index
      %c0_205 = arith.constant 0 : index
      %627 = vector.load %arg9[%c0_203, %c0_204, %c0_205] : memref<2x8x32xf32, #tpu.memory_space<vmem>>, vector<2x8x32xf32>
      tpu.vector_store %arg9[%c0_203, %c0_204, %c0_205], %626 {strides = array<i32>} : memref<2x8x32xf32, #tpu.memory_space<vmem>>, vector<2x8x32xf32>,
      %cst_206 = arith.constant 0.000000e+00 : f32
      %628 = vector.broadcast %cst_206 : f32 to vector<2x8x32xf32>
      %c0_207 = arith.constant 0 : index
      %c0_208 = arith.constant 0 : index
      %c0_209 = arith.constant 0 : index
      %629 = vector.load %arg10[%c0_207, %c0_208, %c0_209] : memref<2x8x32xf32, #tpu.memory_space<vmem>>, vector<2x8x32xf32>
      tpu.vector_store %arg10[%c0_207, %c0_208, %c0_209], %628 {strides = array<i32>} : memref<2x8x32xf32, #tpu.memory_space<vmem>>, vector<2x8x32xf32>,
    } else {
    }
    %c0 = arith.constant 0 : index
    %c0_1 = arith.constant 0 : index
    %c0_2 = arith.constant 0 : index
    %3 = vector.load %arg3[%c0, %c0_1, %c0_2] : memref<2x32x128xf32, #tpu.memory_space<vmem>>, vector<1x32x128xf32>
    %4 = vector.shape_cast %3 : vector<1x32x128xf32> to vector<32x128xf32>
    %c0_3 = arith.constant 0 : index
    %c0_4 = arith.constant 0 : index
    %c0_5 = arith.constant 0 : index
    %5 = vector.load %arg9[%c0_3, %c0_4, %c0_5] : memref<2x8x32xf32, #tpu.memory_space<vmem>>, vector<1x8x32xf32>
    %6 = vector.shape_cast %5 : vector<1x8x32xf32> to vector<8x32xf32>
    %c0_6 = arith.constant 0 : index
    %c0_7 = arith.constant 0 : index
    %c0_8 = arith.constant 0 : index
    %7 = vector.load %arg10[%c0_6, %c0_7, %c0_8] : memref<2x8x32xf32, #tpu.memory_space<vmem>>, vector<1x8x32xf32>
    %8 = vector.shape_cast %7 : vector<1x8x32xf32> to vector<8x32xf32>
    %c0_i32_9 = arith.constant 0 : i32
    %9 = arith.index_cast %c0_i32_9 : i32 to index
    %c0_10 = arith.constant 0 : index
    %c0_11 = arith.constant 0 : index
    %10 = vector.load %arg2[%9, %c0_10, %c0_11] : memref<8x8x128xf32, #tpu.memory_space<vmem>>, vector<1x8x128xf32>
    %11 = vector.shape_cast %10 : vector<1x8x128xf32> to vector<8x128xf32>
    %cst = arith.constant dense<0.000000e+00> : vector<8x128xf32>
    %12 = tpu.matmul %6, %4, %cst {dimension_numbers = #tpu.dot_dimension_numbers<[1], [0], [0], [1], [0, 0, 1, 1], [], []>} : vector<8x32xf32>, vector<32x128xf32>, vector<8x128xf32> -> vector<8x128xf32>
    %13 = arith.addf %11, %12 : vector<8x128xf32>
    %14 = vector.extract_strided_slice %13 {offsets = [0, 0], sizes = [8, 32], strides = [1, 1]} : vector<8x128xf32> to vector<8x32xf32>
    %15 = arith.negf %14 : vector<8x32xf32>
    %16 = math.exp %15 : vector<8x32xf32>
    %cst_12 = arith.constant 1.000000e+00 : f32
    %17 = vector.broadcast %cst_12 : f32 to vector<8x32xf32>
    %18 = arith.addf %17, %16 : vector<8x32xf32>
    %19 = arith.divf %17, %18 : vector<8x32xf32>
    %20 = vector.extract_strided_slice %13 {offsets = [0, 32], sizes = [8, 32], strides = [1, 1]} : vector<8x128xf32> to vector<8x32xf32>
    %21 = arith.negf %20 : vector<8x32xf32>
    %22 = math.exp %21 : vector<8x32xf32>
    %cst_13 = arith.constant 1.000000e+00 : f32
    %23 = vector.broadcast %cst_13 : f32 to vector<8x32xf32>
    %24 = arith.addf %23, %22 : vector<8x32xf32>
    %25 = arith.divf %23, %24 : vector<8x32xf32>
    %26 = vector.extract_strided_slice %13 {offsets = [0, 64], sizes = [8, 32], strides = [1, 1]} : vector<8x128xf32> to vector<8x32xf32>
    %27 = math.tanh %26 : vector<8x32xf32>
    %28 = vector.extract_strided_slice %13 {offsets = [0, 96], sizes = [8, 32], strides = [1, 1]} : vector<8x128xf32> to vector<8x32xf32>
    %29 = arith.negf %28 : vector<8x32xf32>
    %30 = math.exp %29 : vector<8x32xf32>
    %cst_14 = arith.constant 1.000000e+00 : f32
    %31 = vector.broadcast %cst_14 : f32 to vector<8x32xf32>
    %32 = arith.addf %31, %30 : vector<8x32xf32>
    %33 = arith.divf %31, %32 : vector<8x32xf32>
    %34 = arith.mulf %25, %8 : vector<8x32xf32>
    %35 = arith.mulf %19, %27 : vector<8x32xf32>
    %36 = arith.addf %34, %35 : vector<8x32xf32>
    %37 = math.tanh %36 : vector<8x32xf32>
    %38 = arith.mulf %33, %37 : vector<8x32xf32>
    %c8_i32 = arith.constant 8 : i32
    %39 = arith.muli %c0_i32_9, %c8_i32 : i32
    %40 = tpu.assume_multiple %39, 8 : i32
    %41 = arith.index_cast %40 : i32 to index
    %c0_15 = arith.constant 0 : index
    %42 = vector.load %arg11[%41, %c0_15] : memref<64x32xf32, #tpu.memory_space<vmem>>, vector<8x32xf32>
    tpu.vector_store %arg11[%41, %c0_15], %38 {strides = array<i32>} : memref<64x32xf32, #tpu.memory_space<vmem>>, vector<8x32xf32>,
    %c1_i32 = arith.constant 1 : i32
    %43 = arith.index_cast %c1_i32 : i32 to index
    %c0_16 = arith.constant 0 : index
    %c0_17 = arith.constant 0 : index
    %44 = vector.load %arg2[%43, %c0_16, %c0_17] : memref<8x8x128xf32, #tpu.memory_space<vmem>>, vector<1x8x128xf32>
    %45 = vector.shape_cast %44 : vector<1x8x128xf32> to vector<8x128xf32>
    %cst_18 = arith.constant dense<0.000000e+00> : vector<8x128xf32>
    %46 = tpu.matmul %38, %4, %cst_18 {dimension_numbers = #tpu.dot_dimension_numbers<[1], [0], [0], [1], [0, 0, 1, 1], [], []>} : vector<8x32xf32>, vector<32x128xf32>, vector<8x128xf32> -> vector<8x128xf32>
    %47 = arith.addf %45, %46 : vector<8x128xf32>
    %48 = vector.extract_strided_slice %47 {offsets = [0, 0], sizes = [8, 32], strides = [1, 1]} : vector<8x128xf32> to vector<8x32xf32>
    %49 = arith.negf %48 : vector<8x32xf32>
    %50 = math.exp %49 : vector<8x32xf32>
    %cst_19 = arith.constant 1.000000e+00 : f32
    %51 = vector.broadcast %cst_19 : f32 to vector<8x32xf32>
    %52 = arith.addf %51, %50 : vector<8x32xf32>
    %53 = arith.divf %51, %52 : vector<8x32xf32>
    %54 = vector.extract_strided_slice %47 {offsets = [0, 32], sizes = [8, 32], strides = [1, 1]} : vector<8x128xf32> to vector<8x32xf32>
    %55 = arith.negf %54 : vector<8x32xf32>
    %56 = math.exp %55 : vector<8x32xf32>
    %cst_20 = arith.constant 1.000000e+00 : f32
    %57 = vector.broadcast %cst_20 : f32 to vector<8x32xf32>
    %58 = arith.addf %57, %56 : vector<8x32xf32>
    %59 = arith.divf %57, %58 : vector<8x32xf32>
    %60 = vector.extract_strided_slice %47 {offsets = [0, 64], sizes = [8, 32], strides = [1, 1]} : vector<8x128xf32> to vector<8x32xf32>
    %61 = math.tanh %60 : vector<8x32xf32>
    %62 = vector.extract_strided_slice %47 {offsets = [0, 96], sizes = [8, 32], strides = [1, 1]} : vector<8x128xf32> to vector<8x32xf32>
    %63 = arith.negf %62 : vector<8x32xf32>
    %64 = math.exp %63 : vector<8x32xf32>
    %cst_21 = arith.constant 1.000000e+00 : f32
    %65 = vector.broadcast %cst_21 : f32 to vector<8x32xf32>
    %66 = arith.addf %65, %64 : vector<8x32xf32>
    %67 = arith.divf %65, %66 : vector<8x32xf32>
    %68 = arith.mulf %59, %36 : vector<8x32xf32>
    %69 = arith.mulf %53, %61 : vector<8x32xf32>
    %70 = arith.addf %68, %69 : vector<8x32xf32>
    %71 = math.tanh %70 : vector<8x32xf32>
    %72 = arith.mulf %67, %71 : vector<8x32xf32>
    %c8_i32_22 = arith.constant 8 : i32
    %73 = arith.muli %c1_i32, %c8_i32_22 : i32
    %74 = tpu.assume_multiple %73, 8 : i32
    %75 = arith.index_cast %74 : i32 to index
    %c0_23 = arith.constant 0 : index
    %76 = vector.load %arg11[%75, %c0_23] : memref<64x32xf32, #tpu.memory_space<vmem>>, vector<8x32xf32>
    tpu.vector_store %arg11[%75, %c0_23], %72 {strides = array<i32>} : memref<64x32xf32, #tpu.memory_space<vmem>>, vector<8x32xf32>,
    %c2_i32 = arith.constant 2 : i32
    %77 = arith.index_cast %c2_i32 : i32 to index
    %c0_24 = arith.constant 0 : index
    %c0_25 = arith.constant 0 : index
    %78 = vector.load %arg2[%77, %c0_24, %c0_25] : memref<8x8x128xf32, #tpu.memory_space<vmem>>, vector<1x8x128xf32>
    %79 = vector.shape_cast %78 : vector<1x8x128xf32> to vector<8x128xf32>
    %cst_26 = arith.constant dense<0.000000e+00> : vector<8x128xf32>
    %80 = tpu.matmul %72, %4, %cst_26 {dimension_numbers = #tpu.dot_dimension_numbers<[1], [0], [0], [1], [0, 0, 1, 1], [], []>} : vector<8x32xf32>, vector<32x128xf32>, vector<8x128xf32> -> vector<8x128xf32>
    %81 = arith.addf %79, %80 : vector<8x128xf32>
    %82 = vector.extract_strided_slice %81 {offsets = [0, 0], sizes = [8, 32], strides = [1, 1]} : vector<8x128xf32> to vector<8x32xf32>
    %83 = arith.negf %82 : vector<8x32xf32>
    %84 = math.exp %83 : vector<8x32xf32>
    %cst_27 = arith.constant 1.000000e+00 : f32
    %85 = vector.broadcast %cst_27 : f32 to vector<8x32xf32>
    %86 = arith.addf %85, %84 : vector<8x32xf32>
    %87 = arith.divf %85, %86 : vector<8x32xf32>
    %88 = vector.extract_strided_slice %81 {offsets = [0, 32], sizes = [8, 32], strides = [1, 1]} : vector<8x128xf32> to vector<8x32xf32>
    %89 = arith.negf %88 : vector<8x32xf32>
    %90 = math.exp %89 : vector<8x32xf32>
    %cst_28 = arith.constant 1.000000e+00 : f32
    %91 = vector.broadcast %cst_28 : f32 to vector<8x32xf32>
    %92 = arith.addf %91, %90 : vector<8x32xf32>
    %93 = arith.divf %91, %92 : vector<8x32xf32>
    %94 = vector.extract_strided_slice %81 {offsets = [0, 64], sizes = [8, 32], strides = [1, 1]} : vector<8x128xf32> to vector<8x32xf32>
    %95 = math.tanh %94 : vector<8x32xf32>
    %96 = vector.extract_strided_slice %81 {offsets = [0, 96], sizes = [8, 32], strides = [1, 1]} : vector<8x128xf32> to vector<8x32xf32>
    %97 = arith.negf %96 : vector<8x32xf32>
    %98 = math.exp %97 : vector<8x32xf32>
    %cst_29 = arith.constant 1.000000e+00 : f32
    %99 = vector.broadcast %cst_29 : f32 to vector<8x32xf32>
    %100 = arith.addf %99, %98 : vector<8x32xf32>
    %101 = arith.divf %99, %100 : vector<8x32xf32>
    %102 = arith.mulf %93, %70 : vector<8x32xf32>
    %103 = arith.mulf %87, %95 : vector<8x32xf32>
    %104 = arith.addf %102, %103 : vector<8x32xf32>
    %105 = math.tanh %104 : vector<8x32xf32>
    %106 = arith.mulf %101, %105 : vector<8x32xf32>
    %c8_i32_30 = arith.constant 8 : i32
    %107 = arith.muli %c2_i32, %c8_i32_30 : i32
    %108 = tpu.assume_multiple %107, 8 : i32
    %109 = arith.index_cast %108 : i32 to index
    %c0_31 = arith.constant 0 : index
    %110 = vector.load %arg11[%109, %c0_31] : memref<64x32xf32, #tpu.memory_space<vmem>>, vector<8x32xf32>
    tpu.vector_store %arg11[%109, %c0_31], %106 {strides = array<i32>} : memref<64x32xf32, #tpu.memory_space<vmem>>, vector<8x32xf32>,
    %c3_i32 = arith.constant 3 : i32
    %111 = arith.index_cast %c3_i32 : i32 to index
    %c0_32 = arith.constant 0 : index
    %c0_33 = arith.constant 0 : index
    %112 = vector.load %arg2[%111, %c0_32, %c0_33] : memref<8x8x128xf32, #tpu.memory_space<vmem>>, vector<1x8x128xf32>
    %113 = vector.shape_cast %112 : vector<1x8x128xf32> to vector<8x128xf32>
    %cst_34 = arith.constant dense<0.000000e+00> : vector<8x128xf32>
    %114 = tpu.matmul %106, %4, %cst_34 {dimension_numbers = #tpu.dot_dimension_numbers<[1], [0], [0], [1], [0, 0, 1, 1], [], []>} : vector<8x32xf32>, vector<32x128xf32>, vector<8x128xf32> -> vector<8x128xf32>
    %115 = arith.addf %113, %114 : vector<8x128xf32>
    %116 = vector.extract_strided_slice %115 {offsets = [0, 0], sizes = [8, 32], strides = [1, 1]} : vector<8x128xf32> to vector<8x32xf32>
    %117 = arith.negf %116 : vector<8x32xf32>
    %118 = math.exp %117 : vector<8x32xf32>
    %cst_35 = arith.constant 1.000000e+00 : f32
    %119 = vector.broadcast %cst_35 : f32 to vector<8x32xf32>
    %120 = arith.addf %119, %118 : vector<8x32xf32>
    %121 = arith.divf %119, %120 : vector<8x32xf32>
    %122 = vector.extract_strided_slice %115 {offsets = [0, 32], sizes = [8, 32], strides = [1, 1]} : vector<8x128xf32> to vector<8x32xf32>
    %123 = arith.negf %122 : vector<8x32xf32>
    %124 = math.exp %123 : vector<8x32xf32>
    %cst_36 = arith.constant 1.000000e+00 : f32
    %125 = vector.broadcast %cst_36 : f32 to vector<8x32xf32>
    %126 = arith.addf %125, %124 : vector<8x32xf32>
    %127 = arith.divf %125, %126 : vector<8x32xf32>
    %128 = vector.extract_strided_slice %115 {offsets = [0, 64], sizes = [8, 32], strides = [1, 1]} : vector<8x128xf32> to vector<8x32xf32>
    %129 = math.tanh %128 : vector<8x32xf32>
    %130 = vector.extract_strided_slice %115 {offsets = [0, 96], sizes = [8, 32], strides = [1, 1]} : vector<8x128xf32> to vector<8x32xf32>
    %131 = arith.negf %130 : vector<8x32xf32>
    %132 = math.exp %131 : vector<8x32xf32>
    %cst_37 = arith.constant 1.000000e+00 : f32
    %133 = vector.broadcast %cst_37 : f32 to vector<8x32xf32>
    %134 = arith.addf %133, %132 : vector<8x32xf32>
    %135 = arith.divf %133, %134 : vector<8x32xf32>
    %136 = arith.mulf %127, %104 : vector<8x32xf32>
    %137 = arith.mulf %121, %129 : vector<8x32xf32>
    %138 = arith.addf %136, %137 : vector<8x32xf32>
    %139 = math.tanh %138 : vector<8x32xf32>
    %140 = arith.mulf %135, %139 : vector<8x32xf32>
    %c8_i32_38 = arith.constant 8 : i32
    %141 = arith.muli %c3_i32, %c8_i32_38 : i32
    %142 = tpu.assume_multiple %141, 8 : i32
    %143 = arith.index_cast %142 : i32 to index
    %c0_39 = arith.constant 0 : index
    %144 = vector.load %arg11[%143, %c0_39] : memref<64x32xf32, #tpu.memory_space<vmem>>, vector<8x32xf32>
    tpu.vector_store %arg11[%143, %c0_39], %140 {strides = array<i32>} : memref<64x32xf32, #tpu.memory_space<vmem>>, vector<8x32xf32>,
    %c4_i32 = arith.constant 4 : i32
    %145 = arith.index_cast %c4_i32 : i32 to index
    %c0_40 = arith.constant 0 : index
    %c0_41 = arith.constant 0 : index
    %146 = vector.load %arg2[%145, %c0_40, %c0_41] : memref<8x8x128xf32, #tpu.memory_space<vmem>>, vector<1x8x128xf32>
    %147 = vector.shape_cast %146 : vector<1x8x128xf32> to vector<8x128xf32>
    %cst_42 = arith.constant dense<0.000000e+00> : vector<8x128xf32>
    %148 = tpu.matmul %140, %4, %cst_42 {dimension_numbers = #tpu.dot_dimension_numbers<[1], [0], [0], [1], [0, 0, 1, 1], [], []>} : vector<8x32xf32>, vector<32x128xf32>, vector<8x128xf32> -> vector<8x128xf32>
    %149 = arith.addf %147, %148 : vector<8x128xf32>
    %150 = vector.extract_strided_slice %149 {offsets = [0, 0], sizes = [8, 32], strides = [1, 1]} : vector<8x128xf32> to vector<8x32xf32>
    %151 = arith.negf %150 : vector<8x32xf32>
    %152 = math.exp %151 : vector<8x32xf32>
    %cst_43 = arith.constant 1.000000e+00 : f32
    %153 = vector.broadcast %cst_43 : f32 to vector<8x32xf32>
    %154 = arith.addf %153, %152 : vector<8x32xf32>
    %155 = arith.divf %153, %154 : vector<8x32xf32>
    %156 = vector.extract_strided_slice %149 {offsets = [0, 32], sizes = [8, 32], strides = [1, 1]} : vector<8x128xf32> to vector<8x32xf32>
    %157 = arith.negf %156 : vector<8x32xf32>
    %158 = math.exp %157 : vector<8x32xf32>
    %cst_44 = arith.constant 1.000000e+00 : f32
    %159 = vector.broadcast %cst_44 : f32 to vector<8x32xf32>
    %160 = arith.addf %159, %158 : vector<8x32xf32>
    %161 = arith.divf %159, %160 : vector<8x32xf32>
    %162 = vector.extract_strided_slice %149 {offsets = [0, 64], sizes = [8, 32], strides = [1, 1]} : vector<8x128xf32> to vector<8x32xf32>
    %163 = math.tanh %162 : vector<8x32xf32>
    %164 = vector.extract_strided_slice %149 {offsets = [0, 96], sizes = [8, 32], strides = [1, 1]} : vector<8x128xf32> to vector<8x32xf32>
    %165 = arith.negf %164 : vector<8x32xf32>
    %166 = math.exp %165 : vector<8x32xf32>
    %cst_45 = arith.constant 1.000000e+00 : f32
    %167 = vector.broadcast %cst_45 : f32 to vector<8x32xf32>
    %168 = arith.addf %167, %166 : vector<8x32xf32>
    %169 = arith.divf %167, %168 : vector<8x32xf32>
    %170 = arith.mulf %161, %138 : vector<8x32xf32>
    %171 = arith.mulf %155, %163 : vector<8x32xf32>
    %172 = arith.addf %170, %171 : vector<8x32xf32>
    %173 = math.tanh %172 : vector<8x32xf32>
    %174 = arith.mulf %169, %173 : vector<8x32xf32>
    %c8_i32_46 = arith.constant 8 : i32
    %175 = arith.muli %c4_i32, %c8_i32_46 : i32
    %176 = tpu.assume_multiple %175, 8 : i32
    %177 = arith.index_cast %176 : i32 to index
    %c0_47 = arith.constant 0 : index
    %178 = vector.load %arg11[%177, %c0_47] : memref<64x32xf32, #tpu.memory_space<vmem>>, vector<8x32xf32>
    tpu.vector_store %arg11[%177, %c0_47], %174 {strides = array<i32>} : memref<64x32xf32, #tpu.memory_space<vmem>>, vector<8x32xf32>,
    %c5_i32 = arith.constant 5 : i32
    %179 = arith.index_cast %c5_i32 : i32 to index
    %c0_48 = arith.constant 0 : index
    %c0_49 = arith.constant 0 : index
    %180 = vector.load %arg2[%179, %c0_48, %c0_49] : memref<8x8x128xf32, #tpu.memory_space<vmem>>, vector<1x8x128xf32>
    %181 = vector.shape_cast %180 : vector<1x8x128xf32> to vector<8x128xf32>
    %cst_50 = arith.constant dense<0.000000e+00> : vector<8x128xf32>
    %182 = tpu.matmul %174, %4, %cst_50 {dimension_numbers = #tpu.dot_dimension_numbers<[1], [0], [0], [1], [0, 0, 1, 1], [], []>} : vector<8x32xf32>, vector<32x128xf32>, vector<8x128xf32> -> vector<8x128xf32>
    %183 = arith.addf %181, %182 : vector<8x128xf32>
    %184 = vector.extract_strided_slice %183 {offsets = [0, 0], sizes = [8, 32], strides = [1, 1]} : vector<8x128xf32> to vector<8x32xf32>
    %185 = arith.negf %184 : vector<8x32xf32>
    %186 = math.exp %185 : vector<8x32xf32>
    %cst_51 = arith.constant 1.000000e+00 : f32
    %187 = vector.broadcast %cst_51 : f32 to vector<8x32xf32>
    %188 = arith.addf %187, %186 : vector<8x32xf32>
    %189 = arith.divf %187, %188 : vector<8x32xf32>
    %190 = vector.extract_strided_slice %183 {offsets = [0, 32], sizes = [8, 32], strides = [1, 1]} : vector<8x128xf32> to vector<8x32xf32>
    %191 = arith.negf %190 : vector<8x32xf32>
    %192 = math.exp %191 : vector<8x32xf32>
    %cst_52 = arith.constant 1.000000e+00 : f32
    %193 = vector.broadcast %cst_52 : f32 to vector<8x32xf32>
    %194 = arith.addf %193, %192 : vector<8x32xf32>
    %195 = arith.divf %193, %194 : vector<8x32xf32>
    %196 = vector.extract_strided_slice %183 {offsets = [0, 64], sizes = [8, 32], strides = [1, 1]} : vector<8x128xf32> to vector<8x32xf32>
    %197 = math.tanh %196 : vector<8x32xf32>
    %198 = vector.extract_strided_slice %183 {offsets = [0, 96], sizes = [8, 32], strides = [1, 1]} : vector<8x128xf32> to vector<8x32xf32>
    %199 = arith.negf %198 : vector<8x32xf32>
    %200 = math.exp %199 : vector<8x32xf32>
    %cst_53 = arith.constant 1.000000e+00 : f32
    %201 = vector.broadcast %cst_53 : f32 to vector<8x32xf32>
    %202 = arith.addf %201, %200 : vector<8x32xf32>
    %203 = arith.divf %201, %202 : vector<8x32xf32>
    %204 = arith.mulf %195, %172 : vector<8x32xf32>
    %205 = arith.mulf %189, %197 : vector<8x32xf32>
    %206 = arith.addf %204, %205 : vector<8x32xf32>
    %207 = math.tanh %206 : vector<8x32xf32>
    %208 = arith.mulf %203, %207 : vector<8x32xf32>
    %c8_i32_54 = arith.constant 8 : i32
    %209 = arith.muli %c5_i32, %c8_i32_54 : i32
    %210 = tpu.assume_multiple %209, 8 : i32
    %211 = arith.index_cast %210 : i32 to index
    %c0_55 = arith.constant 0 : index
    %212 = vector.load %arg11[%211, %c0_55] : memref<64x32xf32, #tpu.memory_space<vmem>>, vector<8x32xf32>
    tpu.vector_store %arg11[%211, %c0_55], %208 {strides = array<i32>} : memref<64x32xf32, #tpu.memory_space<vmem>>, vector<8x32xf32>,
    %c6_i32 = arith.constant 6 : i32
    %213 = arith.index_cast %c6_i32 : i32 to index
    %c0_56 = arith.constant 0 : index
    %c0_57 = arith.constant 0 : index
    %214 = vector.load %arg2[%213, %c0_56, %c0_57] : memref<8x8x128xf32, #tpu.memory_space<vmem>>, vector<1x8x128xf32>
    %215 = vector.shape_cast %214 : vector<1x8x128xf32> to vector<8x128xf32>
    %cst_58 = arith.constant dense<0.000000e+00> : vector<8x128xf32>
    %216 = tpu.matmul %208, %4, %cst_58 {dimension_numbers = #tpu.dot_dimension_numbers<[1], [0], [0], [1], [0, 0, 1, 1], [], []>} : vector<8x32xf32>, vector<32x128xf32>, vector<8x128xf32> -> vector<8x128xf32>
    %217 = arith.addf %215, %216 : vector<8x128xf32>
    %218 = vector.extract_strided_slice %217 {offsets = [0, 0], sizes = [8, 32], strides = [1, 1]} : vector<8x128xf32> to vector<8x32xf32>
    %219 = arith.negf %218 : vector<8x32xf32>
    %220 = math.exp %219 : vector<8x32xf32>
    %cst_59 = arith.constant 1.000000e+00 : f32
    %221 = vector.broadcast %cst_59 : f32 to vector<8x32xf32>
    %222 = arith.addf %221, %220 : vector<8x32xf32>
    %223 = arith.divf %221, %222 : vector<8x32xf32>
    %224 = vector.extract_strided_slice %217 {offsets = [0, 32], sizes = [8, 32], strides = [1, 1]} : vector<8x128xf32> to vector<8x32xf32>
    %225 = arith.negf %224 : vector<8x32xf32>
    %226 = math.exp %225 : vector<8x32xf32>
    %cst_60 = arith.constant 1.000000e+00 : f32
    %227 = vector.broadcast %cst_60 : f32 to vector<8x32xf32>
    %228 = arith.addf %227, %226 : vector<8x32xf32>
    %229 = arith.divf %227, %228 : vector<8x32xf32>
    %230 = vector.extract_strided_slice %217 {offsets = [0, 64], sizes = [8, 32], strides = [1, 1]} : vector<8x128xf32> to vector<8x32xf32>
    %231 = math.tanh %230 : vector<8x32xf32>
    %232 = vector.extract_strided_slice %217 {offsets = [0, 96], sizes = [8, 32], strides = [1, 1]} : vector<8x128xf32> to vector<8x32xf32>
    %233 = arith.negf %232 : vector<8x32xf32>
    %234 = math.exp %233 : vector<8x32xf32>
    %cst_61 = arith.constant 1.000000e+00 : f32
    %235 = vector.broadcast %cst_61 : f32 to vector<8x32xf32>
    %236 = arith.addf %235, %234 : vector<8x32xf32>
    %237 = arith.divf %235, %236 : vector<8x32xf32>
    %238 = arith.mulf %229, %206 : vector<8x32xf32>
    %239 = arith.mulf %223, %231 : vector<8x32xf32>
    %240 = arith.addf %238, %239 : vector<8x32xf32>
    %241 = math.tanh %240 : vector<8x32xf32>
    %242 = arith.mulf %237, %241 : vector<8x32xf32>
    %c8_i32_62 = arith.constant 8 : i32
    %243 = arith.muli %c6_i32, %c8_i32_62 : i32
    %244 = tpu.assume_multiple %243, 8 : i32
    %245 = arith.index_cast %244 : i32 to index
    %c0_63 = arith.constant 0 : index
    %246 = vector.load %arg11[%245, %c0_63] : memref<64x32xf32, #tpu.memory_space<vmem>>, vector<8x32xf32>
    tpu.vector_store %arg11[%245, %c0_63], %242 {strides = array<i32>} : memref<64x32xf32, #tpu.memory_space<vmem>>, vector<8x32xf32>,
    %c7_i32 = arith.constant 7 : i32
    %247 = arith.index_cast %c7_i32 : i32 to index
    %c0_64 = arith.constant 0 : index
    %c0_65 = arith.constant 0 : index
    %248 = vector.load %arg2[%247, %c0_64, %c0_65] : memref<8x8x128xf32, #tpu.memory_space<vmem>>, vector<1x8x128xf32>
    %249 = vector.shape_cast %248 : vector<1x8x128xf32> to vector<8x128xf32>
    %cst_66 = arith.constant dense<0.000000e+00> : vector<8x128xf32>
    %250 = tpu.matmul %242, %4, %cst_66 {dimension_numbers = #tpu.dot_dimension_numbers<[1], [0], [0], [1], [0, 0, 1, 1], [], []>} : vector<8x32xf32>, vector<32x128xf32>, vector<8x128xf32> -> vector<8x128xf32>
    %251 = arith.addf %249, %250 : vector<8x128xf32>
    %252 = vector.extract_strided_slice %251 {offsets = [0, 0], sizes = [8, 32], strides = [1, 1]} : vector<8x128xf32> to vector<8x32xf32>
    %253 = arith.negf %252 : vector<8x32xf32>
    %254 = math.exp %253 : vector<8x32xf32>
    %cst_67 = arith.constant 1.000000e+00 : f32
    %255 = vector.broadcast %cst_67 : f32 to vector<8x32xf32>
    %256 = arith.addf %255, %254 : vector<8x32xf32>
    %257 = arith.divf %255, %256 : vector<8x32xf32>
    %258 = vector.extract_strided_slice %251 {offsets = [0, 32], sizes = [8, 32], strides = [1, 1]} : vector<8x128xf32> to vector<8x32xf32>
    %259 = arith.negf %258 : vector<8x32xf32>
    %260 = math.exp %259 : vector<8x32xf32>
    %cst_68 = arith.constant 1.000000e+00 : f32
    %261 = vector.broadcast %cst_68 : f32 to vector<8x32xf32>
    %262 = arith.addf %261, %260 : vector<8x32xf32>
    %263 = arith.divf %261, %262 : vector<8x32xf32>
    %264 = vector.extract_strided_slice %251 {offsets = [0, 64], sizes = [8, 32], strides = [1, 1]} : vector<8x128xf32> to vector<8x32xf32>
    %265 = math.tanh %264 : vector<8x32xf32>
    %266 = vector.extract_strided_slice %251 {offsets = [0, 96], sizes = [8, 32], strides = [1, 1]} : vector<8x128xf32> to vector<8x32xf32>
    %267 = arith.negf %266 : vector<8x32xf32>
    %268 = math.exp %267 : vector<8x32xf32>
    %cst_69 = arith.constant 1.000000e+00 : f32
    %269 = vector.broadcast %cst_69 : f32 to vector<8x32xf32>
    %270 = arith.addf %269, %268 : vector<8x32xf32>
    %271 = arith.divf %269, %270 : vector<8x32xf32>
    %272 = arith.mulf %263, %240 : vector<8x32xf32>
    %273 = arith.mulf %257, %265 : vector<8x32xf32>
    %274 = arith.addf %272, %273 : vector<8x32xf32>
    %275 = math.tanh %274 : vector<8x32xf32>
    %276 = arith.mulf %271, %275 : vector<8x32xf32>
    %c8_i32_70 = arith.constant 8 : i32
    %277 = arith.muli %c7_i32, %c8_i32_70 : i32
    %278 = tpu.assume_multiple %277, 8 : i32
    %279 = arith.index_cast %278 : i32 to index
    %c0_71 = arith.constant 0 : index
    %280 = vector.load %arg11[%279, %c0_71] : memref<64x32xf32, #tpu.memory_space<vmem>>, vector<8x32xf32>
    tpu.vector_store %arg11[%279, %c0_71], %276 {strides = array<i32>} : memref<64x32xf32, #tpu.memory_space<vmem>>, vector<8x32xf32>,
    %c8_i32_72 = arith.constant 8 : i32
    %c0_73 = arith.constant 0 : index
    %c0_74 = arith.constant 0 : index
    %c0_75 = arith.constant 0 : index
    %281 = vector.load %arg9[%c0_73, %c0_74, %c0_75] : memref<2x8x32xf32, #tpu.memory_space<vmem>>, vector<1x8x32xf32>
    %282 = vector.shape_cast %281 : vector<1x8x32xf32> to vector<8x32xf32>
    %283 = vector.shape_cast %276 : vector<8x32xf32> to vector<1x8x32xf32>
    tpu.vector_store %arg9[%c0_73, %c0_74, %c0_75], %283 {strides = array<i32>} : memref<2x8x32xf32, #tpu.memory_space<vmem>>, vector<1x8x32xf32>,
    %c0_76 = arith.constant 0 : index
    %c0_77 = arith.constant 0 : index
    %c0_78 = arith.constant 0 : index
    %284 = vector.load %arg10[%c0_76, %c0_77, %c0_78] : memref<2x8x32xf32, #tpu.memory_space<vmem>>, vector<1x8x32xf32>
    %285 = vector.shape_cast %284 : vector<1x8x32xf32> to vector<8x32xf32>
    %286 = vector.shape_cast %274 : vector<8x32xf32> to vector<1x8x32xf32>
    tpu.vector_store %arg10[%c0_76, %c0_77, %c0_78], %286 {strides = array<i32>} : memref<2x8x32xf32, #tpu.memory_space<vmem>>, vector<1x8x32xf32>,
    %c0_79 = arith.constant 0 : index
    %c0_80 = arith.constant 0 : index
    %287 = vector.load %arg11[%c0_79, %c0_80] : memref<64x32xf32, #tpu.memory_space<vmem>>, vector<64x32xf32>
    %c0_81 = arith.constant 0 : index
    %c0_82 = arith.constant 0 : index
    %c0_83 = arith.constant 0 : index
    %288 = vector.load %arg4[%c0_81, %c0_82, %c0_83] : memref<1x32x128xf32, #tpu.memory_space<vmem>>, vector<1x32x128xf32>
    %289 = vector.shape_cast %288 : vector<1x32x128xf32> to vector<32x128xf32>
    %cst_84 = arith.constant dense<0.000000e+00> : vector<64x128xf32>
    %290 = tpu.matmul %287, %289, %cst_84 {dimension_numbers = #tpu.dot_dimension_numbers<[1], [0], [0], [1], [0, 0, 1, 1], [], []>} : vector<64x32xf32>, vector<32x128xf32>, vector<64x128xf32> -> vector<64x128xf32>
    %c0_85 = arith.constant 0 : index
    %c0_86 = arith.constant 0 : index
    %c0_87 = arith.constant 0 : index
    %291 = vector.load %arg5[%c0_85, %c0_86, %c0_87] : memref<1x1x128xf32, #tpu.memory_space<vmem>>, vector<1x1x128xf32>
    %292 = vector.shape_cast %291 : vector<1x1x128xf32> to vector<1x128xf32>
    %293 = vector.broadcast %292 : vector<1x128xf32> to vector<64x128xf32>
    %294 = arith.addf %290, %293 : vector<64x128xf32>
    %c0_88 = arith.constant 0 : index
    %c0_89 = arith.constant 0 : index
    %295 = vector.load %arg12[%c0_88, %c0_89] : memref<64x128xf32, #tpu.memory_space<vmem>>, vector<64x128xf32>
    tpu.vector_store %arg12[%c0_88, %c0_89], %294 {strides = array<i32>} : memref<64x128xf32, #tpu.memory_space<vmem>>, vector<64x128xf32>,
    %c1 = arith.constant 1 : index
    %c0_90 = arith.constant 0 : index
    %c0_91 = arith.constant 0 : index
    %296 = vector.load %arg3[%c1, %c0_90, %c0_91] : memref<2x32x128xf32, #tpu.memory_space<vmem>>, vector<1x32x128xf32>
    %297 = vector.shape_cast %296 : vector<1x32x128xf32> to vector<32x128xf32>
    %c1_92 = arith.constant 1 : index
    %c0_93 = arith.constant 0 : index
    %c0_94 = arith.constant 0 : index
    %298 = vector.load %arg9[%c1_92, %c0_93, %c0_94] : memref<2x8x32xf32, #tpu.memory_space<vmem>>, vector<1x8x32xf32>
    %299 = vector.shape_cast %298 : vector<1x8x32xf32> to vector<8x32xf32>
    %c1_95 = arith.constant 1 : index
    %c0_96 = arith.constant 0 : index
    %c0_97 = arith.constant 0 : index
    %300 = vector.load %arg10[%c1_95, %c0_96, %c0_97] : memref<2x8x32xf32, #tpu.memory_space<vmem>>, vector<1x8x32xf32>
    %301 = vector.shape_cast %300 : vector<1x8x32xf32> to vector<8x32xf32>
    %c0_i32_98 = arith.constant 0 : i32
    %c8_i32_99 = arith.constant 8 : i32
    %302 = arith.muli %c0_i32_98, %c8_i32_99 : i32
    %303 = tpu.assume_multiple %302, 8 : i32
    %304 = arith.index_cast %303 : i32 to index
    %c0_100 = arith.constant 0 : index
    %305 = vector.load %arg12[%304, %c0_100] : memref<64x128xf32, #tpu.memory_space<vmem>>, vector<8x128xf32>
    %cst_101 = arith.constant dense<0.000000e+00> : vector<8x128xf32>
    %306 = tpu.matmul %299, %297, %cst_101 {dimension_numbers = #tpu.dot_dimension_numbers<[1], [0], [0], [1], [0, 0, 1, 1], [], []>} : vector<8x32xf32>, vector<32x128xf32>, vector<8x128xf32> -> vector<8x128xf32>
    %307 = arith.addf %305, %306 : vector<8x128xf32>
    %308 = vector.extract_strided_slice %307 {offsets = [0, 0], sizes = [8, 32], strides = [1, 1]} : vector<8x128xf32> to vector<8x32xf32>
    %309 = arith.negf %308 : vector<8x32xf32>
    %310 = math.exp %309 : vector<8x32xf32>
    %cst_102 = arith.constant 1.000000e+00 : f32
    %311 = vector.broadcast %cst_102 : f32 to vector<8x32xf32>
    %312 = arith.addf %311, %310 : vector<8x32xf32>
    %313 = arith.divf %311, %312 : vector<8x32xf32>
    %314 = vector.extract_strided_slice %307 {offsets = [0, 32], sizes = [8, 32], strides = [1, 1]} : vector<8x128xf32> to vector<8x32xf32>
    %315 = arith.negf %314 : vector<8x32xf32>
    %316 = math.exp %315 : vector<8x32xf32>
    %cst_103 = arith.constant 1.000000e+00 : f32
    %317 = vector.broadcast %cst_103 : f32 to vector<8x32xf32>
    %318 = arith.addf %317, %316 : vector<8x32xf32>
    %319 = arith.divf %317, %318 : vector<8x32xf32>
    %320 = vector.extract_strided_slice %307 {offsets = [0, 64], sizes = [8, 32], strides = [1, 1]} : vector<8x128xf32> to vector<8x32xf32>
    %321 = math.tanh %320 : vector<8x32xf32>
    %322 = vector.extract_strided_slice %307 {offsets = [0, 96], sizes = [8, 32], strides = [1, 1]} : vector<8x128xf32> to vector<8x32xf32>
    %323 = arith.negf %322 : vector<8x32xf32>
    %324 = math.exp %323 : vector<8x32xf32>
    %cst_104 = arith.constant 1.000000e+00 : f32
    %325 = vector.broadcast %cst_104 : f32 to vector<8x32xf32>
    %326 = arith.addf %325, %324 : vector<8x32xf32>
    %327 = arith.divf %325, %326 : vector<8x32xf32>
    %328 = arith.mulf %319, %301 : vector<8x32xf32>
    %329 = arith.mulf %313, %321 : vector<8x32xf32>
    %330 = arith.addf %328, %329 : vector<8x32xf32>
    %331 = math.tanh %330 : vector<8x32xf32>
    %332 = arith.mulf %327, %331 : vector<8x32xf32>
    %c8_i32_105 = arith.constant 8 : i32
    %333 = arith.muli %c0_i32_98, %c8_i32_105 : i32
    %334 = tpu.assume_multiple %333, 8 : i32
    %335 = arith.index_cast %334 : i32 to index
    %c0_106 = arith.constant 0 : index
    %336 = vector.load %arg11[%335, %c0_106] : memref<64x32xf32, #tpu.memory_space<vmem>>, vector<8x32xf32>
    tpu.vector_store %arg11[%335, %c0_106], %332 {strides = array<i32>} : memref<64x32xf32, #tpu.memory_space<vmem>>, vector<8x32xf32>,
    %c1_i32_107 = arith.constant 1 : i32
    %c8_i32_108 = arith.constant 8 : i32
    %337 = arith.muli %c1_i32_107, %c8_i32_108 : i32
    %338 = tpu.assume_multiple %337, 8 : i32
    %339 = arith.index_cast %338 : i32 to index
    %c0_109 = arith.constant 0 : index
    %340 = vector.load %arg12[%339, %c0_109] : memref<64x128xf32, #tpu.memory_space<vmem>>, vector<8x128xf32>
    %cst_110 = arith.constant dense<0.000000e+00> : vector<8x128xf32>
    %341 = tpu.matmul %332, %297, %cst_110 {dimension_numbers = #tpu.dot_dimension_numbers<[1], [0], [0], [1], [0, 0, 1, 1], [], []>} : vector<8x32xf32>, vector<32x128xf32>, vector<8x128xf32> -> vector<8x128xf32>
    %342 = arith.addf %340, %341 : vector<8x128xf32>
    %343 = vector.extract_strided_slice %342 {offsets = [0, 0], sizes = [8, 32], strides = [1, 1]} : vector<8x128xf32> to vector<8x32xf32>
    %344 = arith.negf %343 : vector<8x32xf32>
    %345 = math.exp %344 : vector<8x32xf32>
    %cst_111 = arith.constant 1.000000e+00 : f32
    %346 = vector.broadcast %cst_111 : f32 to vector<8x32xf32>
    %347 = arith.addf %346, %345 : vector<8x32xf32>
    %348 = arith.divf %346, %347 : vector<8x32xf32>
    %349 = vector.extract_strided_slice %342 {offsets = [0, 32], sizes = [8, 32], strides = [1, 1]} : vector<8x128xf32> to vector<8x32xf32>
    %350 = arith.negf %349 : vector<8x32xf32>
    %351 = math.exp %350 : vector<8x32xf32>
    %cst_112 = arith.constant 1.000000e+00 : f32
    %352 = vector.broadcast %cst_112 : f32 to vector<8x32xf32>
    %353 = arith.addf %352, %351 : vector<8x32xf32>
    %354 = arith.divf %352, %353 : vector<8x32xf32>
    %355 = vector.extract_strided_slice %342 {offsets = [0, 64], sizes = [8, 32], strides = [1, 1]} : vector<8x128xf32> to vector<8x32xf32>
    %356 = math.tanh %355 : vector<8x32xf32>
    %357 = vector.extract_strided_slice %342 {offsets = [0, 96], sizes = [8, 32], strides = [1, 1]} : vector<8x128xf32> to vector<8x32xf32>
    %358 = arith.negf %357 : vector<8x32xf32>
    %359 = math.exp %358 : vector<8x32xf32>
    %cst_113 = arith.constant 1.000000e+00 : f32
    %360 = vector.broadcast %cst_113 : f32 to vector<8x32xf32>
    %361 = arith.addf %360, %359 : vector<8x32xf32>
    %362 = arith.divf %360, %361 : vector<8x32xf32>
    %363 = arith.mulf %354, %330 : vector<8x32xf32>
    %364 = arith.mulf %348, %356 : vector<8x32xf32>
    %365 = arith.addf %363, %364 : vector<8x32xf32>
    %366 = math.tanh %365 : vector<8x32xf32>
    %367 = arith.mulf %362, %366 : vector<8x32xf32>
    %c8_i32_114 = arith.constant 8 : i32
    %368 = arith.muli %c1_i32_107, %c8_i32_114 : i32
    %369 = tpu.assume_multiple %368, 8 : i32
    %370 = arith.index_cast %369 : i32 to index
    %c0_115 = arith.constant 0 : index
    %371 = vector.load %arg11[%370, %c0_115] : memref<64x32xf32, #tpu.memory_space<vmem>>, vector<8x32xf32>
    tpu.vector_store %arg11[%370, %c0_115], %367 {strides = array<i32>} : memref<64x32xf32, #tpu.memory_space<vmem>>, vector<8x32xf32>,
    %c2_i32_116 = arith.constant 2 : i32
    %c8_i32_117 = arith.constant 8 : i32
    %372 = arith.muli %c2_i32_116, %c8_i32_117 : i32
    %373 = tpu.assume_multiple %372, 8 : i32
    %374 = arith.index_cast %373 : i32 to index
    %c0_118 = arith.constant 0 : index
    %375 = vector.load %arg12[%374, %c0_118] : memref<64x128xf32, #tpu.memory_space<vmem>>, vector<8x128xf32>
    %cst_119 = arith.constant dense<0.000000e+00> : vector<8x128xf32>
    %376 = tpu.matmul %367, %297, %cst_119 {dimension_numbers = #tpu.dot_dimension_numbers<[1], [0], [0], [1], [0, 0, 1, 1], [], []>} : vector<8x32xf32>, vector<32x128xf32>, vector<8x128xf32> -> vector<8x128xf32>
    %377 = arith.addf %375, %376 : vector<8x128xf32>
    %378 = vector.extract_strided_slice %377 {offsets = [0, 0], sizes = [8, 32], strides = [1, 1]} : vector<8x128xf32> to vector<8x32xf32>
    %379 = arith.negf %378 : vector<8x32xf32>
    %380 = math.exp %379 : vector<8x32xf32>
    %cst_120 = arith.constant 1.000000e+00 : f32
    %381 = vector.broadcast %cst_120 : f32 to vector<8x32xf32>
    %382 = arith.addf %381, %380 : vector<8x32xf32>
    %383 = arith.divf %381, %382 : vector<8x32xf32>
    %384 = vector.extract_strided_slice %377 {offsets = [0, 32], sizes = [8, 32], strides = [1, 1]} : vector<8x128xf32> to vector<8x32xf32>
    %385 = arith.negf %384 : vector<8x32xf32>
    %386 = math.exp %385 : vector<8x32xf32>
    %cst_121 = arith.constant 1.000000e+00 : f32
    %387 = vector.broadcast %cst_121 : f32 to vector<8x32xf32>
    %388 = arith.addf %387, %386 : vector<8x32xf32>
    %389 = arith.divf %387, %388 : vector<8x32xf32>
    %390 = vector.extract_strided_slice %377 {offsets = [0, 64], sizes = [8, 32], strides = [1, 1]} : vector<8x128xf32> to vector<8x32xf32>
    %391 = math.tanh %390 : vector<8x32xf32>
    %392 = vector.extract_strided_slice %377 {offsets = [0, 96], sizes = [8, 32], strides = [1, 1]} : vector<8x128xf32> to vector<8x32xf32>
    %393 = arith.negf %392 : vector<8x32xf32>
    %394 = math.exp %393 : vector<8x32xf32>
    %cst_122 = arith.constant 1.000000e+00 : f32
    %395 = vector.broadcast %cst_122 : f32 to vector<8x32xf32>
    %396 = arith.addf %395, %394 : vector<8x32xf32>
    %397 = arith.divf %395, %396 : vector<8x32xf32>
    %398 = arith.mulf %389, %365 : vector<8x32xf32>
    %399 = arith.mulf %383, %391 : vector<8x32xf32>
    %400 = arith.addf %398, %399 : vector<8x32xf32>
    %401 = math.tanh %400 : vector<8x32xf32>
    %402 = arith.mulf %397, %401 : vector<8x32xf32>
    %c8_i32_123 = arith.constant 8 : i32
    %403 = arith.muli %c2_i32_116, %c8_i32_123 : i32
    %404 = tpu.assume_multiple %403, 8 : i32
    %405 = arith.index_cast %404 : i32 to index
    %c0_124 = arith.constant 0 : index
    %406 = vector.load %arg11[%405, %c0_124] : memref<64x32xf32, #tpu.memory_space<vmem>>, vector<8x32xf32>
    tpu.vector_store %arg11[%405, %c0_124], %402 {strides = array<i32>} : memref<64x32xf32, #tpu.memory_space<vmem>>, vector<8x32xf32>,
    %c3_i32_125 = arith.constant 3 : i32
    %c8_i32_126 = arith.constant 8 : i32
    %407 = arith.muli %c3_i32_125, %c8_i32_126 : i32
    %408 = tpu.assume_multiple %407, 8 : i32
    %409 = arith.index_cast %408 : i32 to index
    %c0_127 = arith.constant 0 : index
    %410 = vector.load %arg12[%409, %c0_127] : memref<64x128xf32, #tpu.memory_space<vmem>>, vector<8x128xf32>
    %cst_128 = arith.constant dense<0.000000e+00> : vector<8x128xf32>
    %411 = tpu.matmul %402, %297, %cst_128 {dimension_numbers = #tpu.dot_dimension_numbers<[1], [0], [0], [1], [0, 0, 1, 1], [], []>} : vector<8x32xf32>, vector<32x128xf32>, vector<8x128xf32> -> vector<8x128xf32>
    %412 = arith.addf %410, %411 : vector<8x128xf32>
    %413 = vector.extract_strided_slice %412 {offsets = [0, 0], sizes = [8, 32], strides = [1, 1]} : vector<8x128xf32> to vector<8x32xf32>
    %414 = arith.negf %413 : vector<8x32xf32>
    %415 = math.exp %414 : vector<8x32xf32>
    %cst_129 = arith.constant 1.000000e+00 : f32
    %416 = vector.broadcast %cst_129 : f32 to vector<8x32xf32>
    %417 = arith.addf %416, %415 : vector<8x32xf32>
    %418 = arith.divf %416, %417 : vector<8x32xf32>
    %419 = vector.extract_strided_slice %412 {offsets = [0, 32], sizes = [8, 32], strides = [1, 1]} : vector<8x128xf32> to vector<8x32xf32>
    %420 = arith.negf %419 : vector<8x32xf32>
    %421 = math.exp %420 : vector<8x32xf32>
    %cst_130 = arith.constant 1.000000e+00 : f32
    %422 = vector.broadcast %cst_130 : f32 to vector<8x32xf32>
    %423 = arith.addf %422, %421 : vector<8x32xf32>
    %424 = arith.divf %422, %423 : vector<8x32xf32>
    %425 = vector.extract_strided_slice %412 {offsets = [0, 64], sizes = [8, 32], strides = [1, 1]} : vector<8x128xf32> to vector<8x32xf32>
    %426 = math.tanh %425 : vector<8x32xf32>
    %427 = vector.extract_strided_slice %412 {offsets = [0, 96], sizes = [8, 32], strides = [1, 1]} : vector<8x128xf32> to vector<8x32xf32>
    %428 = arith.negf %427 : vector<8x32xf32>
    %429 = math.exp %428 : vector<8x32xf32>
    %cst_131 = arith.constant 1.000000e+00 : f32
    %430 = vector.broadcast %cst_131 : f32 to vector<8x32xf32>
    %431 = arith.addf %430, %429 : vector<8x32xf32>
    %432 = arith.divf %430, %431 : vector<8x32xf32>
    %433 = arith.mulf %424, %400 : vector<8x32xf32>
    %434 = arith.mulf %418, %426 : vector<8x32xf32>
    %435 = arith.addf %433, %434 : vector<8x32xf32>
    %436 = math.tanh %435 : vector<8x32xf32>
    %437 = arith.mulf %432, %436 : vector<8x32xf32>
    %c8_i32_132 = arith.constant 8 : i32
    %438 = arith.muli %c3_i32_125, %c8_i32_132 : i32
    %439 = tpu.assume_multiple %438, 8 : i32
    %440 = arith.index_cast %439 : i32 to index
    %c0_133 = arith.constant 0 : index
    %441 = vector.load %arg11[%440, %c0_133] : memref<64x32xf32, #tpu.memory_space<vmem>>, vector<8x32xf32>
    tpu.vector_store %arg11[%440, %c0_133], %437 {strides = array<i32>} : memref<64x32xf32, #tpu.memory_space<vmem>>, vector<8x32xf32>,
    %c4_i32_134 = arith.constant 4 : i32
    %c8_i32_135 = arith.constant 8 : i32
    %442 = arith.muli %c4_i32_134, %c8_i32_135 : i32
    %443 = tpu.assume_multiple %442, 8 : i32
    %444 = arith.index_cast %443 : i32 to index
    %c0_136 = arith.constant 0 : index
    %445 = vector.load %arg12[%444, %c0_136] : memref<64x128xf32, #tpu.memory_space<vmem>>, vector<8x128xf32>
    %cst_137 = arith.constant dense<0.000000e+00> : vector<8x128xf32>
    %446 = tpu.matmul %437, %297, %cst_137 {dimension_numbers = #tpu.dot_dimension_numbers<[1], [0], [0], [1], [0, 0, 1, 1], [], []>} : vector<8x32xf32>, vector<32x128xf32>, vector<8x128xf32> -> vector<8x128xf32>
    %447 = arith.addf %445, %446 : vector<8x128xf32>
    %448 = vector.extract_strided_slice %447 {offsets = [0, 0], sizes = [8, 32], strides = [1, 1]} : vector<8x128xf32> to vector<8x32xf32>
    %449 = arith.negf %448 : vector<8x32xf32>
    %450 = math.exp %449 : vector<8x32xf32>
    %cst_138 = arith.constant 1.000000e+00 : f32
    %451 = vector.broadcast %cst_138 : f32 to vector<8x32xf32>
    %452 = arith.addf %451, %450 : vector<8x32xf32>
    %453 = arith.divf %451, %452 : vector<8x32xf32>
    %454 = vector.extract_strided_slice %447 {offsets = [0, 32], sizes = [8, 32], strides = [1, 1]} : vector<8x128xf32> to vector<8x32xf32>
    %455 = arith.negf %454 : vector<8x32xf32>
    %456 = math.exp %455 : vector<8x32xf32>
    %cst_139 = arith.constant 1.000000e+00 : f32
    %457 = vector.broadcast %cst_139 : f32 to vector<8x32xf32>
    %458 = arith.addf %457, %456 : vector<8x32xf32>
    %459 = arith.divf %457, %458 : vector<8x32xf32>
    %460 = vector.extract_strided_slice %447 {offsets = [0, 64], sizes = [8, 32], strides = [1, 1]} : vector<8x128xf32> to vector<8x32xf32>
    %461 = math.tanh %460 : vector<8x32xf32>
    %462 = vector.extract_strided_slice %447 {offsets = [0, 96], sizes = [8, 32], strides = [1, 1]} : vector<8x128xf32> to vector<8x32xf32>
    %463 = arith.negf %462 : vector<8x32xf32>
    %464 = math.exp %463 : vector<8x32xf32>
    %cst_140 = arith.constant 1.000000e+00 : f32
    %465 = vector.broadcast %cst_140 : f32 to vector<8x32xf32>
    %466 = arith.addf %465, %464 : vector<8x32xf32>
    %467 = arith.divf %465, %466 : vector<8x32xf32>
    %468 = arith.mulf %459, %435 : vector<8x32xf32>
    %469 = arith.mulf %453, %461 : vector<8x32xf32>
    %470 = arith.addf %468, %469 : vector<8x32xf32>
    %471 = math.tanh %470 : vector<8x32xf32>
    %472 = arith.mulf %467, %471 : vector<8x32xf32>
    %c8_i32_141 = arith.constant 8 : i32
    %473 = arith.muli %c4_i32_134, %c8_i32_141 : i32
    %474 = tpu.assume_multiple %473, 8 : i32
    %475 = arith.index_cast %474 : i32 to index
    %c0_142 = arith.constant 0 : index
    %476 = vector.load %arg11[%475, %c0_142] : memref<64x32xf32, #tpu.memory_space<vmem>>, vector<8x32xf32>
    tpu.vector_store %arg11[%475, %c0_142], %472 {strides = array<i32>} : memref<64x32xf32, #tpu.memory_space<vmem>>, vector<8x32xf32>,
    %c5_i32_143 = arith.constant 5 : i32
    %c8_i32_144 = arith.constant 8 : i32
    %477 = arith.muli %c5_i32_143, %c8_i32_144 : i32
    %478 = tpu.assume_multiple %477, 8 : i32
    %479 = arith.index_cast %478 : i32 to index
    %c0_145 = arith.constant 0 : index
    %480 = vector.load %arg12[%479, %c0_145] : memref<64x128xf32, #tpu.memory_space<vmem>>, vector<8x128xf32>
    %cst_146 = arith.constant dense<0.000000e+00> : vector<8x128xf32>
    %481 = tpu.matmul %472, %297, %cst_146 {dimension_numbers = #tpu.dot_dimension_numbers<[1], [0], [0], [1], [0, 0, 1, 1], [], []>} : vector<8x32xf32>, vector<32x128xf32>, vector<8x128xf32> -> vector<8x128xf32>
    %482 = arith.addf %480, %481 : vector<8x128xf32>
    %483 = vector.extract_strided_slice %482 {offsets = [0, 0], sizes = [8, 32], strides = [1, 1]} : vector<8x128xf32> to vector<8x32xf32>
    %484 = arith.negf %483 : vector<8x32xf32>
    %485 = math.exp %484 : vector<8x32xf32>
    %cst_147 = arith.constant 1.000000e+00 : f32
    %486 = vector.broadcast %cst_147 : f32 to vector<8x32xf32>
    %487 = arith.addf %486, %485 : vector<8x32xf32>
    %488 = arith.divf %486, %487 : vector<8x32xf32>
    %489 = vector.extract_strided_slice %482 {offsets = [0, 32], sizes = [8, 32], strides = [1, 1]} : vector<8x128xf32> to vector<8x32xf32>
    %490 = arith.negf %489 : vector<8x32xf32>
    %491 = math.exp %490 : vector<8x32xf32>
    %cst_148 = arith.constant 1.000000e+00 : f32
    %492 = vector.broadcast %cst_148 : f32 to vector<8x32xf32>
    %493 = arith.addf %492, %491 : vector<8x32xf32>
    %494 = arith.divf %492, %493 : vector<8x32xf32>
    %495 = vector.extract_strided_slice %482 {offsets = [0, 64], sizes = [8, 32], strides = [1, 1]} : vector<8x128xf32> to vector<8x32xf32>
    %496 = math.tanh %495 : vector<8x32xf32>
    %497 = vector.extract_strided_slice %482 {offsets = [0, 96], sizes = [8, 32], strides = [1, 1]} : vector<8x128xf32> to vector<8x32xf32>
    %498 = arith.negf %497 : vector<8x32xf32>
    %499 = math.exp %498 : vector<8x32xf32>
    %cst_149 = arith.constant 1.000000e+00 : f32
    %500 = vector.broadcast %cst_149 : f32 to vector<8x32xf32>
    %501 = arith.addf %500, %499 : vector<8x32xf32>
    %502 = arith.divf %500, %501 : vector<8x32xf32>
    %503 = arith.mulf %494, %470 : vector<8x32xf32>
    %504 = arith.mulf %488, %496 : vector<8x32xf32>
    %505 = arith.addf %503, %504 : vector<8x32xf32>
    %506 = math.tanh %505 : vector<8x32xf32>
    %507 = arith.mulf %502, %506 : vector<8x32xf32>
    %c8_i32_150 = arith.constant 8 : i32
    %508 = arith.muli %c5_i32_143, %c8_i32_150 : i32
    %509 = tpu.assume_multiple %508, 8 : i32
    %510 = arith.index_cast %509 : i32 to index
    %c0_151 = arith.constant 0 : index
    %511 = vector.load %arg11[%510, %c0_151] : memref<64x32xf32, #tpu.memory_space<vmem>>, vector<8x32xf32>
    tpu.vector_store %arg11[%510, %c0_151], %507 {strides = array<i32>} : memref<64x32xf32, #tpu.memory_space<vmem>>, vector<8x32xf32>,
    %c6_i32_152 = arith.constant 6 : i32
    %c8_i32_153 = arith.constant 8 : i32
    %512 = arith.muli %c6_i32_152, %c8_i32_153 : i32
    %513 = tpu.assume_multiple %512, 8 : i32
    %514 = arith.index_cast %513 : i32 to index
    %c0_154 = arith.constant 0 : index
    %515 = vector.load %arg12[%514, %c0_154] : memref<64x128xf32, #tpu.memory_space<vmem>>, vector<8x128xf32>
    %cst_155 = arith.constant dense<0.000000e+00> : vector<8x128xf32>
    %516 = tpu.matmul %507, %297, %cst_155 {dimension_numbers = #tpu.dot_dimension_numbers<[1], [0], [0], [1], [0, 0, 1, 1], [], []>} : vector<8x32xf32>, vector<32x128xf32>, vector<8x128xf32> -> vector<8x128xf32>
    %517 = arith.addf %515, %516 : vector<8x128xf32>
    %518 = vector.extract_strided_slice %517 {offsets = [0, 0], sizes = [8, 32], strides = [1, 1]} : vector<8x128xf32> to vector<8x32xf32>
    %519 = arith.negf %518 : vector<8x32xf32>
    %520 = math.exp %519 : vector<8x32xf32>
    %cst_156 = arith.constant 1.000000e+00 : f32
    %521 = vector.broadcast %cst_156 : f32 to vector<8x32xf32>
    %522 = arith.addf %521, %520 : vector<8x32xf32>
    %523 = arith.divf %521, %522 : vector<8x32xf32>
    %524 = vector.extract_strided_slice %517 {offsets = [0, 32], sizes = [8, 32], strides = [1, 1]} : vector<8x128xf32> to vector<8x32xf32>
    %525 = arith.negf %524 : vector<8x32xf32>
    %526 = math.exp %525 : vector<8x32xf32>
    %cst_157 = arith.constant 1.000000e+00 : f32
    %527 = vector.broadcast %cst_157 : f32 to vector<8x32xf32>
    %528 = arith.addf %527, %526 : vector<8x32xf32>
    %529 = arith.divf %527, %528 : vector<8x32xf32>
    %530 = vector.extract_strided_slice %517 {offsets = [0, 64], sizes = [8, 32], strides = [1, 1]} : vector<8x128xf32> to vector<8x32xf32>
    %531 = math.tanh %530 : vector<8x32xf32>
    %532 = vector.extract_strided_slice %517 {offsets = [0, 96], sizes = [8, 32], strides = [1, 1]} : vector<8x128xf32> to vector<8x32xf32>
    %533 = arith.negf %532 : vector<8x32xf32>
    %534 = math.exp %533 : vector<8x32xf32>
    %cst_158 = arith.constant 1.000000e+00 : f32
    %535 = vector.broadcast %cst_158 : f32 to vector<8x32xf32>
    %536 = arith.addf %535, %534 : vector<8x32xf32>
    %537 = arith.divf %535, %536 : vector<8x32xf32>
    %538 = arith.mulf %529, %505 : vector<8x32xf32>
    %539 = arith.mulf %523, %531 : vector<8x32xf32>
    %540 = arith.addf %538, %539 : vector<8x32xf32>
    %541 = math.tanh %540 : vector<8x32xf32>
    %542 = arith.mulf %537, %541 : vector<8x32xf32>
    %c8_i32_159 = arith.constant 8 : i32
    %543 = arith.muli %c6_i32_152, %c8_i32_159 : i32
    %544 = tpu.assume_multiple %543, 8 : i32
    %545 = arith.index_cast %544 : i32 to index
    %c0_160 = arith.constant 0 : index
    %546 = vector.load %arg11[%545, %c0_160] : memref<64x32xf32, #tpu.memory_space<vmem>>, vector<8x32xf32>
    tpu.vector_store %arg11[%545, %c0_160], %542 {strides = array<i32>} : memref<64x32xf32, #tpu.memory_space<vmem>>, vector<8x32xf32>,
    %c7_i32_161 = arith.constant 7 : i32
    %c8_i32_162 = arith.constant 8 : i32
    %547 = arith.muli %c7_i32_161, %c8_i32_162 : i32
    %548 = tpu.assume_multiple %547, 8 : i32
    %549 = arith.index_cast %548 : i32 to index
    %c0_163 = arith.constant 0 : index
    %550 = vector.load %arg12[%549, %c0_163] : memref<64x128xf32, #tpu.memory_space<vmem>>, vector<8x128xf32>
    %cst_164 = arith.constant dense<0.000000e+00> : vector<8x128xf32>
    %551 = tpu.matmul %542, %297, %cst_164 {dimension_numbers = #tpu.dot_dimension_numbers<[1], [0], [0], [1], [0, 0, 1, 1], [], []>} : vector<8x32xf32>, vector<32x128xf32>, vector<8x128xf32> -> vector<8x128xf32>
    %552 = arith.addf %550, %551 : vector<8x128xf32>
    %553 = vector.extract_strided_slice %552 {offsets = [0, 0], sizes = [8, 32], strides = [1, 1]} : vector<8x128xf32> to vector<8x32xf32>
    %554 = arith.negf %553 : vector<8x32xf32>
    %555 = math.exp %554 : vector<8x32xf32>
    %cst_165 = arith.constant 1.000000e+00 : f32
    %556 = vector.broadcast %cst_165 : f32 to vector<8x32xf32>
    %557 = arith.addf %556, %555 : vector<8x32xf32>
    %558 = arith.divf %556, %557 : vector<8x32xf32>
    %559 = vector.extract_strided_slice %552 {offsets = [0, 32], sizes = [8, 32], strides = [1, 1]} : vector<8x128xf32> to vector<8x32xf32>
    %560 = arith.negf %559 : vector<8x32xf32>
    %561 = math.exp %560 : vector<8x32xf32>
    %cst_166 = arith.constant 1.000000e+00 : f32
    %562 = vector.broadcast %cst_166 : f32 to vector<8x32xf32>
    %563 = arith.addf %562, %561 : vector<8x32xf32>
    %564 = arith.divf %562, %563 : vector<8x32xf32>
    %565 = vector.extract_strided_slice %552 {offsets = [0, 64], sizes = [8, 32], strides = [1, 1]} : vector<8x128xf32> to vector<8x32xf32>
    %566 = math.tanh %565 : vector<8x32xf32>
    %567 = vector.extract_strided_slice %552 {offsets = [0, 96], sizes = [8, 32], strides = [1, 1]} : vector<8x128xf32> to vector<8x32xf32>
    %568 = arith.negf %567 : vector<8x32xf32>
    %569 = math.exp %568 : vector<8x32xf32>
    %cst_167 = arith.constant 1.000000e+00 : f32
    %570 = vector.broadcast %cst_167 : f32 to vector<8x32xf32>
    %571 = arith.addf %570, %569 : vector<8x32xf32>
    %572 = arith.divf %570, %571 : vector<8x32xf32>
    %573 = arith.mulf %564, %540 : vector<8x32xf32>
    %574 = arith.mulf %558, %566 : vector<8x32xf32>
    %575 = arith.addf %573, %574 : vector<8x32xf32>
    %576 = math.tanh %575 : vector<8x32xf32>
    %577 = arith.mulf %572, %576 : vector<8x32xf32>
    %c8_i32_168 = arith.constant 8 : i32
    %578 = arith.muli %c7_i32_161, %c8_i32_168 : i32
    %579 = tpu.assume_multiple %578, 8 : i32
    %580 = arith.index_cast %579 : i32 to index
    %c0_169 = arith.constant 0 : index
    %581 = vector.load %arg11[%580, %c0_169] : memref<64x32xf32, #tpu.memory_space<vmem>>, vector<8x32xf32>
    tpu.vector_store %arg11[%580, %c0_169], %577 {strides = array<i32>} : memref<64x32xf32, #tpu.memory_space<vmem>>, vector<8x32xf32>,
    %c8_i32_170 = arith.constant 8 : i32
    %c1_171 = arith.constant 1 : index
    %c0_172 = arith.constant 0 : index
    %c0_173 = arith.constant 0 : index
    %582 = vector.load %arg9[%c1_171, %c0_172, %c0_173] : memref<2x8x32xf32, #tpu.memory_space<vmem>>, vector<1x8x32xf32>
    %583 = vector.shape_cast %582 : vector<1x8x32xf32> to vector<8x32xf32>
    %584 = vector.shape_cast %577 : vector<8x32xf32> to vector<1x8x32xf32>
    tpu.vector_store %arg9[%c1_171, %c0_172, %c0_173], %584 {strides = array<i32>} : memref<2x8x32xf32, #tpu.memory_space<vmem>>, vector<1x8x32xf32>,
    %c1_174 = arith.constant 1 : index
    %c0_175 = arith.constant 0 : index
    %c0_176 = arith.constant 0 : index
    %585 = vector.load %arg10[%c1_174, %c0_175, %c0_176] : memref<2x8x32xf32, #tpu.memory_space<vmem>>, vector<1x8x32xf32>
    %586 = vector.shape_cast %585 : vector<1x8x32xf32> to vector<8x32xf32>
    %587 = vector.shape_cast %575 : vector<8x32xf32> to vector<1x8x32xf32>
    tpu.vector_store %arg10[%c1_174, %c0_175, %c0_176], %587 {strides = array<i32>} : memref<2x8x32xf32, #tpu.memory_space<vmem>>, vector<1x8x32xf32>,
    %c0_177 = arith.constant 0 : index
    %c0_178 = arith.constant 0 : index
    %588 = vector.load %arg11[%c0_177, %c0_178] : memref<64x32xf32, #tpu.memory_space<vmem>>, vector<64x32xf32>
    %c0_179 = arith.constant 0 : index
    %c0_180 = arith.constant 0 : index
    %589 = vector.load %arg6[%c0_179, %c0_180] : memref<32x128xf32, #tpu.memory_space<vmem>>, vector<32x128xf32>
    %cst_181 = arith.constant dense<0.000000e+00> : vector<64x128xf32>
    %590 = tpu.matmul %588, %589, %cst_181 {dimension_numbers = #tpu.dot_dimension_numbers<[1], [0], [0], [1], [0, 0, 1, 1], [], []>} : vector<64x32xf32>, vector<32x128xf32>, vector<64x128xf32> -> vector<64x128xf32>
    %c0_182 = arith.constant 0 : index
    %c0_183 = arith.constant 0 : index
    %591 = vector.load %arg7[%c0_182, %c0_183] : memref<1x128xf32, #tpu.memory_space<vmem>>, vector<1x128xf32>
    %592 = vector.broadcast %591 : vector<1x128xf32> to vector<64x128xf32>
    %593 = arith.addf %590, %592 : vector<64x128xf32>
    %594 = vector.extract_strided_slice %593 {offsets = [0, 0], sizes = [8, 128], strides = [1, 1]} : vector<64x128xf32> to vector<8x128xf32>
    %c0_184 = arith.constant 0 : index
    %c0_185 = arith.constant 0 : index
    %c0_186 = arith.constant 0 : index
    %595 = vector.load %arg8[%c0_184, %c0_185, %c0_186] : memref<8x8x128xf32, #tpu.memory_space<vmem>>, vector<8x1x128xf32>
    %596 = vector.shape_cast %595 : vector<8x1x128xf32> to vector<8x128xf32>
    %597 = vector.shape_cast %594 : vector<8x128xf32> to vector<8x1x128xf32>
    tpu.vector_store %arg8[%c0_184, %c0_185, %c0_186], %597 {strides = array<i32>} : memref<8x8x128xf32, #tpu.memory_space<vmem>>, vector<8x1x128xf32>,
    %598 = vector.extract_strided_slice %593 {offsets = [8, 0], sizes = [8, 128], strides = [1, 1]} : vector<64x128xf32> to vector<8x128xf32>
    %c0_187 = arith.constant 0 : index
    %c1_188 = arith.constant 1 : index
    %c0_189 = arith.constant 0 : index
    %599 = vector.load %arg8[%c0_187, %c1_188, %c0_189] : memref<8x8x128xf32, #tpu.memory_space<vmem>>, vector<8x1x128xf32>
    %600 = vector.shape_cast %599 : vector<8x1x128xf32> to vector<8x128xf32>
    %601 = vector.shape_cast %598 : vector<8x128xf32> to vector<8x1x128xf32>
    tpu.vector_store %arg8[%c0_187, %c1_188, %c0_189], %601 {strides = array<i32>} : memref<8x8x128xf32, #tpu.memory_space<vmem>>, vector<8x1x128xf32>,
    %602 = vector.extract_strided_slice %593 {offsets = [16, 0], sizes = [8, 128], strides = [1, 1]} : vector<64x128xf32> to vector<8x128xf32>
    %c0_190 = arith.constant 0 : index
    %c2 = arith.constant 2 : index
    %c0_191 = arith.constant 0 : index
    %603 = vector.load %arg8[%c0_190, %c2, %c0_191] : memref<8x8x128xf32, #tpu.memory_space<vmem>>, vector<8x1x128xf32>
    %604 = vector.shape_cast %603 : vector<8x1x128xf32> to vector<8x128xf32>
    %605 = vector.shape_cast %602 : vector<8x128xf32> to vector<8x1x128xf32>
    tpu.vector_store %arg8[%c0_190, %c2, %c0_191], %605 {strides = array<i32>} : memref<8x8x128xf32, #tpu.memory_space<vmem>>, vector<8x1x128xf32>,
    %606 = vector.extract_strided_slice %593 {offsets = [24, 0], sizes = [8, 128], strides = [1, 1]} : vector<64x128xf32> to vector<8x128xf32>
    %c0_192 = arith.constant 0 : index
    %c3 = arith.constant 3 : index
    %c0_193 = arith.constant 0 : index
    %607 = vector.load %arg8[%c0_192, %c3, %c0_193] : memref<8x8x128xf32, #tpu.memory_space<vmem>>, vector<8x1x128xf32>
    %608 = vector.shape_cast %607 : vector<8x1x128xf32> to vector<8x128xf32>
    %609 = vector.shape_cast %606 : vector<8x128xf32> to vector<8x1x128xf32>
    tpu.vector_store %arg8[%c0_192, %c3, %c0_193], %609 {strides = array<i32>} : memref<8x8x128xf32, #tpu.memory_space<vmem>>, vector<8x1x128xf32>,
    %610 = vector.extract_strided_slice %593 {offsets = [32, 0], sizes = [8, 128], strides = [1, 1]} : vector<64x128xf32> to vector<8x128xf32>
    %c0_194 = arith.constant 0 : index
    %c4 = arith.constant 4 : index
    %c0_195 = arith.constant 0 : index
    %611 = vector.load %arg8[%c0_194, %c4, %c0_195] : memref<8x8x128xf32, #tpu.memory_space<vmem>>, vector<8x1x128xf32>
    %612 = vector.shape_cast %611 : vector<8x1x128xf32> to vector<8x128xf32>
    %613 = vector.shape_cast %610 : vector<8x128xf32> to vector<8x1x128xf32>
    tpu.vector_store %arg8[%c0_194, %c4, %c0_195], %613 {strides = array<i32>} : memref<8x8x128xf32, #tpu.memory_space<vmem>>, vector<8x1x128xf32>,
    %614 = vector.extract_strided_slice %593 {offsets = [40, 0], sizes = [8, 128], strides = [1, 1]} : vector<64x128xf32> to vector<8x128xf32>
    %c0_196 = arith.constant 0 : index
    %c5 = arith.constant 5 : index
    %c0_197 = arith.constant 0 : index
    %615 = vector.load %arg8[%c0_196, %c5, %c0_197] : memref<8x8x128xf32, #tpu.memory_space<vmem>>, vector<8x1x128xf32>
    %616 = vector.shape_cast %615 : vector<8x1x128xf32> to vector<8x128xf32>
    %617 = vector.shape_cast %614 : vector<8x128xf32> to vector<8x1x128xf32>
    tpu.vector_store %arg8[%c0_196, %c5, %c0_197], %617 {strides = array<i32>} : memref<8x8x128xf32, #tpu.memory_space<vmem>>, vector<8x1x128xf32>,
    %618 = vector.extract_strided_slice %593 {offsets = [48, 0], sizes = [8, 128], strides = [1, 1]} : vector<64x128xf32> to vector<8x128xf32>
    %c0_198 = arith.constant 0 : index
    %c6 = arith.constant 6 : index
    %c0_199 = arith.constant 0 : index
    %619 = vector.load %arg8[%c0_198, %c6, %c0_199] : memref<8x8x128xf32, #tpu.memory_space<vmem>>, vector<8x1x128xf32>
    %620 = vector.shape_cast %619 : vector<8x1x128xf32> to vector<8x128xf32>
    %621 = vector.shape_cast %618 : vector<8x128xf32> to vector<8x1x128xf32>
    tpu.vector_store %arg8[%c0_198, %c6, %c0_199], %621 {strides = array<i32>} : memref<8x8x128xf32, #tpu.memory_space<vmem>>, vector<8x1x128xf32>,
    %622 = vector.extract_strided_slice %593 {offsets = [56, 0], sizes = [8, 128], strides = [1, 1]} : vector<64x128xf32> to vector<8x128xf32>
    %c0_200 = arith.constant 0 : index
    %c7 = arith.constant 7 : index
    %c0_201 = arith.constant 0 : index
    %623 = vector.load %arg8[%c0_200, %c7, %c0_201] : memref<8x8x128xf32, #tpu.memory_space<vmem>>, vector<8x1x128xf32>
    %624 = vector.shape_cast %623 : vector<8x1x128xf32> to vector<8x128xf32>
    %625 = vector.shape_cast %622 : vector<8x128xf32> to vector<8x1x128xf32>
    tpu.vector_store %arg8[%c0_200, %c7, %c0_201], %625 {strides = array<i32>} : memref<8x8x128xf32, #tpu.memory_space<vmem>>, vector<8x1x128xf32>,
    return
  }
  func.func @transform_0(%arg0: i32, %arg1: i32) -> (i32, i32, i32) {
    %c0_i32 = arith.constant 0 : i32
    %c0_i32_0 = arith.constant 0 : i32
    return %arg1, %arg0, %c0_i32 : i32, i32, i32
  }
  func.func @transform_1(%arg0: i32, %arg1: i32) -> (i32, i32, i32) {
    %c0_i32 = arith.constant 0 : i32
    %c0_i32_0 = arith.constant 0 : i32
    %c0_i32_1 = arith.constant 0 : i32
    %c0_i32_2 = arith.constant 0 : i32
    return %c0_i32, %c0_i32_0, %c0_i32_1 : i32, i32, i32
  }
  func.func @transform_2(%arg0: i32, %arg1: i32) -> (i32, i32, i32) {
    %c0_i32 = arith.constant 0 : i32
    %c0_i32_0 = arith.constant 0 : i32
    %c0_i32_1 = arith.constant 0 : i32
    %c0_i32_2 = arith.constant 0 : i32
    return %c0_i32, %c0_i32_0, %c0_i32_1 : i32, i32, i32
  }
  func.func @transform_3(%arg0: i32, %arg1: i32) -> (i32, i32, i32) {
    %c0_i32 = arith.constant 0 : i32
    %c0_i32_0 = arith.constant 0 : i32
    %c0_i32_1 = arith.constant 0 : i32
    %c0_i32_2 = arith.constant 0 : i32
    return %c0_i32, %c0_i32_0, %c0_i32_1 : i32, i32, i32
  }
  func.func @transform_4(%arg0: i32, %arg1: i32) -> (i32, i32) {
    %c0_i32 = arith.constant 0 : i32
    %c0_i32_0 = arith.constant 0 : i32
    %c0_i32_1 = arith.constant 0 : i32
    return %c0_i32, %c0_i32_0 : i32, i32
  }
  func.func @transform_5(%arg0: i32, %arg1: i32) -> (i32, i32) {
    %c0_i32 = arith.constant 0 : i32
    %c0_i32_0 = arith.constant 0 : i32
    %c0_i32_1 = arith.constant 0 : i32
    return %c0_i32, %c0_i32_0 : i32, i32
  }
  func.func @transform_6(%arg0: i32, %arg1: i32) -> (i32, i32, i32) {
    %c0_i32 = arith.constant 0 : i32
    %c0_i32_0 = arith.constant 0 : i32
    return %arg0, %arg1, %c0_i32 : i32, i32, i32
  }
}

</mosaic_0001>

<llo_original>
// kernel: tpu_custom_call.1
$region0: #{tpu_custom_call.1}
  #allocation0 [shape = 'u32[]', space=smem, size = 0x4, offset = 0x4, fixed_abs, tag = 'smem constant byte address 0x4 - core index']
  #allocation1 [shape = 'u32[144,128]{1,0:T(1,128)}', space=vmem, size = 0x12000, scoped, tag = 'internal scratch']
  #allocation2 [shape = 'f32[2,8,32]{2,1,0:T(8,128)}', space=vmem, size = 0x2000, scoped, tag = 'scratch operand']
  #allocation3 [shape = 'f32[2,8,32]{2,1,0:T(8,128)}', space=vmem, size = 0x2000, scoped, tag = 'scratch operand']
  #allocation4 [shape = 'f32[64,32]{1,0:T(8,128)}', space=vmem, size = 0x8000, scoped, tag = 'scratch operand']
  #allocation5 [shape = 'f32[64,128]{1,0:T(8,128)}', space=vmem, size = 0x8000, scoped, tag = 'scratch operand']
  %s0 = inlined_call_operand.hbm [shape: f32[8,8,128], index: 0, kind: input, shape index: {}]
  %s1 = inlined_call_operand.hbm [shape: f32[2,32,128], index: 1, kind: input, shape index: {}]
  %s2 = inlined_call_operand.hbm [shape: f32[1,32,128], index: 2, kind: input, shape index: {}]
  %s3 = inlined_call_operand.vmem [shape: f32[1,1,128], index: 3, kind: input, shape index: {}]
  %s4 = inlined_call_operand.hbm [shape: f32[32,128], index: 4, kind: input, shape index: {}]
  %s5 = inlined_call_operand.vmem [shape: f32[1,128], index: 5, kind: input, shape index: {}]
  %s6 = inlined_call_operand.hbm [shape: f32[8,8,128], index: 6, kind: output, shape index: {}]
  %s7 = sld [smem:[#allocation0]]
  $region54: #{tpu_custom_call.1} parent=0
    _
  %s9 = ssub.s32 1, %s7
  %s10 = scalar_select 0, %s9, %s7
  $region1: #{tpu_custom_call.1} parent=0
    #allocation6 [shape = 'u8[32768]{0}', space=vmem, size = 0x8000, scoped, tag = 'input window, operand 0, single buffered']
    #allocation7 [shape = 's32[1]{0}', space=sflag, size = 0x4, scoped, tag = 'scoped memory for tpu_custom_call.1']
    #allocation8 [shape = 's32[1]{0}', space=sflag, size = 0x4, scoped, tag = 'scoped memory for tpu_custom_call.1']
    #allocation9 [shape = 'u8[32768]{0}', space=vmem, size = 0x8000, scoped, tag = 'input window, operand 1, single buffered']
    #allocation10 [shape = 's32[1]{0}', space=sflag, size = 0x4, scoped, tag = 'scoped memory for tpu_custom_call.1']
    #allocation11 [shape = 'u8[16384]{0}', space=vmem, size = 0x4000, scoped, tag = 'input window, operand 2, single buffered']
    #allocation12 [shape = 'u8[16384]{0}', space=vmem, size = 0x4000, scoped, tag = 'input window, operand 4, single buffered']
    #allocation13 [shape = 's32[1]{0}', space=sflag, size = 0x4, scoped, tag = 'scoped memory for tpu_custom_call.1']
    #allocation14 [shape = 'u8[32768]{0}', space=vmem, size = 0x8000, scoped, tag = 'output window, operand 0, single buffered']
    %11 = vsyncpa [#allocation7], 0
    %12 = vsyncpa [#allocation10], 0
    %13 = vsyncpa [#allocation13], 0
    %14 = vsyncpa [#allocation8], 0
    // Predicated region
    $region2: #{tpu_custom_call.1} parent=1 // pred_check
      _
    $region3: #{tpu_custom_call.1} parent=1 // pred_check_branch
      %16 = sbr.rel (0) target = $region5
    $region4: #{tpu_custom_call.1} parent=1 // pred_region
      %s18 = ssub.s32 1024, 1024
      %19 = vsyncadd [#allocation7], %s18
      %s20 = sshll.u32 [#allocation6], 4
      %s21 = int_to_ptr.vmem [resolvable:$true] %s20
      %26 = dma.hbm_to_vmem [thread:$0]  %s0, 1024, %s21, [#allocation7], 128, 128, 8
    $region5: #{tpu_custom_call.1} parent=1 // pred_fallthru
      _
    // Predicated region
    $region6: #{tpu_custom_call.1} parent=1 // pred_check
      _
    $region7: #{tpu_custom_call.1} parent=1 // pred_check_branch
      %28 = sbr.rel (0) target = $region9
    $region8: #{tpu_custom_call.1} parent=1 // pred_region
      %s30 = ssub.s32 1024, 1024
      %31 = vsyncadd [#allocation10], %s30
      %s32 = sshll.u32 [#allocation9], 4
      %s33 = int_to_ptr.vmem [resolvable:$true] %s32
      %38 = dma.hbm_to_vmem [thread:$0]  %s1, 1024, %s33, [#allocation10], 128, 128, 8
    $region9: #{tpu_custom_call.1} parent=1 // pred_fallthru
      _
    // Predicated region
    $region10: #{tpu_custom_call.1} parent=1 // pred_check
      _
    $region11: #{tpu_custom_call.1} parent=1 // pred_check_branch
      %40 = sbr.rel (0) target = $region13
    $region12: #{tpu_custom_call.1} parent=1 // pred_region
      %s42 = ssub.s32 512, 512
      %43 = vsyncadd [#allocation10], %s42
      %s44 = sshll.u32 [#allocation11], 4
      %s45 = int_to_ptr.vmem [resolvable:$true] %s44
      %50 = dma.hbm_to_vmem [thread:$0]  %s2, 512, %s45, [#allocation10], 128, 128, 8
    $region13: #{tpu_custom_call.1} parent=1 // pred_fallthru
      _
    // Predicated region
    $region14: #{tpu_custom_call.1} parent=1 // pred_check
      _
    $region15: #{tpu_custom_call.1} parent=1 // pred_check_branch
      %52 = sbr.rel (0) target = $region17
    $region16: #{tpu_custom_call.1} parent=1 // pred_region
      _
    $region17: #{tpu_custom_call.1} parent=1 // pred_fallthru
      _
    // Predicated region
    $region18: #{tpu_custom_call.1} parent=1 // pred_check
      _
    $region19: #{tpu_custom_call.1} parent=1 // pred_check_branch
      %54 = sbr.rel (0) target = $region21
    $region20: #{tpu_custom_call.1} parent=1 // pred_region
      %s56 = ssub.s32 512, 512
      %57 = vsyncadd [#allocation13], %s56
      %s58 = sshll.u32 [#allocation12], 4
      %s59 = int_to_ptr.vmem [resolvable:$true] %s58
      %64 = dma.hbm_to_vmem [thread:$0]  %s4, 512, %s59, [#allocation13], 128, 128, 8
    $region21: #{tpu_custom_call.1} parent=1 // pred_fallthru
      _
    // Predicated region
    $region22: #{tpu_custom_call.1} parent=1 // pred_check
      _
    $region23: #{tpu_custom_call.1} parent=1 // pred_check_branch
      %66 = sbr.rel (0) target = $region25
    $region24: #{tpu_custom_call.1} parent=1 // pred_region
      _
    $region25: #{tpu_custom_call.1} parent=1 // pred_fallthru
      _
    // Predicated region
    $region26: #{tpu_custom_call.1} parent=1 // pred_check
      _
    $region27: #{tpu_custom_call.1} parent=1 // pred_check_branch
      %68 = sbr.rel (0) target = $region29
    $region28: #{tpu_custom_call.1} parent=1 // pred_region
      %69 = dma.done [#allocation7], 1024
    $region29: #{tpu_custom_call.1} parent=1 // pred_fallthru
      _
    // Predicated region
    $region30: #{tpu_custom_call.1} parent=1 // pred_check
      _
    $region31: #{tpu_custom_call.1} parent=1 // pred_check_branch
      %71 = sbr.rel (0) target = $region33
    $region32: #{tpu_custom_call.1} parent=1 // pred_region
      %72 = dma.done [#allocation10], 1024
    $region33: #{tpu_custom_call.1} parent=1 // pred_fallthru
      _
    // Predicated region
    $region34: #{tpu_custom_call.1} parent=1 // pred_check
      _
    $region35: #{tpu_custom_call.1} parent=1 // pred_check_branch
      %74 = sbr.rel (0) target = $region37
    $region36: #{tpu_custom_call.1} parent=1 // pred_region
      %75 = dma.done [#allocation10], 512
    $region37: #{tpu_custom_call.1} parent=1 // pred_fallthru
      _
    // Predicated region
    $region38: #{tpu_custom_call.1} parent=1 // pred_check
      _
    $region39: #{tpu_custom_call.1} parent=1 // pred_check_branch
      %77 = sbr.rel (0) target = $region41
    $region40: #{tpu_custom_call.1} parent=1 // pred_region
      %78 = dma.done [#allocation13], 512
    $region41: #{tpu_custom_call.1} parent=1 // pred_fallthru
      _
    %p79 = scmp.eq.s32.totalorder 0, 0
    // Predicated region
    $region42: #{tpu_custom_call.1} parent=1 // pred_check
      %p80 = pneg %p79
    $region43: #{tpu_custom_call.1} parent=1 // pred_check_branch
      %82 = sbr.rel (%p80) target = $region45
    $region44: #{tpu_custom_call.1} parent=1 // pred_region
      %vm83 = vcmask 261120
      %84 = vst.msk [vmem:[#allocation2] sm:$0xff] %vm83, 0.0
      %85 = vst.msk [vmem:[#allocation2 + $0x8] sm:$0xff] %vm83, 0.0
      %86 = vst.msk [vmem:[#allocation3] sm:$0xff] %vm83, 0.0
      %87 = vst.msk [vmem:[#allocation3 + $0x8] sm:$0xff] %vm83, 0.0
    $region45: #{tpu_custom_call.1} parent=1 // pred_fallthru
      _
    %v88 = vld [vmem:[#allocation9] sm:$0xff]
    %v89 = vld [vmem:[#allocation9 + $0x8] sm:$0xff]
    %v90 = vld [vmem:[#allocation9 + $0x10] sm:$0xff]
    %v91 = vld [vmem:[#allocation9 + $0x18] sm:$0xff]
    %v92 = vld [vmem:[#allocation2] sm:$0xff]
    %v93 = vld [vmem:[#allocation3] sm:$0xff]
    %v94 = vld [vmem:[#allocation6] sm:$0xff]
    %vm95 = vcmask 261120
    %v97 = vsel %vm95, %v92, 0
    %99 = vmatprep.subr.mxu0 0.0
    %100 = vmatpush1.msra.mxu0 %v88
    %101 = vmatprep.subr.mxu0 0.0
    %102 = vmatpush1.msra.mxu0 %v89
    %103 = vmatprep.subr.mxu0 0.0
    %104 = vmatpush1.msra.mxu0 %v90
    %105 = vmatprep.subr.mxu0 0.0
    %106 = vmatpush1.msra.mxu0 %v91
    %107 = vmatprep.subr.mxu0 0.0
    %108 = vmatpush1.msra.mxu0 0.0
    %109 = vmatprep.subr.mxu0 0.0
    %110 = vmatpush1.msra.mxu0 0.0
    %111 = vmatprep.subr.mxu0 0.0
    %112 = vmatpush1.msra.mxu0 0.0
    %113 = vmatprep.subr.mxu0 0.0
    %114 = vmatpush1.msra.mxu0 0.0
    %115 = vmatprep.subr.mxu0 0.0
    %116 = vmatpush1.msra.mxu0 0.0
    %117 = vmatprep.subr.mxu0 0.0
    %118 = vmatpush1.msra.mxu0 0.0
    %119 = vmatprep.subr.mxu0 0.0
    %120 = vmatpush1.msra.mxu0 0.0
    %121 = vmatprep.subr.mxu0 0.0
    %122 = vmatpush1.msra.mxu0 0.0
    %123 = vmatprep.subr.mxu0 0.0
    %124 = vmatpush1.msra.mxu0 0.0
    %125 = vmatprep.subr.mxu0 0.0
    %126 = vmatpush1.msra.mxu0 0.0
    %127 = vmatprep.subr.mxu0 0.0
    %128 = vmatpush1.msra.mxu0 0.0
    %129 = vmatprep.subr.mxu0 0.0
    %130 = vmatpush1.msra.mxu0 0.0
    %131 = vmatprep.subr.mxu0 0.0
    %132 = vmatpush1.msra.mxu0 0.0
    %133 = vmatprep.subr.mxu0 0.0
    %134 = vmatpush1.msra.mxu0 0.0
    %135 = vmatprep.subr.mxu0 0.0
    %136 = vmatpush1.msra.mxu0 0.0
    %137 = vmatprep.subr.mxu0 0.0
    %138 = vmatpush1.msra.mxu0 0.0
    %139 = vmatprep.subr.mxu0 0.0
    %140 = vmatpush1.msra.mxu0 0.0
    %141 = vmatprep.subr.mxu0 0.0
    %142 = vmatpush1.msra.mxu0 0.0
    %143 = vmatprep.subr.mxu0 0.0
    %144 = vmatpush1.msra.mxu0 0.0
    %145 = vmatprep.subr.mxu0 0.0
    %146 = vmatpush1.msra.mxu0 0.0
    %147 = vmatprep.subr.mxu0 0.0
    %148 = vmatpush1.msra.mxu0 0.0
    %149 = vmatprep.subr.mxu0 0.0
    %150 = vmatpush1.msra.mxu0 0.0
    %151 = vmatprep.subr.mxu0 0.0
    %152 = vmatpush1.msra.mxu0 0.0
    %153 = vmatprep.subr.mxu0 0.0
    %154 = vmatpush1.msra.mxu0 0.0
    %155 = vmatprep.subr.mxu0 0.0
    %156 = vmatpush1.msra.mxu0 0.0
    %157 = vmatprep.subr.mxu0 0.0
    %158 = vmatpush1.msra.mxu0 0.0
    %159 = vmatprep.subr.mxu0 0.0
    %160 = vmatpush1.msra.mxu0 0.0
    %161 = vmatprep.subr.mxu0 0.0
    %162 = vmatpush1.msra.mxu0 0.0
    %163 = vmatprep.mubr.f32.mxu0 0.0
    %164 = vmatmul.mubr.f32.gmra.mrb[0].mxu0 %v97
    %v165 = vpop.f32.mrb[0].mxu0
    %v166 = vadd.f32 0.0, %v165
    %v167 = vpop.f32.mrb[0].mxu0
    %168 = vdwg.mxu0
    %v169 = vadd.f32 %v94, %v166
    %v170 = vxor.u32 %v169, 2147483648
    %v171 = vmul.f32 %v170, 1.442695
    %v172 = vpow.pop %v171
    %v173 = vadd.f32 %v172, 1.0
    %v174 = vrcp.pop %v173
    %v175 = vmul.f32 1.0, %v174
    %v176 = vtanh.pop %v169
    %178 = vrot.lane.b32.xlu0 %v93, 32
    %v179 = vpop.permute.xlu0 %178
    %v181 = vmul.f32 %v175, %v179
    %183 = vrot.lane.b32.xlu0 %v176, 64
    %v184 = vpop.permute.xlu0 %183
    %v186 = vmul.f32 %v175, %v184
    %188 = vrot.lane.b32.xlu0 %v186, 32
    %v189 = vpop.permute.xlu0 %188
    %v191 = vadd.f32 %v181, %v189
    %v192 = vtanh.pop %v191
    %194 = vrot.lane.b32.xlu0 %v192, 64
    %v195 = vpop.permute.xlu0 %194
    %v197 = vmul.f32 %v175, %v195
    %199 = vrot.lane.b32.xlu0 %v197, 32
    %v200 = vpop.permute.xlu0 %199
    %202 = vst.msk [vmem:[#allocation4] sm:$0xff] %vm95, %v200
    %s203 = scalar_lea.vmem [#allocation6], 8
    %v204 = vld [vmem:[%s203] sm:$0xff]
    %v205 = vsel %vm95, %v200, 0
    %207 = vmatprep.subr.mxu0 0.0
    %208 = vmatpush1.msra.mxu0 %v88
    %209 = vmatprep.subr.mxu0 0.0
    %210 = vmatpush1.msra.mxu0 %v89
    %211 = vmatprep.subr.mxu0 0.0
    %212 = vmatpush1.msra.mxu0 %v90
    %213 = vmatprep.subr.mxu0 0.0
    %214 = vmatpush1.msra.mxu0 %v91
    %215 = vmatprep.subr.mxu0 0.0
    %216 = vmatpush1.msra.mxu0 0.0
    %217 = vmatprep.subr.mxu0 0.0
    %218 = vmatpush1.msra.mxu0 0.0
    %219 = vmatprep.subr.mxu0 0.0
    %220 = vmatpush1.msra.mxu0 0.0
    %221 = vmatprep.subr.mxu0 0.0
    %222 = vmatpush1.msra.mxu0 0.0
    %223 = vmatprep.subr.mxu0 0.0
    %224 = vmatpush1.msra.mxu0 0.0
    %225 = vmatprep.subr.mxu0 0.0
    %226 = vmatpush1.msra.mxu0 0.0
    %227 = vmatprep.subr.mxu0 0.0
    %228 = vmatpush1.msra.mxu0 0.0
    %229 = vmatprep.subr.mxu0 0.0
    %230 = vmatpush1.msra.mxu0 0.0
    %231 = vmatprep.subr.mxu0 0.0
    %232 = vmatpush1.msra.mxu0 0.0
    %233 = vmatprep.subr.mxu0 0.0
    %234 = vmatpush1.msra.mxu0 0.0
    %235 = vmatprep.subr.mxu0 0.0
    %236 = vmatpush1.msra.mxu0 0.0
    %237 = vmatprep.subr.mxu0 0.0
    %238 = vmatpush1.msra.mxu0 0.0
    %239 = vmatprep.subr.mxu0 0.0
    %240 = vmatpush1.msra.mxu0 0.0
    %241 = vmatprep.subr.mxu0 0.0
    %242 = vmatpush1.msra.mxu0 0.0
    %243 = vmatprep.subr.mxu0 0.0
    %244 = vmatpush1.msra.mxu0 0.0
    %245 = vmatprep.subr.mxu0 0.0
    %246 = vmatpush1.msra.mxu0 0.0
    %247 = vmatprep.subr.mxu0 0.0
    %248 = vmatpush1.msra.mxu0 0.0
    %249 = vmatprep.subr.mxu0 0.0
    %250 = vmatpush1.msra.mxu0 0.0
    %251 = vmatprep.subr.mxu0 0.0
    %252 = vmatpush1.msra.mxu0 0.0
    %253 = vmatprep.subr.mxu0 0.0
    %254 = vmatpush1.msra.mxu0 0.0
    %255 = vmatprep.subr.mxu0 0.0
    %256 = vmatpush1.msra.mxu0 0.0
    %257 = vmatprep.subr.mxu0 0.0
    %258 = vmatpush1.msra.mxu0 0.0
    %259 = vmatprep.subr.mxu0 0.0
    %260 = vmatpush1.msra.mxu0 0.0
    %261 = vmatprep.subr.mxu0 0.0
    %262 = vmatpush1.msra.mxu0 0.0
    %263 = vmatprep.subr.mxu0 0.0
    %264 = vmatpush1.msra.mxu0 0.0
    %265 = vmatprep.subr.mxu0 0.0
    %266 = vmatpush1.msra.mxu0 0.0
    %267 = vmatprep.subr.mxu0 0.0
    %268 = vmatpush1.msra.mxu0 0.0
    %269 = vmatprep.subr.mxu0 0.0
    %270 = vmatpush1.msra.mxu0 0.0
    %271 = vmatprep.mubr.f32.mxu0 0.0
    %272 = vmatmul.mubr.f32.gmra.mrb[0].mxu0 %v205
    %v273 = vpop.f32.mrb[0].mxu0
    %v274 = vadd.f32 0.0, %v273
    %v275 = vpop.f32.mrb[0].mxu0
    %276 = vdwg.mxu0
    %v277 = vadd.f32 %v204, %v274
    %v278 = vxor.u32 %v277, 2147483648
    %v279 = vmul.f32 %v278, 1.442695
    %v280 = vpow.pop %v279
    %v281 = vadd.f32 %v280, 1.0
    %v282 = vrcp.pop %v281
    %v283 = vmul.f32 1.0, %v282
    %v284 = vtanh.pop %v277
    %v285 = vmul.f32 %v283, %v191
    %287 = vrot.lane.b32.xlu0 %v284, 64
    %v288 = vpop.permute.xlu0 %287
    %v290 = vmul.f32 %v283, %v288
    %292 = vrot.lane.b32.xlu0 %v290, 32
    %v293 = vpop.permute.xlu0 %292
    %v295 = vadd.f32 %v285, %v293
    %v296 = vtanh.pop %v295
    %298 = vrot.lane.b32.xlu0 %v296, 64
    %v299 = vpop.permute.xlu0 %298
    %v301 = vmul.f32 %v283, %v299
    %303 = vrot.lane.b32.xlu0 %v301, 32
    %v304 = vpop.permute.xlu0 %303
    %s306 = scalar_lea.vmem [#allocation4], 8
    %307 = vst.msk [vmem:[%s306] sm:$0xff] %vm95, %v304
    %s308 = scalar_lea.vmem [#allocation6], 16
    %v309 = vld [vmem:[%s308] sm:$0xff]
    %v310 = vsel %vm95, %v304, 0
    %312 = vmatprep.subr.mxu0 0.0
    %313 = vmatpush1.msra.mxu0 %v88
    %314 = vmatprep.subr.mxu0 0.0
    %315 = vmatpush1.msra.mxu0 %v89
    %316 = vmatprep.subr.mxu0 0.0
    %317 = vmatpush1.msra.mxu0 %v90
    %318 = vmatprep.subr.mxu0 0.0
    %319 = vmatpush1.msra.mxu0 %v91
    %320 = vmatprep.subr.mxu0 0.0
    %321 = vmatpush1.msra.mxu0 0.0
    %322 = vmatprep.subr.mxu0 0.0
    %323 = vmatpush1.msra.mxu0 0.0
    %324 = vmatprep.subr.mxu0 0.0
    %325 = vmatpush1.msra.mxu0 0.0
    %326 = vmatprep.subr.mxu0 0.0
    %327 = vmatpush1.msra.mxu0 0.0
    %328 = vmatprep.subr.mxu0 0.0
    %329 = vmatpush1.msra.mxu0 0.0
    %330 = vmatprep.subr.mxu0 0.0
    %331 = vmatpush1.msra.mxu0 0.0
    %332 = vmatprep.subr.mxu0 0.0
    %333 = vmatpush1.msra.mxu0 0.0
    %334 = vmatprep.subr.mxu0 0.0
    %335 = vmatpush1.msra.mxu0 0.0
    %336 = vmatprep.subr.mxu0 0.0
    %337 = vmatpush1.msra.mxu0 0.0
    %338 = vmatprep.subr.mxu0 0.0
    %339 = vmatpush1.msra.mxu0 0.0
    %340 = vmatprep.subr.mxu0 0.0
    %341 = vmatpush1.msra.mxu0 0.0
    %342 = vmatprep.subr.mxu0 0.0
    %343 = vmatpush1.msra.mxu0 0.0
    %344 = vmatprep.subr.mxu0 0.0
    %345 = vmatpush1.msra.mxu0 0.0
    %346 = vmatprep.subr.mxu0 0.0
    %347 = vmatpush1.msra.mxu0 0.0
    %348 = vmatprep.subr.mxu0 0.0
    %349 = vmatpush1.msra.mxu0 0.0
    %350 = vmatprep.subr.mxu0 0.0
    %351 = vmatpush1.msra.mxu0 0.0
    %352 = vmatprep.subr.mxu0 0.0
    %353 = vmatpush1.msra.mxu0 0.0
    %354 = vmatprep.subr.mxu0 0.0
    %355 = vmatpush1.msra.mxu0 0.0
    %356 = vmatprep.subr.mxu0 0.0
    %357 = vmatpush1.msra.mxu0 0.0
    %358 = vmatprep.subr.mxu0 0.0
    %359 = vmatpush1.msra.mxu0 0.0
    %360 = vmatprep.subr.mxu0 0.0
    %361 = vmatpush1.msra.mxu0 0.0
    %362 = vmatprep.subr.mxu0 0.0
    %363 = vmatpush1.msra.mxu0 0.0
    %364 = vmatprep.subr.mxu0 0.0
    %365 = vmatpush1.msra.mxu0 0.0
    %366 = vmatprep.subr.mxu0 0.0
    %367 = vmatpush1.msra.mxu0 0.0
    %368 = vmatprep.subr.mxu0 0.0
    %369 = vmatpush1.msra.mxu0 0.0
    %370 = vmatprep.subr.mxu0 0.0
    %371 = vmatpush1.msra.mxu0 0.0
    %372 = vmatprep.subr.mxu0 0.0
    %373 = vmatpush1.msra.mxu0 0.0
    %374 = vmatprep.subr.mxu0 0.0
    %375 = vmatpush1.msra.mxu0 0.0
    %376 = vmatprep.mubr.f32.mxu0 0.0
    %377 = vmatmul.mubr.f32.gmra.mrb[0].mxu0 %v310
    %v378 = vpop.f32.mrb[0].mxu0
    %v379 = vadd.f32 0.0, %v378
    %v380 = vpop.f32.mrb[0].mxu0
    %381 = vdwg.mxu0
    %v382 = vadd.f32 %v309, %v379
    %v383 = vxor.u32 %v382, 2147483648
    %v384 = vmul.f32 %v383, 1.442695
    %v385 = vpow.pop %v384
    %v386 = vadd.f32 %v385, 1.0
    %v387 = vrcp.pop %v386
    %v388 = vmul.f32 1.0, %v387
    %v389 = vtanh.pop %v382
    %v390 = vmul.f32 %v388, %v295
    %392 = vrot.lane.b32.xlu0 %v389, 64
    %v393 = vpop.permute.xlu0 %392
    %v395 = vmul.f32 %v388, %v393
    %397 = vrot.lane.b32.xlu0 %v395, 32
    %v398 = vpop.permute.xlu0 %397
    %v400 = vadd.f32 %v390, %v398
    %v401 = vtanh.pop %v400
    %403 = vrot.lane.b32.xlu0 %v401, 64
    %v404 = vpop.permute.xlu0 %403
    %v406 = vmul.f32 %v388, %v404
    %408 = vrot.lane.b32.xlu0 %v406, 32
    %v409 = vpop.permute.xlu0 %408
    %s411 = scalar_lea.vmem [#allocation4], 16
    %412 = vst.msk [vmem:[%s411] sm:$0xff] %vm95, %v409
    %s413 = scalar_lea.vmem [#allocation6], 24
    %v414 = vld [vmem:[%s413] sm:$0xff]
    %v415 = vsel %vm95, %v409, 0
    %417 = vmatprep.subr.mxu0 0.0
    %418 = vmatpush1.msra.mxu0 %v88
    %419 = vmatprep.subr.mxu0 0.0
    %420 = vmatpush1.msra.mxu0 %v89
    %421 = vmatprep.subr.mxu0 0.0
    %422 = vmatpush1.msra.mxu0 %v90
    %423 = vmatprep.subr.mxu0 0.0
    %424 = vmatpush1.msra.mxu0 %v91
    %425 = vmatprep.subr.mxu0 0.0
    %426 = vmatpush1.msra.mxu0 0.0
    %427 = vmatprep.subr.mxu0 0.0
    %428 = vmatpush1.msra.mxu0 0.0
    %429 = vmatprep.subr.mxu0 0.0
    %430 = vmatpush1.msra.mxu0 0.0
    %431 = vmatprep.subr.mxu0 0.0
    %432 = vmatpush1.msra.mxu0 0.0
    %433 = vmatprep.subr.mxu0 0.0
    %434 = vmatpush1.msra.mxu0 0.0
    %435 = vmatprep.subr.mxu0 0.0
    %436 = vmatpush1.msra.mxu0 0.0
    %437 = vmatprep.subr.mxu0 0.0
    %438 = vmatpush1.msra.mxu0 0.0
    %439 = vmatprep.subr.mxu0 0.0
    %440 = vmatpush1.msra.mxu0 0.0
    %441 = vmatprep.subr.mxu0 0.0
    %442 = vmatpush1.msra.mxu0 0.0
    %443 = vmatprep.subr.mxu0 0.0
    %444 = vmatpush1.msra.mxu0 0.0
    %445 = vmatprep.subr.mxu0 0.0
    %446 = vmatpush1.msra.mxu0 0.0
    %447 = vmatprep.subr.mxu0 0.0
    %448 = vmatpush1.msra.mxu0 0.0
    %449 = vmatprep.subr.mxu0 0.0
    %450 = vmatpush1.msra.mxu0 0.0
    %451 = vmatprep.subr.mxu0 0.0
    %452 = vmatpush1.msra.mxu0 0.0
    %453 = vmatprep.subr.mxu0 0.0
    %454 = vmatpush1.msra.mxu0 0.0
    %455 = vmatprep.subr.mxu0 0.0
    %456 = vmatpush1.msra.mxu0 0.0
    %457 = vmatprep.subr.mxu0 0.0
    %458 = vmatpush1.msra.mxu0 0.0
    %459 = vmatprep.subr.mxu0 0.0
    %460 = vmatpush1.msra.mxu0 0.0
    %461 = vmatprep.subr.mxu0 0.0
    %462 = vmatpush1.msra.mxu0 0.0
    %463 = vmatprep.subr.mxu0 0.0
    %464 = vmatpush1.msra.mxu0 0.0
    %465 = vmatprep.subr.mxu0 0.0
    %466 = vmatpush1.msra.mxu0 0.0
    %467 = vmatprep.subr.mxu0 0.0
    %468 = vmatpush1.msra.mxu0 0.0
    %469 = vmatprep.subr.mxu0 0.0
    %470 = vmatpush1.msra.mxu0 0.0
    %471 = vmatprep.subr.mxu0 0.0
    %472 = vmatpush1.msra.mxu0 0.0
    %473 = vmatprep.subr.mxu0 0.0
    %474 = vmatpush1.msra.mxu0 0.0
    %475 = vmatprep.subr.mxu0 0.0
    %476 = vmatpush1.msra.mxu0 0.0
    %477 = vmatprep.subr.mxu0 0.0
    %478 = vmatpush1.msra.mxu0 0.0
    %479 = vmatprep.subr.mxu0 0.0
    %480 = vmatpush1.msra.mxu0 0.0
    %481 = vmatprep.mubr.f32.mxu0 0.0
    %482 = vmatmul.mubr.f32.gmra.mrb[0].mxu0 %v415
    %v483 = vpop.f32.mrb[0].mxu0
    %v484 = vadd.f32 0.0, %v483
    %v485 = vpop.f32.mrb[0].mxu0
    %486 = vdwg.mxu0
    %v487 = vadd.f32 %v414, %v484
    %v488 = vxor.u32 %v487, 2147483648
    %v489 = vmul.f32 %v488, 1.442695
    %v490 = vpow.pop %v489
    %v491 = vadd.f32 %v490, 1.0
    %v492 = vrcp.pop %v491
    %v493 = vmul.f32 1.0, %v492
    %v494 = vtanh.pop %v487
    %v495 = vmul.f32 %v493, %v400
    %497 = vrot.lane.b32.xlu0 %v494, 64
    %v498 = vpop.permute.xlu0 %497
    %v500 = vmul.f32 %v493, %v498
    %502 = vrot.lane.b32.xlu0 %v500, 32
    %v503 = vpop.permute.xlu0 %502
    %v505 = vadd.f32 %v495, %v503
    %v506 = vtanh.pop %v505
    %508 = vrot.lane.b32.xlu0 %v506, 64
    %v509 = vpop.permute.xlu0 %508
    %v511 = vmul.f32 %v493, %v509
    %513 = vrot.lane.b32.xlu0 %v511, 32
    %v514 = vpop.permute.xlu0 %513
    %s516 = scalar_lea.vmem [#allocation4], 24
    %517 = vst.msk [vmem:[%s516] sm:$0xff] %vm95, %v514
    %s518 = scalar_lea.vmem [#allocation6], 32
    %v519 = vld [vmem:[%s518] sm:$0xff]
    %v520 = vsel %vm95, %v514, 0
    %522 = vmatprep.subr.mxu0 0.0
    %523 = vmatpush1.msra.mxu0 %v88
    %524 = vmatprep.subr.mxu0 0.0
    %525 = vmatpush1.msra.mxu0 %v89
    %526 = vmatprep.subr.mxu0 0.0
    %527 = vmatpush1.msra.mxu0 %v90
    %528 = vmatprep.subr.mxu0 0.0
    %529 = vmatpush1.msra.mxu0 %v91
    %530 = vmatprep.subr.mxu0 0.0
    %531 = vmatpush1.msra.mxu0 0.0
    %532 = vmatprep.subr.mxu0 0.0
    %533 = vmatpush1.msra.mxu0 0.0
    %534 = vmatprep.subr.mxu0 0.0
    %535 = vmatpush1.msra.mxu0 0.0
    %536 = vmatprep.subr.mxu0 0.0
    %537 = vmatpush1.msra.mxu0 0.0
    %538 = vmatprep.subr.mxu0 0.0
    %539 = vmatpush1.msra.mxu0 0.0
    %540 = vmatprep.subr.mxu0 0.0
    %541 = vmatpush1.msra.mxu0 0.0
    %542 = vmatprep.subr.mxu0 0.0
    %543 = vmatpush1.msra.mxu0 0.0
    %544 = vmatprep.subr.mxu0 0.0
    %545 = vmatpush1.msra.mxu0 0.0
    %546 = vmatprep.subr.mxu0 0.0
    %547 = vmatpush1.msra.mxu0 0.0
    %548 = vmatprep.subr.mxu0 0.0
    %549 = vmatpush1.msra.mxu0 0.0
    %550 = vmatprep.subr.mxu0 0.0
    %551 = vmatpush1.msra.mxu0 0.0
    %552 = vmatprep.subr.mxu0 0.0
    %553 = vmatpush1.msra.mxu0 0.0
    %554 = vmatprep.subr.mxu0 0.0
    %555 = vmatpush1.msra.mxu0 0.0
    %556 = vmatprep.subr.mxu0 0.0
    %557 = vmatpush1.msra.mxu0 0.0
    %558 = vmatprep.subr.mxu0 0.0
    %559 = vmatpush1.msra.mxu0 0.0
    %560 = vmatprep.subr.mxu0 0.0
    %561 = vmatpush1.msra.mxu0 0.0
    %562 = vmatprep.subr.mxu0 0.0
    %563 = vmatpush1.msra.mxu0 0.0
    %564 = vmatprep.subr.mxu0 0.0
    %565 = vmatpush1.msra.mxu0 0.0
    %566 = vmatprep.subr.mxu0 0.0
    %567 = vmatpush1.msra.mxu0 0.0
    %568 = vmatprep.subr.mxu0 0.0
    %569 = vmatpush1.msra.mxu0 0.0
    %570 = vmatprep.subr.mxu0 0.0
    %571 = vmatpush1.msra.mxu0 0.0
    %572 = vmatprep.subr.mxu0 0.0
    %573 = vmatpush1.msra.mxu0 0.0
    %574 = vmatprep.subr.mxu0 0.0
    %575 = vmatpush1.msra.mxu0 0.0
    %576 = vmatprep.subr.mxu0 0.0
    %577 = vmatpush1.msra.mxu0 0.0
    %578 = vmatprep.subr.mxu0 0.0
    %579 = vmatpush1.msra.mxu0 0.0
    %580 = vmatprep.subr.mxu0 0.0
    %581 = vmatpush1.msra.mxu0 0.0
    %582 = vmatprep.subr.mxu0 0.0
    %583 = vmatpush1.msra.mxu0 0.0
    %584 = vmatprep.subr.mxu0 0.0
    %585 = vmatpush1.msra.mxu0 0.0
    %586 = vmatprep.mubr.f32.mxu0 0.0
    %587 = vmatmul.mubr.f32.gmra.mrb[0].mxu0 %v520
    %v588 = vpop.f32.mrb[0].mxu0
    %v589 = vadd.f32 0.0, %v588
    %v590 = vpop.f32.mrb[0].mxu0
    %591 = vdwg.mxu0
    %v592 = vadd.f32 %v519, %v589
    %v593 = vxor.u32 %v592, 2147483648
    %v594 = vmul.f32 %v593, 1.442695
    %v595 = vpow.pop %v594
    %v596 = vadd.f32 %v595, 1.0
    %v597 = vrcp.pop %v596
    %v598 = vmul.f32 1.0, %v597
    %v599 = vtanh.pop %v592
    %v600 = vmul.f32 %v598, %v505
    %602 = vrot.lane.b32.xlu0 %v599, 64
    %v603 = vpop.permute.xlu0 %602
    %v605 = vmul.f32 %v598, %v603
    %607 = vrot.lane.b32.xlu0 %v605, 32
    %v608 = vpop.permute.xlu0 %607
    %v610 = vadd.f32 %v600, %v608
    %v611 = vtanh.pop %v610
    %613 = vrot.lane.b32.xlu0 %v611, 64
    %v614 = vpop.permute.xlu0 %613
    %v616 = vmul.f32 %v598, %v614
    %618 = vrot.lane.b32.xlu0 %v616, 32
    %v619 = vpop.permute.xlu0 %618
    %s621 = scalar_lea.vmem [#allocation4], 32
    %622 = vst.msk [vmem:[%s621] sm:$0xff] %vm95, %v619
    %s623 = scalar_lea.vmem [#allocation6], 40
    %v624 = vld [vmem:[%s623] sm:$0xff]
    %v625 = vsel %vm95, %v619, 0
    %627 = vmatprep.subr.mxu0 0.0
    %628 = vmatpush1.msra.mxu0 %v88
    %629 = vmatprep.subr.mxu0 0.0
    %630 = vmatpush1.msra.mxu0 %v89
    %631 = vmatprep.subr.mxu0 0.0
    %632 = vmatpush1.msra.mxu0 %v90
    %633 = vmatprep.subr.mxu0 0.0
    %634 = vmatpush1.msra.mxu0 %v91
    %635 = vmatprep.subr.mxu0 0.0
    %636 = vmatpush1.msra.mxu0 0.0
    %637 = vmatprep.subr.mxu0 0.0
    %638 = vmatpush1.msra.mxu0 0.0
    %639 = vmatprep.subr.mxu0 0.0
    %640 = vmatpush1.msra.mxu0 0.0
    %641 = vmatprep.subr.mxu0 0.0
    %642 = vmatpush1.msra.mxu0 0.0
    %643 = vmatprep.subr.mxu0 0.0
    %644 = vmatpush1.msra.mxu0 0.0
    %645 = vmatprep.subr.mxu0 0.0
    %646 = vmatpush1.msra.mxu0 0.0
    %647 = vmatprep.subr.mxu0 0.0
    %648 = vmatpush1.msra.mxu0 0.0
    %649 = vmatprep.subr.mxu0 0.0
    %650 = vmatpush1.msra.mxu0 0.0
    %651 = vmatprep.subr.mxu0 0.0
    %652 = vmatpush1.msra.mxu0 0.0
    %653 = vmatprep.subr.mxu0 0.0
    %654 = vmatpush1.msra.mxu0 0.0
    %655 = vmatprep.subr.mxu0 0.0
    %656 = vmatpush1.msra.mxu0 0.0
    %657 = vmatprep.subr.mxu0 0.0
    %658 = vmatpush1.msra.mxu0 0.0
    %659 = vmatprep.subr.mxu0 0.0
    %660 = vmatpush1.msra.mxu0 0.0
    %661 = vmatprep.subr.mxu0 0.0
    %662 = vmatpush1.msra.mxu0 0.0
    %663 = vmatprep.subr.mxu0 0.0
    %664 = vmatpush1.msra.mxu0 0.0
    %665 = vmatprep.subr.mxu0 0.0
    %666 = vmatpush1.msra.mxu0 0.0
    %667 = vmatprep.subr.mxu0 0.0
    %668 = vmatpush1.msra.mxu0 0.0
    %669 = vmatprep.subr.mxu0 0.0
    %670 = vmatpush1.msra.mxu0 0.0
    %671 = vmatprep.subr.mxu0 0.0
    %672 = vmatpush1.msra.mxu0 0.0
    %673 = vmatprep.subr.mxu0 0.0
    %674 = vmatpush1.msra.mxu0 0.0
    %675 = vmatprep.subr.mxu0 0.0
    %676 = vmatpush1.msra.mxu0 0.0
    %677 = vmatprep.subr.mxu0 0.0
    %678 = vmatpush1.msra.mxu0 0.0
    %679 = vmatprep.subr.mxu0 0.0
    %680 = vmatpush1.msra.mxu0 0.0
    %681 = vmatprep.subr.mxu0 0.0
    %682 = vmatpush1.msra.mxu0 0.0
    %683 = vmatprep.subr.mxu0 0.0
    %684 = vmatpush1.msra.mxu0 0.0
    %685 = vmatprep.subr.mxu0 0.0
    %686 = vmatpush1.msra.mxu0 0.0
    %687 = vmatprep.subr.mxu0 0.0
    %688 = vmatpush1.msra.mxu0 0.0
    %689 = vmatprep.subr.mxu0 0.0
    %690 = vmatpush1.msra.mxu0 0.0
    %691 = vmatprep.mubr.f32.mxu0 0.0
    %692 = vmatmul.mubr.f32.gmra.mrb[0].mxu0 %v625
    %v693 = vpop.f32.mrb[0].mxu0
    %v694 = vadd.f32 0.0, %v693
    %v695 = vpop.f32.mrb[0].mxu0
    %696 = vdwg.mxu0
    %v697 = vadd.f32 %v624, %v694
    %v698 = vxor.u32 %v697, 2147483648
    %v699 = vmul.f32 %v698, 1.442695
    %v700 = vpow.pop %v699
    %v701 = vadd.f32 %v700, 1.0
    %v702 = vrcp.pop %v701
    %v703 = vmul.f32 1.0, %v702
    %v704 = vtanh.pop %v697
    %v705 = vmul.f32 %v703, %v610
    %707 = vrot.lane.b32.xlu0 %v704, 64
    %v708 = vpop.permute.xlu0 %707
    %v710 = vmul.f32 %v703, %v708
    %712 = vrot.lane.b32.xlu0 %v710, 32
    %v713 = vpop.permute.xlu0 %712
    %v715 = vadd.f32 %v705, %v713
    %v716 = vtanh.pop %v715
    %718 = vrot.lane.b32.xlu0 %v716, 64
    %v719 = vpop.permute.xlu0 %718
    %v721 = vmul.f32 %v703, %v719
    %723 = vrot.lane.b32.xlu0 %v721, 32
    %v724 = vpop.permute.xlu0 %723
    %s726 = scalar_lea.vmem [#allocation4], 40
    %727 = vst.msk [vmem:[%s726] sm:$0xff] %vm95, %v724
    %s728 = scalar_lea.vmem [#allocation6], 48
    %v729 = vld [vmem:[%s728] sm:$0xff]
    %v730 = vsel %vm95, %v724, 0
    %732 = vmatprep.subr.mxu0 0.0
    %733 = vmatpush1.msra.mxu0 %v88
    %734 = vmatprep.subr.mxu0 0.0
    %735 = vmatpush1.msra.mxu0 %v89
    %736 = vmatprep.subr.mxu0 0.0
    %737 = vmatpush1.msra.mxu0 %v90
    %738 = vmatprep.subr.mxu0 0.0
    %739 = vmatpush1.msra.mxu0 %v91
    %740 = vmatprep.subr.mxu0 0.0
    %741 = vmatpush1.msra.mxu0 0.0
    %742 = vmatprep.subr.mxu0 0.0
    %743 = vmatpush1.msra.mxu0 0.0
    %744 = vmatprep.subr.mxu0 0.0
    %745 = vmatpush1.msra.mxu0 0.0
    %746 = vmatprep.subr.mxu0 0.0
    %747 = vmatpush1.msra.mxu0 0.0
    %748 = vmatprep.subr.mxu0 0.0
    %749 = vmatpush1.msra.mxu0 0.0
    %750 = vmatprep.subr.mxu0 0.0
    %751 = vmatpush1.msra.mxu0 0.0
    %752 = vmatprep.subr.mxu0 0.0
    %753 = vmatpush1.msra.mxu0 0.0
    %754 = vmatprep.subr.mxu0 0.0
    %755 = vmatpush1.msra.mxu0 0.0
    %756 = vmatprep.subr.mxu0 0.0
    %757 = vmatpush1.msra.mxu0 0.0
    %758 = vmatprep.subr.mxu0 0.0
    %759 = vmatpush1.msra.mxu0 0.0
    %760 = vmatprep.subr.mxu0 0.0
    %761 = vmatpush1.msra.mxu0 0.0
    %762 = vmatprep.subr.mxu0 0.0
    %763 = vmatpush1.msra.mxu0 0.0
    %764 = vmatprep.subr.mxu0 0.0
    %765 = vmatpush1.msra.mxu0 0.0
    %766 = vmatprep.subr.mxu0 0.0
    %767 = vmatpush1.msra.mxu0 0.0
    %768 = vmatprep.subr.mxu0 0.0
    %769 = vmatpush1.msra.mxu0 0.0
    %770 = vmatprep.subr.mxu0 0.0
    %771 = vmatpush1.msra.mxu0 0.0
    %772 = vmatprep.subr.mxu0 0.0
    %773 = vmatpush1.msra.mxu0 0.0
    %774 = vmatprep.subr.mxu0 0.0
    %775 = vmatpush1.msra.mxu0 0.0
    %776 = vmatprep.subr.mxu0 0.0
    %777 = vmatpush1.msra.mxu0 0.0
    %778 = vmatprep.subr.mxu0 0.0
    %779 = vmatpush1.msra.mxu0 0.0
    %780 = vmatprep.subr.mxu0 0.0
    %781 = vmatpush1.msra.mxu0 0.0
    %782 = vmatprep.subr.mxu0 0.0
    %783 = vmatpush1.msra.mxu0 0.0
    %784 = vmatprep.subr.mxu0 0.0
    %785 = vmatpush1.msra.mxu0 0.0
    %786 = vmatprep.subr.mxu0 0.0
    %787 = vmatpush1.msra.mxu0 0.0
    %788 = vmatprep.subr.mxu0 0.0
    %789 = vmatpush1.msra.mxu0 0.0
    %790 = vmatprep.subr.mxu0 0.0
    %791 = vmatpush1.msra.mxu0 0.0
    %792 = vmatprep.subr.mxu0 0.0
    %793 = vmatpush1.msra.mxu0 0.0
    %794 = vmatprep.subr.mxu0 0.0
    %795 = vmatpush1.msra.mxu0 0.0
    %796 = vmatprep.mubr.f32.mxu0 0.0
    %797 = vmatmul.mubr.f32.gmra.mrb[0].mxu0 %v730
    %v798 = vpop.f32.mrb[0].mxu0
    %v799 = vadd.f32 0.0, %v798
    %v800 = vpop.f32.mrb[0].mxu0
    %801 = vdwg.mxu0
    %v802 = vadd.f32 %v729, %v799
    %v803 = vxor.u32 %v802, 2147483648
    %v804 = vmul.f32 %v803, 1.442695
    %v805 = vpow.pop %v804
    %v806 = vadd.f32 %v805, 1.0
    %v807 = vrcp.pop %v806
    %v808 = vmul.f32 1.0, %v807
    %v809 = vtanh.pop %v802
    %v810 = vmul.f32 %v808, %v715
    %812 = vrot.lane.b32.xlu0 %v809, 64
    %v813 = vpop.permute.xlu0 %812
    %v815 = vmul.f32 %v808, %v813
    %817 = vrot.lane.b32.xlu0 %v815, 32
    %v818 = vpop.permute.xlu0 %817
    %v820 = vadd.f32 %v810, %v818
    %v821 = vtanh.pop %v820
    %823 = vrot.lane.b32.xlu0 %v821, 64
    %v824 = vpop.permute.xlu0 %823
    %v826 = vmul.f32 %v808, %v824
    %828 = vrot.lane.b32.xlu0 %v826, 32
    %v829 = vpop.permute.xlu0 %828
    %s831 = scalar_lea.vmem [#allocation4], 48
    %832 = vst.msk [vmem:[%s831] sm:$0xff] %vm95, %v829
    %s833 = scalar_lea.vmem [#allocation6], 56
    %v834 = vld [vmem:[%s833] sm:$0xff]
    %v835 = vsel %vm95, %v829, 0
    %837 = vmatprep.subr.mxu0 0.0
    %838 = vmatpush1.msra.mxu0 %v88
    %839 = vmatprep.subr.mxu0 0.0
    %840 = vmatpush1.msra.mxu0 %v89
    %841 = vmatprep.subr.mxu0 0.0
    %842 = vmatpush1.msra.mxu0 %v90
    %843 = vmatprep.subr.mxu0 0.0
    %844 = vmatpush1.msra.mxu0 %v91
    %845 = vmatprep.subr.mxu0 0.0
    %846 = vmatpush1.msra.mxu0 0.0
    %847 = vmatprep.subr.mxu0 0.0
    %848 = vmatpush1.msra.mxu0 0.0
    %849 = vmatprep.subr.mxu0 0.0
    %850 = vmatpush1.msra.mxu0 0.0
    %851 = vmatprep.subr.mxu0 0.0
    %852 = vmatpush1.msra.mxu0 0.0
    %853 = vmatprep.subr.mxu0 0.0
    %854 = vmatpush1.msra.mxu0 0.0
    %855 = vmatprep.subr.mxu0 0.0
    %856 = vmatpush1.msra.mxu0 0.0
    %857 = vmatprep.subr.mxu0 0.0
    %858 = vmatpush1.msra.mxu0 0.0
    %859 = vmatprep.subr.mxu0 0.0
    %860 = vmatpush1.msra.mxu0 0.0
    %861 = vmatprep.subr.mxu0 0.0
    %862 = vmatpush1.msra.mxu0 0.0
    %863 = vmatprep.subr.mxu0 0.0
    %864 = vmatpush1.msra.mxu0 0.0
    %865 = vmatprep.subr.mxu0 0.0
    %866 = vmatpush1.msra.mxu0 0.0
    %867 = vmatprep.subr.mxu0 0.0
    %868 = vmatpush1.msra.mxu0 0.0
    %869 = vmatprep.subr.mxu0 0.0
    %870 = vmatpush1.msra.mxu0 0.0
    %871 = vmatprep.subr.mxu0 0.0
    %872 = vmatpush1.msra.mxu0 0.0
    %873 = vmatprep.subr.mxu0 0.0
    %874 = vmatpush1.msra.mxu0 0.0
    %875 = vmatprep.subr.mxu0 0.0
    %876 = vmatpush1.msra.mxu0 0.0
    %877 = vmatprep.subr.mxu0 0.0
    %878 = vmatpush1.msra.mxu0 0.0
    %879 = vmatprep.subr.mxu0 0.0
    %880 = vmatpush1.msra.mxu0 0.0
    %881 = vmatprep.subr.mxu0 0.0
    %882 = vmatpush1.msra.mxu0 0.0
    %883 = vmatprep.subr.mxu0 0.0
    %884 = vmatpush1.msra.mxu0 0.0
    %885 = vmatprep.subr.mxu0 0.0
    %886 = vmatpush1.msra.mxu0 0.0
    %887 = vmatprep.subr.mxu0 0.0
    %888 = vmatpush1.msra.mxu0 0.0
    %889 = vmatprep.subr.mxu0 0.0
    %890 = vmatpush1.msra.mxu0 0.0
    %891 = vmatprep.subr.mxu0 0.0
    %892 = vmatpush1.msra.mxu0 0.0
    %893 = vmatprep.subr.mxu0 0.0
    %894 = vmatpush1.msra.mxu0 0.0
    %895 = vmatprep.subr.mxu0 0.0
    %896 = vmatpush1.msra.mxu0 0.0
    %897 = vmatprep.subr.mxu0 0.0
    %898 = vmatpush1.msra.mxu0 0.0
    %899 = vmatprep.subr.mxu0 0.0
    %900 = vmatpush1.msra.mxu0 0.0
    %901 = vmatprep.mubr.f32.mxu0 0.0
    %902 = vmatmul.mubr.f32.gmra.mrb[0].mxu0 %v835
    %v903 = vpop.f32.mrb[0].mxu0
    %v904 = vadd.f32 0.0, %v903
    %v905 = vpop.f32.mrb[0].mxu0
    %906 = vdwg.mxu0
    %v907 = vadd.f32 %v834, %v904
    %v908 = vxor.u32 %v907, 2147483648
    %v909 = vmul.f32 %v908, 1.442695
    %v910 = vpow.pop %v909
    %v911 = vadd.f32 %v910, 1.0
    %v912 = vrcp.pop %v911
    %v913 = vmul.f32 1.0, %v912
    %v914 = vtanh.pop %v907
    %v915 = vmul.f32 %v913, %v820
    %917 = vrot.lane.b32.xlu0 %v914, 64
    %v918 = vpop.permute.xlu0 %917
    %v920 = vmul.f32 %v913, %v918
    %922 = vrot.lane.b32.xlu0 %v920, 32
    %v923 = vpop.permute.xlu0 %922
    %v925 = vadd.f32 %v915, %v923
    %v926 = vtanh.pop %v925
    %928 = vrot.lane.b32.xlu0 %v926, 64
    %v929 = vpop.permute.xlu0 %928
    %v931 = vmul.f32 %v913, %v929
    %933 = vrot.lane.b32.xlu0 %v931, 32
    %v934 = vpop.permute.xlu0 %933
    %s936 = scalar_lea.vmem [#allocation4], 56
    %937 = vst.msk [vmem:[%s936] sm:$0xff] %vm95, %v934
    %938 = vst.msk [vmem:[#allocation2] sm:$0xff] %vm95, %v934
    %940 = vrot.lane.b32.xlu0 %v925, 96
    %v941 = vpop.permute.xlu0 %940
    %943 = vst.msk [vmem:[#allocation3] sm:$0xff] %vm95, %v941
    %v944 = vld [vmem:[#allocation4] sm:$0xff]
    %v945 = vld [vmem:[#allocation4 + $0x8] sm:$0xff]
    %v946 = vld [vmem:[#allocation4 + $0x10] sm:$0xff]
    %v947 = vld [vmem:[#allocation4 + $0x18] sm:$0xff]
    %v948 = vld [vmem:[#allocation4 + $0x20] sm:$0xff]
    %v949 = vld [vmem:[#allocation4 + $0x28] sm:$0xff]
    %v950 = vld [vmem:[#allocation4 + $0x30] sm:$0xff]
    %v951 = vld [vmem:[#allocation4 + $0x38] sm:$0xff]
    %v952 = vld [vmem:[#allocation11] sm:$0xff]
    %v953 = vld [vmem:[#allocation11 + $0x8] sm:$0xff]
    %v954 = vld [vmem:[#allocation11 + $0x10] sm:$0xff]
    %v955 = vld [vmem:[#allocation11 + $0x18] sm:$0xff]
    %v956 = vld [vmem:[%s3] sm:$0x1]
    %v958 = vlaneseq
    %v959 = vshrl.u32 %v958, 7
    %v960 = vsub.s32 0, %v959
    %v961 = vrot.slane %v956, %v960
    %v964 = vsel %vm95, %v944, 0
    %v967 = vsel %vm95, %v945, 0
    %v970 = vsel %vm95, %v946, 0
    %v973 = vsel %vm95, %v947, 0
    %v976 = vsel %vm95, %v948, 0
    %v979 = vsel %vm95, %v949, 0
    %v982 = vsel %vm95, %v950, 0
    %v985 = vsel %vm95, %v951, 0
    %987 = vmatprep.subr.mxu0 0.0
    %988 = vmatpush1.msra.mxu0 %v952
    %989 = vmatprep.subr.mxu0 0.0
    %990 = vmatpush1.msra.mxu0 %v953
    %991 = vmatprep.subr.mxu0 0.0
    %992 = vmatpush1.msra.mxu0 %v954
    %993 = vmatprep.subr.mxu0 0.0
    %994 = vmatpush1.msra.mxu0 %v955
    %995 = vmatprep.subr.mxu0 0.0
    %996 = vmatpush1.msra.mxu0 0.0
    %997 = vmatprep.subr.mxu0 0.0
    %998 = vmatpush1.msra.mxu0 0.0
    %999 = vmatprep.subr.mxu0 0.0
    %1000 = vmatpush1.msra.mxu0 0.0
    %1001 = vmatprep.subr.mxu0 0.0
    %1002 = vmatpush1.msra.mxu0 0.0
    %1003 = vmatprep.subr.mxu0 0.0
    %1004 = vmatpush1.msra.mxu0 0.0
    %1005 = vmatprep.subr.mxu0 0.0
    %1006 = vmatpush1.msra.mxu0 0.0
    %1007 = vmatprep.subr.mxu0 0.0
    %1008 = vmatpush1.msra.mxu0 0.0
    %1009 = vmatprep.subr.mxu0 0.0
    %1010 = vmatpush1.msra.mxu0 0.0
    %1011 = vmatprep.subr.mxu0 0.0
    %1012 = vmatpush1.msra.mxu0 0.0
    %1013 = vmatprep.subr.mxu0 0.0
    %1014 = vmatpush1.msra.mxu0 0.0
    %1015 = vmatprep.subr.mxu0 0.0
    %1016 = vmatpush1.msra.mxu0 0.0
    %1017 = vmatprep.subr.mxu0 0.0
    %1018 = vmatpush1.msra.mxu0 0.0
    %1019 = vmatprep.subr.mxu0 0.0
    %1020 = vmatpush1.msra.mxu0 0.0
    %1021 = vmatprep.subr.mxu0 0.0
    %1022 = vmatpush1.msra.mxu0 0.0
    %1023 = vmatprep.subr.mxu0 0.0
    %1024 = vmatpush1.msra.mxu0 0.0
    %1025 = vmatprep.subr.mxu0 0.0
    %1026 = vmatpush1.msra.mxu0 0.0
    %1027 = vmatprep.subr.mxu0 0.0
    %1028 = vmatpush1.msra.mxu0 0.0
    %1029 = vmatprep.subr.mxu0 0.0
    %1030 = vmatpush1.msra.mxu0 0.0
    %1031 = vmatprep.subr.mxu0 0.0
    %1032 = vmatpush1.msra.mxu0 0.0
    %1033 = vmatprep.subr.mxu0 0.0
    %1034 = vmatpush1.msra.mxu0 0.0
    %1035 = vmatprep.subr.mxu0 0.0
    %1036 = vmatpush1.msra.mxu0 0.0
    %1037 = vmatprep.subr.mxu0 0.0
    %1038 = vmatpush1.msra.mxu0 0.0
    %1039 = vmatprep.subr.mxu0 0.0
    %1040 = vmatpush1.msra.mxu0 0.0
    %1041 = vmatprep.subr.mxu0 0.0
    %1042 = vmatpush1.msra.mxu0 0.0
    %1043 = vmatprep.subr.mxu0 0.0
    %1044 = vmatpush1.msra.mxu0 0.0
    %1045 = vmatprep.subr.mxu0 0.0
    %1046 = vmatpush1.msra.mxu0 0.0
    %1047 = vmatprep.subr.mxu0 0.0
    %1048 = vmatpush1.msra.mxu0 0.0
    %1049 = vmatprep.subr.mxu0 0.0
    %1050 = vmatpush1.msra.mxu0 0.0
    %1051 = vmatprep.mubr.f32.mxu0 0.0
    %1052 = vmatmul.mubr.f32.gmra.mrb[0].mxu0 %v964
    %v1053 = vpop.f32.mrb[0].mxu0
    %v1054 = vadd.f32 %v961, %v1053
    %v1055 = vpop.f32.mrb[0].mxu0
    %1056 = vmatprep.mubr.f32.mxu0 0.0
    %1057 = vmatmul.mubr.f32.gmra.mrb[0].mxu0 %v967
    %v1058 = vpop.f32.mrb[0].mxu0
    %v1059 = vadd.f32 %v961, %v1058
    %v1060 = vpop.f32.mrb[0].mxu0
    %1061 = vmatprep.mubr.f32.mxu0 0.0
    %1062 = vmatmul.mubr.f32.gmra.mrb[0].mxu0 %v970
    %v1063 = vpop.f32.mrb[0].mxu0
    %v1064 = vadd.f32 %v961, %v1063
    %v1065 = vpop.f32.mrb[0].mxu0
    %1066 = vmatprep.mubr.f32.mxu0 0.0
    %1067 = vmatmul.mubr.f32.gmra.mrb[0].mxu0 %v973
    %v1068 = vpop.f32.mrb[0].mxu0
    %v1069 = vadd.f32 %v961, %v1068
    %v1070 = vpop.f32.mrb[0].mxu0
    %1071 = vmatprep.mubr.f32.mxu0 0.0
    %1072 = vmatmul.mubr.f32.gmra.mrb[0].mxu0 %v976
    %v1073 = vpop.f32.mrb[0].mxu0
    %v1074 = vadd.f32 %v961, %v1073
    %v1075 = vpop.f32.mrb[0].mxu0
    %1076 = vmatprep.mubr.f32.mxu0 0.0
    %1077 = vmatmul.mubr.f32.gmra.mrb[0].mxu0 %v979
    %v1078 = vpop.f32.mrb[0].mxu0
    %v1079 = vadd.f32 %v961, %v1078
    %v1080 = vpop.f32.mrb[0].mxu0
    %1081 = vmatprep.mubr.f32.mxu0 0.0
    %1082 = vmatmul.mubr.f32.gmra.mrb[0].mxu0 %v982
    %v1083 = vpop.f32.mrb[0].mxu0
    %v1084 = vadd.f32 %v961, %v1083
    %v1085 = vpop.f32.mrb[0].mxu0
    %1086 = vmatprep.mubr.f32.mxu0 0.0
    %1087 = vmatmul.mubr.f32.gmra.mrb[0].mxu0 %v985
    %v1088 = vpop.f32.mrb[0].mxu0
    %v1089 = vadd.f32 %v961, %v1088
    %v1090 = vpop.f32.mrb[0].mxu0
    %1091 = vdwg.mxu0
    %1092 = vst [vmem:[#allocation5] sm:$0xff] %v1054
    %1093 = vst [vmem:[#allocation5 + $0x8] sm:$0xff] %v1059
    %1094 = vst [vmem:[#allocation5 + $0x10] sm:$0xff] %v1064
    %1095 = vst [vmem:[#allocation5 + $0x18] sm:$0xff] %v1069
    %1096 = vst [vmem:[#allocation5 + $0x20] sm:$0xff] %v1074
    %1097 = vst [vmem:[#allocation5 + $0x28] sm:$0xff] %v1079
    %1098 = vst [vmem:[#allocation5 + $0x30] sm:$0xff] %v1084
    %1099 = vst [vmem:[#allocation5 + $0x38] sm:$0xff] %v1089
    %s1100 = scalar_lea.vmem [#allocation9], 32
    %v1101 = vld [vmem:[%s1100] sm:$0xff]
    %v1102 = vld [vmem:[%s1100 + $0x8] sm:$0xff]
    %v1103 = vld [vmem:[%s1100 + $0x10] sm:$0xff]
    %v1104 = vld [vmem:[%s1100 + $0x18] sm:$0xff]
    %s1105 = scalar_lea.vmem [#allocation2], 8
    %v1106 = vld [vmem:[%s1105] sm:$0xff]
    %s1107 = scalar_lea.vmem [#allocation3], 8
    %v1108 = vld [vmem:[%s1107] sm:$0xff]
    %v1109 = vld [vmem:[#allocation5] sm:$0xff]
    %v1111 = vsel %vm95, %v1106, 0
    %1113 = vmatprep.subr.mxu0 0.0
    %1114 = vmatpush1.msra.mxu0 %v1101
    %1115 = vmatprep.subr.mxu0 0.0
    %1116 = vmatpush1.msra.mxu0 %v1102
    %1117 = vmatprep.subr.mxu0 0.0
    %1118 = vmatpush1.msra.mxu0 %v1103
    %1119 = vmatprep.subr.mxu0 0.0
    %1120 = vmatpush1.msra.mxu0 %v1104
    %1121 = vmatprep.subr.mxu0 0.0
    %1122 = vmatpush1.msra.mxu0 0.0
    %1123 = vmatprep.subr.mxu0 0.0
    %1124 = vmatpush1.msra.mxu0 0.0
    %1125 = vmatprep.subr.mxu0 0.0
    %1126 = vmatpush1.msra.mxu0 0.0
    %1127 = vmatprep.subr.mxu0 0.0
    %1128 = vmatpush1.msra.mxu0 0.0
    %1129 = vmatprep.subr.mxu0 0.0
    %1130 = vmatpush1.msra.mxu0 0.0
    %1131 = vmatprep.subr.mxu0 0.0
    %1132 = vmatpush1.msra.mxu0 0.0
    %1133 = vmatprep.subr.mxu0 0.0
    %1134 = vmatpush1.msra.mxu0 0.0
    %1135 = vmatprep.subr.mxu0 0.0
    %1136 = vmatpush1.msra.mxu0 0.0
    %1137 = vmatprep.subr.mxu0 0.0
    %1138 = vmatpush1.msra.mxu0 0.0
    %1139 = vmatprep.subr.mxu0 0.0
    %1140 = vmatpush1.msra.mxu0 0.0
    %1141 = vmatprep.subr.mxu0 0.0
    %1142 = vmatpush1.msra.mxu0 0.0
    %1143 = vmatprep.subr.mxu0 0.0
    %1144 = vmatpush1.msra.mxu0 0.0
    %1145 = vmatprep.subr.mxu0 0.0
    %1146 = vmatpush1.msra.mxu0 0.0
    %1147 = vmatprep.subr.mxu0 0.0
    %1148 = vmatpush1.msra.mxu0 0.0
    %1149 = vmatprep.subr.mxu0 0.0
    %1150 = vmatpush1.msra.mxu0 0.0
    %1151 = vmatprep.subr.mxu0 0.0
    %1152 = vmatpush1.msra.mxu0 0.0
    %1153 = vmatprep.subr.mxu0 0.0
    %1154 = vmatpush1.msra.mxu0 0.0
    %1155 = vmatprep.subr.mxu0 0.0
    %1156 = vmatpush1.msra.mxu0 0.0
    %1157 = vmatprep.subr.mxu0 0.0
    %1158 = vmatpush1.msra.mxu0 0.0
    %1159 = vmatprep.subr.mxu0 0.0
    %1160 = vmatpush1.msra.mxu0 0.0
    %1161 = vmatprep.subr.mxu0 0.0
    %1162 = vmatpush1.msra.mxu0 0.0
    %1163 = vmatprep.subr.mxu0 0.0
    %1164 = vmatpush1.msra.mxu0 0.0
    %1165 = vmatprep.subr.mxu0 0.0
    %1166 = vmatpush1.msra.mxu0 0.0
    %1167 = vmatprep.subr.mxu0 0.0
    %1168 = vmatpush1.msra.mxu0 0.0
    %1169 = vmatprep.subr.mxu0 0.0
    %1170 = vmatpush1.msra.mxu0 0.0
    %1171 = vmatprep.subr.mxu0 0.0
    %1172 = vmatpush1.msra.mxu0 0.0
    %1173 = vmatprep.subr.mxu0 0.0
    %1174 = vmatpush1.msra.mxu0 0.0
    %1175 = vmatprep.subr.mxu0 0.0
    %1176 = vmatpush1.msra.mxu0 0.0
    %1177 = vmatprep.mubr.f32.mxu0 0.0
    %1178 = vmatmul.mubr.f32.gmra.mrb[0].mxu0 %v1111
    %v1179 = vpop.f32.mrb[0].mxu0
    %v1180 = vadd.f32 0.0, %v1179
    %v1181 = vpop.f32.mrb[0].mxu0
    %1182 = vdwg.mxu0
    %v1183 = vadd.f32 %v1109, %v1180
    %v1184 = vxor.u32 %v1183, 2147483648
    %v1185 = vmul.f32 %v1184, 1.442695
    %v1186 = vpow.pop %v1185
    %v1187 = vadd.f32 %v1186, 1.0
    %v1188 = vrcp.pop %v1187
    %v1189 = vmul.f32 1.0, %v1188
    %v1190 = vtanh.pop %v1183
    %1192 = vrot.lane.b32.xlu0 %v1108, 32
    %v1193 = vpop.permute.xlu0 %1192
    %v1195 = vmul.f32 %v1189, %v1193
    %1197 = vrot.lane.b32.xlu0 %v1190, 64
    %v1198 = vpop.permute.xlu0 %1197
    %v1200 = vmul.f32 %v1189, %v1198
    %1202 = vrot.lane.b32.xlu0 %v1200, 32
    %v1203 = vpop.permute.xlu0 %1202
    %v1205 = vadd.f32 %v1195, %v1203
    %v1206 = vtanh.pop %v1205
    %1208 = vrot.lane.b32.xlu0 %v1206, 64
    %v1209 = vpop.permute.xlu0 %1208
    %v1211 = vmul.f32 %v1189, %v1209
    %1213 = vrot.lane.b32.xlu0 %v1211, 32
    %v1214 = vpop.permute.xlu0 %1213
    %1216 = vst.msk [vmem:[#allocation4] sm:$0xff] %vm95, %v1214
    %s1217 = scalar_lea.vmem [#allocation5], 8
    %v1218 = vld [vmem:[%s1217] sm:$0xff]
    %v1219 = vsel %vm95, %v1214, 0
    %1221 = vmatprep.subr.mxu0 0.0
    %1222 = vmatpush1.msra.mxu0 %v1101
    %1223 = vmatprep.subr.mxu0 0.0
    %1224 = vmatpush1.msra.mxu0 %v1102
    %1225 = vmatprep.subr.mxu0 0.0
    %1226 = vmatpush1.msra.mxu0 %v1103
    %1227 = vmatprep.subr.mxu0 0.0
    %1228 = vmatpush1.msra.mxu0 %v1104
    %1229 = vmatprep.subr.mxu0 0.0
    %1230 = vmatpush1.msra.mxu0 0.0
    %1231 = vmatprep.subr.mxu0 0.0
    %1232 = vmatpush1.msra.mxu0 0.0
    %1233 = vmatprep.subr.mxu0 0.0
    %1234 = vmatpush1.msra.mxu0 0.0
    %1235 = vmatprep.subr.mxu0 0.0
    %1236 = vmatpush1.msra.mxu0 0.0
    %1237 = vmatprep.subr.mxu0 0.0
    %1238 = vmatpush1.msra.mxu0 0.0
    %1239 = vmatprep.subr.mxu0 0.0
    %1240 = vmatpush1.msra.mxu0 0.0
    %1241 = vmatprep.subr.mxu0 0.0
    %1242 = vmatpush1.msra.mxu0 0.0
    %1243 = vmatprep.subr.mxu0 0.0
    %1244 = vmatpush1.msra.mxu0 0.0
    %1245 = vmatprep.subr.mxu0 0.0
    %1246 = vmatpush1.msra.mxu0 0.0
    %1247 = vmatprep.subr.mxu0 0.0
    %1248 = vmatpush1.msra.mxu0 0.0
    %1249 = vmatprep.subr.mxu0 0.0
    %1250 = vmatpush1.msra.mxu0 0.0
    %1251 = vmatprep.subr.mxu0 0.0
    %1252 = vmatpush1.msra.mxu0 0.0
    %1253 = vmatprep.subr.mxu0 0.0
    %1254 = vmatpush1.msra.mxu0 0.0
    %1255 = vmatprep.subr.mxu0 0.0
    %1256 = vmatpush1.msra.mxu0 0.0
    %1257 = vmatprep.subr.mxu0 0.0
    %1258 = vmatpush1.msra.mxu0 0.0
    %1259 = vmatprep.subr.mxu0 0.0
    %1260 = vmatpush1.msra.mxu0 0.0
    %1261 = vmatprep.subr.mxu0 0.0
    %1262 = vmatpush1.msra.mxu0 0.0
    %1263 = vmatprep.subr.mxu0 0.0
    %1264 = vmatpush1.msra.mxu0 0.0
    %1265 = vmatprep.subr.mxu0 0.0
    %1266 = vmatpush1.msra.mxu0 0.0
    %1267 = vmatprep.subr.mxu0 0.0
    %1268 = vmatpush1.msra.mxu0 0.0
    %1269 = vmatprep.subr.mxu0 0.0
    %1270 = vmatpush1.msra.mxu0 0.0
    %1271 = vmatprep.subr.mxu0 0.0
    %1272 = vmatpush1.msra.mxu0 0.0
    %1273 = vmatprep.subr.mxu0 0.0
    %1274 = vmatpush1.msra.mxu0 0.0
    %1275 = vmatprep.subr.mxu0 0.0
    %1276 = vmatpush1.msra.mxu0 0.0
    %1277 = vmatprep.subr.mxu0 0.0
    %1278 = vmatpush1.msra.mxu0 0.0
    %1279 = vmatprep.subr.mxu0 0.0
    %1280 = vmatpush1.msra.mxu0 0.0
    %1281 = vmatprep.subr.mxu0 0.0
    %1282 = vmatpush1.msra.mxu0 0.0
    %1283 = vmatprep.subr.mxu0 0.0
    %1284 = vmatpush1.msra.mxu0 0.0
    %1285 = vmatprep.mubr.f32.mxu0 0.0
    %1286 = vmatmul.mubr.f32.gmra.mrb[0].mxu0 %v1219
    %v1287 = vpop.f32.mrb[0].mxu0
    %v1288 = vadd.f32 0.0, %v1287
    %v1289 = vpop.f32.mrb[0].mxu0
    %1290 = vdwg.mxu0
    %v1291 = vadd.f32 %v1218, %v1288
    %v1292 = vxor.u32 %v1291, 2147483648
    %v1293 = vmul.f32 %v1292, 1.442695
    %v1294 = vpow.pop %v1293
    %v1295 = vadd.f32 %v1294, 1.0
    %v1296 = vrcp.pop %v1295
    %v1297 = vmul.f32 1.0, %v1296
    %v1298 = vtanh.pop %v1291
    %v1299 = vmul.f32 %v1297, %v1205
    %1301 = vrot.lane.b32.xlu0 %v1298, 64
    %v1302 = vpop.permute.xlu0 %1301
    %v1304 = vmul.f32 %v1297, %v1302
    %1306 = vrot.lane.b32.xlu0 %v1304, 32
    %v1307 = vpop.permute.xlu0 %1306
    %v1309 = vadd.f32 %v1299, %v1307
    %v1310 = vtanh.pop %v1309
    %1312 = vrot.lane.b32.xlu0 %v1310, 64
    %v1313 = vpop.permute.xlu0 %1312
    %v1315 = vmul.f32 %v1297, %v1313
    %1317 = vrot.lane.b32.xlu0 %v1315, 32
    %v1318 = vpop.permute.xlu0 %1317
    %1320 = vst.msk [vmem:[%s306] sm:$0xff] %vm95, %v1318
    %s1321 = scalar_lea.vmem [#allocation5], 16
    %v1322 = vld [vmem:[%s1321] sm:$0xff]
    %v1323 = vsel %vm95, %v1318, 0
    %1325 = vmatprep.subr.mxu0 0.0
    %1326 = vmatpush1.msra.mxu0 %v1101
    %1327 = vmatprep.subr.mxu0 0.0
    %1328 = vmatpush1.msra.mxu0 %v1102
    %1329 = vmatprep.subr.mxu0 0.0
    %1330 = vmatpush1.msra.mxu0 %v1103
    %1331 = vmatprep.subr.mxu0 0.0
    %1332 = vmatpush1.msra.mxu0 %v1104
    %1333 = vmatprep.subr.mxu0 0.0
    %1334 = vmatpush1.msra.mxu0 0.0
    %1335 = vmatprep.subr.mxu0 0.0
    %1336 = vmatpush1.msra.mxu0 0.0
    %1337 = vmatprep.subr.mxu0 0.0
    %1338 = vmatpush1.msra.mxu0 0.0
    %1339 = vmatprep.subr.mxu0 0.0
    %1340 = vmatpush1.msra.mxu0 0.0
    %1341 = vmatprep.subr.mxu0 0.0
    %1342 = vmatpush1.msra.mxu0 0.0
    %1343 = vmatprep.subr.mxu0 0.0
    %1344 = vmatpush1.msra.mxu0 0.0
    %1345 = vmatprep.subr.mxu0 0.0
    %1346 = vmatpush1.msra.mxu0 0.0
    %1347 = vmatprep.subr.mxu0 0.0
    %1348 = vmatpush1.msra.mxu0 0.0
    %1349 = vmatprep.subr.mxu0 0.0
    %1350 = vmatpush1.msra.mxu0 0.0
    %1351 = vmatprep.subr.mxu0 0.0
    %1352 = vmatpush1.msra.mxu0 0.0
    %1353 = vmatprep.subr.mxu0 0.0
    %1354 = vmatpush1.msra.mxu0 0.0
    %1355 = vmatprep.subr.mxu0 0.0
    %1356 = vmatpush1.msra.mxu0 0.0
    %1357 = vmatprep.subr.mxu0 0.0
    %1358 = vmatpush1.msra.mxu0 0.0
    %1359 = vmatprep.subr.mxu0 0.0
    %1360 = vmatpush1.msra.mxu0 0.0
    %1361 = vmatprep.subr.mxu0 0.0
    %1362 = vmatpush1.msra.mxu0 0.0
    %1363 = vmatprep.subr.mxu0 0.0
    %1364 = vmatpush1.msra.mxu0 0.0
    %1365 = vmatprep.subr.mxu0 0.0
    %1366 = vmatpush1.msra.mxu0 0.0
    %1367 = vmatprep.subr.mxu0 0.0
    %1368 = vmatpush1.msra.mxu0 0.0
    %1369 = vmatprep.subr.mxu0 0.0
    %1370 = vmatpush1.msra.mxu0 0.0
    %1371 = vmatprep.subr.mxu0 0.0
    %1372 = vmatpush1.msra.mxu0 0.0
    %1373 = vmatprep.subr.mxu0 0.0
    %1374 = vmatpush1.msra.mxu0 0.0
    %1375 = vmatprep.subr.mxu0 0.0
    %1376 = vmatpush1.msra.mxu0 0.0
    %1377 = vmatprep.subr.mxu0 0.0
    %1378 = vmatpush1.msra.mxu0 0.0
    %1379 = vmatprep.subr.mxu0 0.0
    %1380 = vmatpush1.msra.mxu0 0.0
    %1381 = vmatprep.subr.mxu0 0.0
    %1382 = vmatpush1.msra.mxu0 0.0
    %1383 = vmatprep.subr.mxu0 0.0
    %1384 = vmatpush1.msra.mxu0 0.0
    %1385 = vmatprep.subr.mxu0 0.0
    %1386 = vmatpush1.msra.mxu0 0.0
    %1387 = vmatprep.subr.mxu0 0.0
    %1388 = vmatpush1.msra.mxu0 0.0
    %1389 = vmatprep.mubr.f32.mxu0 0.0
    %1390 = vmatmul.mubr.f32.gmra.mrb[0].mxu0 %v1323
    %v1391 = vpop.f32.mrb[0].mxu0
    %v1392 = vadd.f32 0.0, %v1391
    %v1393 = vpop.f32.mrb[0].mxu0
    %1394 = vdwg.mxu0
    %v1395 = vadd.f32 %v1322, %v1392
    %v1396 = vxor.u32 %v1395, 2147483648
    %v1397 = vmul.f32 %v1396, 1.442695
    %v1398 = vpow.pop %v1397
    %v1399 = vadd.f32 %v1398, 1.0
    %v1400 = vrcp.pop %v1399
    %v1401 = vmul.f32 1.0, %v1400
    %v1402 = vtanh.pop %v1395
    %v1403 = vmul.f32 %v1401, %v1309
    %1405 = vrot.lane.b32.xlu0 %v1402, 64
    %v1406 = vpop.permute.xlu0 %1405
    %v1408 = vmul.f32 %v1401, %v1406
    %1410 = vrot.lane.b32.xlu0 %v1408, 32
    %v1411 = vpop.permute.xlu0 %1410
    %v1413 = vadd.f32 %v1403, %v1411
    %v1414 = vtanh.pop %v1413
    %1416 = vrot.lane.b32.xlu0 %v1414, 64
    %v1417 = vpop.permute.xlu0 %1416
    %v1419 = vmul.f32 %v1401, %v1417
    %1421 = vrot.lane.b32.xlu0 %v1419, 32
    %v1422 = vpop.permute.xlu0 %1421
    %1424 = vst.msk [vmem:[%s411] sm:$0xff] %vm95, %v1422
    %s1425 = scalar_lea.vmem [#allocation5], 24
    %v1426 = vld [vmem:[%s1425] sm:$0xff]
    %v1427 = vsel %vm95, %v1422, 0
    %1429 = vmatprep.subr.mxu0 0.0
    %1430 = vmatpush1.msra.mxu0 %v1101
    %1431 = vmatprep.subr.mxu0 0.0
    %1432 = vmatpush1.msra.mxu0 %v1102
    %1433 = vmatprep.subr.mxu0 0.0
    %1434 = vmatpush1.msra.mxu0 %v1103
    %1435 = vmatprep.subr.mxu0 0.0
    %1436 = vmatpush1.msra.mxu0 %v1104
    %1437 = vmatprep.subr.mxu0 0.0
    %1438 = vmatpush1.msra.mxu0 0.0
    %1439 = vmatprep.subr.mxu0 0.0
    %1440 = vmatpush1.msra.mxu0 0.0
    %1441 = vmatprep.subr.mxu0 0.0
    %1442 = vmatpush1.msra.mxu0 0.0
    %1443 = vmatprep.subr.mxu0 0.0
    %1444 = vmatpush1.msra.mxu0 0.0
    %1445 = vmatprep.subr.mxu0 0.0
    %1446 = vmatpush1.msra.mxu0 0.0
    %1447 = vmatprep.subr.mxu0 0.0
    %1448 = vmatpush1.msra.mxu0 0.0
    %1449 = vmatprep.subr.mxu0 0.0
    %1450 = vmatpush1.msra.mxu0 0.0
    %1451 = vmatprep.subr.mxu0 0.0
    %1452 = vmatpush1.msra.mxu0 0.0
    %1453 = vmatprep.subr.mxu0 0.0
    %1454 = vmatpush1.msra.mxu0 0.0
    %1455 = vmatprep.subr.mxu0 0.0
    %1456 = vmatpush1.msra.mxu0 0.0
    %1457 = vmatprep.subr.mxu0 0.0
    %1458 = vmatpush1.msra.mxu0 0.0
    %1459 = vmatprep.subr.mxu0 0.0
    %1460 = vmatpush1.msra.mxu0 0.0
    %1461 = vmatprep.subr.mxu0 0.0
    %1462 = vmatpush1.msra.mxu0 0.0
    %1463 = vmatprep.subr.mxu0 0.0
    %1464 = vmatpush1.msra.mxu0 0.0
    %1465 = vmatprep.subr.mxu0 0.0
    %1466 = vmatpush1.msra.mxu0 0.0
    %1467 = vmatprep.subr.mxu0 0.0
    %1468 = vmatpush1.msra.mxu0 0.0
    %1469 = vmatprep.subr.mxu0 0.0
    %1470 = vmatpush1.msra.mxu0 0.0
    %1471 = vmatprep.subr.mxu0 0.0
    %1472 = vmatpush1.msra.mxu0 0.0
    %1473 = vmatprep.subr.mxu0 0.0
    %1474 = vmatpush1.msra.mxu0 0.0
    %1475 = vmatprep.subr.mxu0 0.0
    %1476 = vmatpush1.msra.mxu0 0.0
    %1477 = vmatprep.subr.mxu0 0.0
    %1478 = vmatpush1.msra.mxu0 0.0
    %1479 = vmatprep.subr.mxu0 0.0
    %1480 = vmatpush1.msra.mxu0 0.0
    %1481 = vmatprep.subr.mxu0 0.0
    %1482 = vmatpush1.msra.mxu0 0.0
    %1483 = vmatprep.subr.mxu0 0.0
    %1484 = vmatpush1.msra.mxu0 0.0
    %1485 = vmatprep.subr.mxu0 0.0
    %1486 = vmatpush1.msra.mxu0 0.0
    %1487 = vmatprep.subr.mxu0 0.0
    %1488 = vmatpush1.msra.mxu0 0.0
    %1489 = vmatprep.subr.mxu0 0.0
    %1490 = vmatpush1.msra.mxu0 0.0
    %1491 = vmatprep.subr.mxu0 0.0
    %1492 = vmatpush1.msra.mxu0 0.0
    %1493 = vmatprep.mubr.f32.mxu0 0.0
    %1494 = vmatmul.mubr.f32.gmra.mrb[0].mxu0 %v1427
    %v1495 = vpop.f32.mrb[0].mxu0
    %v1496 = vadd.f32 0.0, %v1495
    %v1497 = vpop.f32.mrb[0].mxu0
    %1498 = vdwg.mxu0
    %v1499 = vadd.f32 %v1426, %v1496
    %v1500 = vxor.u32 %v1499, 2147483648
    %v1501 = vmul.f32 %v1500, 1.442695
    %v1502 = vpow.pop %v1501
    %v1503 = vadd.f32 %v1502, 1.0
    %v1504 = vrcp.pop %v1503
    %v1505 = vmul.f32 1.0, %v1504
    %v1506 = vtanh.pop %v1499
    %v1507 = vmul.f32 %v1505, %v1413
    %1509 = vrot.lane.b32.xlu0 %v1506, 64
    %v1510 = vpop.permute.xlu0 %1509
    %v1512 = vmul.f32 %v1505, %v1510
    %1514 = vrot.lane.b32.xlu0 %v1512, 32
    %v1515 = vpop.permute.xlu0 %1514
    %v1517 = vadd.f32 %v1507, %v1515
    %v1518 = vtanh.pop %v1517
    %1520 = vrot.lane.b32.xlu0 %v1518, 64
    %v1521 = vpop.permute.xlu0 %1520
    %v1523 = vmul.f32 %v1505, %v1521
    %1525 = vrot.lane.b32.xlu0 %v1523, 32
    %v1526 = vpop.permute.xlu0 %1525
    %1528 = vst.msk [vmem:[%s516] sm:$0xff] %vm95, %v1526
    %s1529 = scalar_lea.vmem [#allocation5], 32
    %v1530 = vld [vmem:[%s1529] sm:$0xff]
    %v1531 = vsel %vm95, %v1526, 0
    %1533 = vmatprep.subr.mxu0 0.0
    %1534 = vmatpush1.msra.mxu0 %v1101
    %1535 = vmatprep.subr.mxu0 0.0
    %1536 = vmatpush1.msra.mxu0 %v1102
    %1537 = vmatprep.subr.mxu0 0.0
    %1538 = vmatpush1.msra.mxu0 %v1103
    %1539 = vmatprep.subr.mxu0 0.0
    %1540 = vmatpush1.msra.mxu0 %v1104
    %1541 = vmatprep.subr.mxu0 0.0
    %1542 = vmatpush1.msra.mxu0 0.0
    %1543 = vmatprep.subr.mxu0 0.0
    %1544 = vmatpush1.msra.mxu0 0.0
    %1545 = vmatprep.subr.mxu0 0.0
    %1546 = vmatpush1.msra.mxu0 0.0
    %1547 = vmatprep.subr.mxu0 0.0
    %1548 = vmatpush1.msra.mxu0 0.0
    %1549 = vmatprep.subr.mxu0 0.0
    %1550 = vmatpush1.msra.mxu0 0.0
    %1551 = vmatprep.subr.mxu0 0.0
    %1552 = vmatpush1.msra.mxu0 0.0
    %1553 = vmatprep.subr.mxu0 0.0
    %1554 = vmatpush1.msra.mxu0 0.0
    %1555 = vmatprep.subr.mxu0 0.0
    %1556 = vmatpush1.msra.mxu0 0.0
    %1557 = vmatprep.subr.mxu0 0.0
    %1558 = vmatpush1.msra.mxu0 0.0
    %1559 = vmatprep.subr.mxu0 0.0
    %1560 = vmatpush1.msra.mxu0 0.0
    %1561 = vmatprep.subr.mxu0 0.0
    %1562 = vmatpush1.msra.mxu0 0.0
    %1563 = vmatprep.subr.mxu0 0.0
    %1564 = vmatpush1.msra.mxu0 0.0
    %1565 = vmatprep.subr.mxu0 0.0
    %1566 = vmatpush1.msra.mxu0 0.0
    %1567 = vmatprep.subr.mxu0 0.0
    %1568 = vmatpush1.msra.mxu0 0.0
    %1569 = vmatprep.subr.mxu0 0.0
    %1570 = vmatpush1.msra.mxu0 0.0
    %1571 = vmatprep.subr.mxu0 0.0
    %1572 = vmatpush1.msra.mxu0 0.0
    %1573 = vmatprep.subr.mxu0 0.0
    %1574 = vmatpush1.msra.mxu0 0.0
    %1575 = vmatprep.subr.mxu0 0.0
    %1576 = vmatpush1.msra.mxu0 0.0
    %1577 = vmatprep.subr.mxu0 0.0
    %1578 = vmatpush1.msra.mxu0 0.0
    %1579 = vmatprep.subr.mxu0 0.0
    %1580 = vmatpush1.msra.mxu0 0.0
    %1581 = vmatprep.subr.mxu0 0.0
    %1582 = vmatpush1.msra.mxu0 0.0
    %1583 = vmatprep.subr.mxu0 0.0
    %1584 = vmatpush1.msra.mxu0 0.0
    %1585 = vmatprep.subr.mxu0 0.0
    %1586 = vmatpush1.msra.mxu0 0.0
    %1587 = vmatprep.subr.mxu0 0.0
    %1588 = vmatpush1.msra.mxu0 0.0
    %1589 = vmatprep.subr.mxu0 0.0
    %1590 = vmatpush1.msra.mxu0 0.0
    %1591 = vmatprep.subr.mxu0 0.0
    %1592 = vmatpush1.msra.mxu0 0.0
    %1593 = vmatprep.subr.mxu0 0.0
    %1594 = vmatpush1.msra.mxu0 0.0
    %1595 = vmatprep.subr.mxu0 0.0
    %1596 = vmatpush1.msra.mxu0 0.0
    %1597 = vmatprep.mubr.f32.mxu0 0.0
    %1598 = vmatmul.mubr.f32.gmra.mrb[0].mxu0 %v1531
    %v1599 = vpop.f32.mrb[0].mxu0
    %v1600 = vadd.f32 0.0, %v1599
    %v1601 = vpop.f32.mrb[0].mxu0
    %1602 = vdwg.mxu0
    %v1603 = vadd.f32 %v1530, %v1600
    %v1604 = vxor.u32 %v1603, 2147483648
    %v1605 = vmul.f32 %v1604, 1.442695
    %v1606 = vpow.pop %v1605
    %v1607 = vadd.f32 %v1606, 1.0
    %v1608 = vrcp.pop %v1607
    %v1609 = vmul.f32 1.0, %v1608
    %v1610 = vtanh.pop %v1603
    %v1611 = vmul.f32 %v1609, %v1517
    %1613 = vrot.lane.b32.xlu0 %v1610, 64
    %v1614 = vpop.permute.xlu0 %1613
    %v1616 = vmul.f32 %v1609, %v1614
    %1618 = vrot.lane.b32.xlu0 %v1616, 32
    %v1619 = vpop.permute.xlu0 %1618
    %v1621 = vadd.f32 %v1611, %v1619
    %v1622 = vtanh.pop %v1621
    %1624 = vrot.lane.b32.xlu0 %v1622, 64
    %v1625 = vpop.permute.xlu0 %1624
    %v1627 = vmul.f32 %v1609, %v1625
    %1629 = vrot.lane.b32.xlu0 %v1627, 32
    %v1630 = vpop.permute.xlu0 %1629
    %1632 = vst.msk [vmem:[%s621] sm:$0xff] %vm95, %v1630
    %s1633 = scalar_lea.vmem [#allocation5], 40
    %v1634 = vld [vmem:[%s1633] sm:$0xff]
    %v1635 = vsel %vm95, %v1630, 0
    %1637 = vmatprep.subr.mxu0 0.0
    %1638 = vmatpush1.msra.mxu0 %v1101
    %1639 = vmatprep.subr.mxu0 0.0
    %1640 = vmatpush1.msra.mxu0 %v1102
    %1641 = vmatprep.subr.mxu0 0.0
    %1642 = vmatpush1.msra.mxu0 %v1103
    %1643 = vmatprep.subr.mxu0 0.0
    %1644 = vmatpush1.msra.mxu0 %v1104
    %1645 = vmatprep.subr.mxu0 0.0
    %1646 = vmatpush1.msra.mxu0 0.0
    %1647 = vmatprep.subr.mxu0 0.0
    %1648 = vmatpush1.msra.mxu0 0.0
    %1649 = vmatprep.subr.mxu0 0.0
    %1650 = vmatpush1.msra.mxu0 0.0
    %1651 = vmatprep.subr.mxu0 0.0
    %1652 = vmatpush1.msra.mxu0 0.0
    %1653 = vmatprep.subr.mxu0 0.0
    %1654 = vmatpush1.msra.mxu0 0.0
    %1655 = vmatprep.subr.mxu0 0.0
    %1656 = vmatpush1.msra.mxu0 0.0
    %1657 = vmatprep.subr.mxu0 0.0
    %1658 = vmatpush1.msra.mxu0 0.0
    %1659 = vmatprep.subr.mxu0 0.0
    %1660 = vmatpush1.msra.mxu0 0.0
    %1661 = vmatprep.subr.mxu0 0.0
    %1662 = vmatpush1.msra.mxu0 0.0
    %1663 = vmatprep.subr.mxu0 0.0
    %1664 = vmatpush1.msra.mxu0 0.0
    %1665 = vmatprep.subr.mxu0 0.0
    %1666 = vmatpush1.msra.mxu0 0.0
    %1667 = vmatprep.subr.mxu0 0.0
    %1668 = vmatpush1.msra.mxu0 0.0
    %1669 = vmatprep.subr.mxu0 0.0
    %1670 = vmatpush1.msra.mxu0 0.0
    %1671 = vmatprep.subr.mxu0 0.0
    %1672 = vmatpush1.msra.mxu0 0.0
    %1673 = vmatprep.subr.mxu0 0.0
    %1674 = vmatpush1.msra.mxu0 0.0
    %1675 = vmatprep.subr.mxu0 0.0
    %1676 = vmatpush1.msra.mxu0 0.0
    %1677 = vmatprep.subr.mxu0 0.0
    %1678 = vmatpush1.msra.mxu0 0.0
    %1679 = vmatprep.subr.mxu0 0.0
    %1680 = vmatpush1.msra.mxu0 0.0
    %1681 = vmatprep.subr.mxu0 0.0
    %1682 = vmatpush1.msra.mxu0 0.0
    %1683 = vmatprep.subr.mxu0 0.0
    %1684 = vmatpush1.msra.mxu0 0.0
    %1685 = vmatprep.subr.mxu0 0.0
    %1686 = vmatpush1.msra.mxu0 0.0
    %1687 = vmatprep.subr.mxu0 0.0
    %1688 = vmatpush1.msra.mxu0 0.0
    %1689 = vmatprep.subr.mxu0 0.0
    %1690 = vmatpush1.msra.mxu0 0.0
    %1691 = vmatprep.subr.mxu0 0.0
    %1692 = vmatpush1.msra.mxu0 0.0
    %1693 = vmatprep.subr.mxu0 0.0
    %1694 = vmatpush1.msra.mxu0 0.0
    %1695 = vmatprep.subr.mxu0 0.0
    %1696 = vmatpush1.msra.mxu0 0.0
    %1697 = vmatprep.subr.mxu0 0.0
    %1698 = vmatpush1.msra.mxu0 0.0
    %1699 = vmatprep.subr.mxu0 0.0
    %1700 = vmatpush1.msra.mxu0 0.0
    %1701 = vmatprep.mubr.f32.mxu0 0.0
    %1702 = vmatmul.mubr.f32.gmra.mrb[0].mxu0 %v1635
    %v1703 = vpop.f32.mrb[0].mxu0
    %v1704 = vadd.f32 0.0, %v1703
    %v1705 = vpop.f32.mrb[0].mxu0
    %1706 = vdwg.mxu0
    %v1707 = vadd.f32 %v1634, %v1704
    %v1708 = vxor.u32 %v1707, 2147483648
    %v1709 = vmul.f32 %v1708, 1.442695
    %v1710 = vpow.pop %v1709
    %v1711 = vadd.f32 %v1710, 1.0
    %v1712 = vrcp.pop %v1711
    %v1713 = vmul.f32 1.0, %v1712
    %v1714 = vtanh.pop %v1707
    %v1715 = vmul.f32 %v1713, %v1621
    %1717 = vrot.lane.b32.xlu0 %v1714, 64
    %v1718 = vpop.permute.xlu0 %1717
    %v1720 = vmul.f32 %v1713, %v1718
    %1722 = vrot.lane.b32.xlu0 %v1720, 32
    %v1723 = vpop.permute.xlu0 %1722
    %v1725 = vadd.f32 %v1715, %v1723
    %v1726 = vtanh.pop %v1725
    %1728 = vrot.lane.b32.xlu0 %v1726, 64
    %v1729 = vpop.permute.xlu0 %1728
    %v1731 = vmul.f32 %v1713, %v1729
    %1733 = vrot.lane.b32.xlu0 %v1731, 32
    %v1734 = vpop.permute.xlu0 %1733
    %1736 = vst.msk [vmem:[%s726] sm:$0xff] %vm95, %v1734
    %s1737 = scalar_lea.vmem [#allocation5], 48
    %v1738 = vld [vmem:[%s1737] sm:$0xff]
    %v1739 = vsel %vm95, %v1734, 0
    %1741 = vmatprep.subr.mxu0 0.0
    %1742 = vmatpush1.msra.mxu0 %v1101
    %1743 = vmatprep.subr.mxu0 0.0
    %1744 = vmatpush1.msra.mxu0 %v1102
    %1745 = vmatprep.subr.mxu0 0.0
    %1746 = vmatpush1.msra.mxu0 %v1103
    %1747 = vmatprep.subr.mxu0 0.0
    %1748 = vmatpush1.msra.mxu0 %v1104
    %1749 = vmatprep.subr.mxu0 0.0
    %1750 = vmatpush1.msra.mxu0 0.0
    %1751 = vmatprep.subr.mxu0 0.0
    %1752 = vmatpush1.msra.mxu0 0.0
    %1753 = vmatprep.subr.mxu0 0.0
    %1754 = vmatpush1.msra.mxu0 0.0
    %1755 = vmatprep.subr.mxu0 0.0
    %1756 = vmatpush1.msra.mxu0 0.0
    %1757 = vmatprep.subr.mxu0 0.0
    %1758 = vmatpush1.msra.mxu0 0.0
    %1759 = vmatprep.subr.mxu0 0.0
    %1760 = vmatpush1.msra.mxu0 0.0
    %1761 = vmatprep.subr.mxu0 0.0
    %1762 = vmatpush1.msra.mxu0 0.0
    %1763 = vmatprep.subr.mxu0 0.0
    %1764 = vmatpush1.msra.mxu0 0.0
    %1765 = vmatprep.subr.mxu0 0.0
    %1766 = vmatpush1.msra.mxu0 0.0
    %1767 = vmatprep.subr.mxu0 0.0
    %1768 = vmatpush1.msra.mxu0 0.0
    %1769 = vmatprep.subr.mxu0 0.0
    %1770 = vmatpush1.msra.mxu0 0.0
    %1771 = vmatprep.subr.mxu0 0.0
    %1772 = vmatpush1.msra.mxu0 0.0
    %1773 = vmatprep.subr.mxu0 0.0
    %1774 = vmatpush1.msra.mxu0 0.0
    %1775 = vmatprep.subr.mxu0 0.0
    %1776 = vmatpush1.msra.mxu0 0.0
    %1777 = vmatprep.subr.mxu0 0.0
    %1778 = vmatpush1.msra.mxu0 0.0
    %1779 = vmatprep.subr.mxu0 0.0
    %1780 = vmatpush1.msra.mxu0 0.0
    %1781 = vmatprep.subr.mxu0 0.0
    %1782 = vmatpush1.msra.mxu0 0.0
    %1783 = vmatprep.subr.mxu0 0.0
    %1784 = vmatpush1.msra.mxu0 0.0
    %1785 = vmatprep.subr.mxu0 0.0
    %1786 = vmatpush1.msra.mxu0 0.0
    %1787 = vmatprep.subr.mxu0 0.0
    %1788 = vmatpush1.msra.mxu0 0.0
    %1789 = vmatprep.subr.mxu0 0.0
    %1790 = vmatpush1.msra.mxu0 0.0
    %1791 = vmatprep.subr.mxu0 0.0
    %1792 = vmatpush1.msra.mxu0 0.0
    %1793 = vmatprep.subr.mxu0 0.0
    %1794 = vmatpush1.msra.mxu0 0.0
    %1795 = vmatprep.subr.mxu0 0.0
    %1796 = vmatpush1.msra.mxu0 0.0
    %1797 = vmatprep.subr.mxu0 0.0
    %1798 = vmatpush1.msra.mxu0 0.0
    %1799 = vmatprep.subr.mxu0 0.0
    %1800 = vmatpush1.msra.mxu0 0.0
    %1801 = vmatprep.subr.mxu0 0.0
    %1802 = vmatpush1.msra.mxu0 0.0
    %1803 = vmatprep.subr.mxu0 0.0
    %1804 = vmatpush1.msra.mxu0 0.0
    %1805 = vmatprep.mubr.f32.mxu0 0.0
    %1806 = vmatmul.mubr.f32.gmra.mrb[0].mxu0 %v1739
    %v1807 = vpop.f32.mrb[0].mxu0
    %v1808 = vadd.f32 0.0, %v1807
    %v1809 = vpop.f32.mrb[0].mxu0
    %1810 = vdwg.mxu0
    %v1811 = vadd.f32 %v1738, %v1808
    %v1812 = vxor.u32 %v1811, 2147483648
    %v1813 = vmul.f32 %v1812, 1.442695
    %v1814 = vpow.pop %v1813
    %v1815 = vadd.f32 %v1814, 1.0
    %v1816 = vrcp.pop %v1815
    %v1817 = vmul.f32 1.0, %v1816
    %v1818 = vtanh.pop %v1811
    %v1819 = vmul.f32 %v1817, %v1725
    %1821 = vrot.lane.b32.xlu0 %v1818, 64
    %v1822 = vpop.permute.xlu0 %1821
    %v1824 = vmul.f32 %v1817, %v1822
    %1826 = vrot.lane.b32.xlu0 %v1824, 32
    %v1827 = vpop.permute.xlu0 %1826
    %v1829 = vadd.f32 %v1819, %v1827
    %v1830 = vtanh.pop %v1829
    %1832 = vrot.lane.b32.xlu0 %v1830, 64
    %v1833 = vpop.permute.xlu0 %1832
    %v1835 = vmul.f32 %v1817, %v1833
    %1837 = vrot.lane.b32.xlu0 %v1835, 32
    %v1838 = vpop.permute.xlu0 %1837
    %1840 = vst.msk [vmem:[%s831] sm:$0xff] %vm95, %v1838
    %s1841 = scalar_lea.vmem [#allocation5], 56
    %v1842 = vld [vmem:[%s1841] sm:$0xff]
    %v1843 = vsel %vm95, %v1838, 0
    %1845 = vmatprep.subr.mxu0 0.0
    %1846 = vmatpush1.msra.mxu0 %v1101
    %1847 = vmatprep.subr.mxu0 0.0
    %1848 = vmatpush1.msra.mxu0 %v1102
    %1849 = vmatprep.subr.mxu0 0.0
    %1850 = vmatpush1.msra.mxu0 %v1103
    %1851 = vmatprep.subr.mxu0 0.0
    %1852 = vmatpush1.msra.mxu0 %v1104
    %1853 = vmatprep.subr.mxu0 0.0
    %1854 = vmatpush1.msra.mxu0 0.0
    %1855 = vmatprep.subr.mxu0 0.0
    %1856 = vmatpush1.msra.mxu0 0.0
    %1857 = vmatprep.subr.mxu0 0.0
    %1858 = vmatpush1.msra.mxu0 0.0
    %1859 = vmatprep.subr.mxu0 0.0
    %1860 = vmatpush1.msra.mxu0 0.0
    %1861 = vmatprep.subr.mxu0 0.0
    %1862 = vmatpush1.msra.mxu0 0.0
    %1863 = vmatprep.subr.mxu0 0.0
    %1864 = vmatpush1.msra.mxu0 0.0
    %1865 = vmatprep.subr.mxu0 0.0
    %1866 = vmatpush1.msra.mxu0 0.0
    %1867 = vmatprep.subr.mxu0 0.0
    %1868 = vmatpush1.msra.mxu0 0.0
    %1869 = vmatprep.subr.mxu0 0.0
    %1870 = vmatpush1.msra.mxu0 0.0
    %1871 = vmatprep.subr.mxu0 0.0
    %1872 = vmatpush1.msra.mxu0 0.0
    %1873 = vmatprep.subr.mxu0 0.0
    %1874 = vmatpush1.msra.mxu0 0.0
    %1875 = vmatprep.subr.mxu0 0.0
    %1876 = vmatpush1.msra.mxu0 0.0
    %1877 = vmatprep.subr.mxu0 0.0
    %1878 = vmatpush1.msra.mxu0 0.0
    %1879 = vmatprep.subr.mxu0 0.0
    %1880 = vmatpush1.msra.mxu0 0.0
    %1881 = vmatprep.subr.mxu0 0.0
    %1882 = vmatpush1.msra.mxu0 0.0
    %1883 = vmatprep.subr.mxu0 0.0
    %1884 = vmatpush1.msra.mxu0 0.0
    %1885 = vmatprep.subr.mxu0 0.0
    %1886 = vmatpush1.msra.mxu0 0.0
    %1887 = vmatprep.subr.mxu0 0.0
    %1888 = vmatpush1.msra.mxu0 0.0
    %1889 = vmatprep.subr.mxu0 0.0
    %1890 = vmatpush1.msra.mxu0 0.0
    %1891 = vmatprep.subr.mxu0 0.0
    %1892 = vmatpush1.msra.mxu0 0.0
    %1893 = vmatprep.subr.mxu0 0.0
    %1894 = vmatpush1.msra.mxu0 0.0
    %1895 = vmatprep.subr.mxu0 0.0
    %1896 = vmatpush1.msra.mxu0 0.0
    %1897 = vmatprep.subr.mxu0 0.0
    %1898 = vmatpush1.msra.mxu0 0.0
    %1899 = vmatprep.subr.mxu0 0.0
    %1900 = vmatpush1.msra.mxu0 0.0
    %1901 = vmatprep.subr.mxu0 0.0
    %1902 = vmatpush1.msra.mxu0 0.0
    %1903 = vmatprep.subr.mxu0 0.0
    %1904 = vmatpush1.msra.mxu0 0.0
    %1905 = vmatprep.subr.mxu0 0.0
    %1906 = vmatpush1.msra.mxu0 0.0
    %1907 = vmatprep.subr.mxu0 0.0
    %1908 = vmatpush1.msra.mxu0 0.0
    %1909 = vmatprep.mubr.f32.mxu0 0.0
    %1910 = vmatmul.mubr.f32.gmra.mrb[0].mxu0 %v1843
    %v1911 = vpop.f32.mrb[0].mxu0
    %v1912 = vadd.f32 0.0, %v1911
    %v1913 = vpop.f32.mrb[0].mxu0
    %1914 = vdwg.mxu0
    %v1915 = vadd.f32 %v1842, %v1912
    %v1916 = vxor.u32 %v1915, 2147483648
    %v1917 = vmul.f32 %v1916, 1.442695
    %v1918 = vpow.pop %v1917
    %v1919 = vadd.f32 %v1918, 1.0
    %v1920 = vrcp.pop %v1919
    %v1921 = vmul.f32 1.0, %v1920
    %v1922 = vtanh.pop %v1915
    %v1923 = vmul.f32 %v1921, %v1829
    %1925 = vrot.lane.b32.xlu0 %v1922, 64
    %v1926 = vpop.permute.xlu0 %1925
    %v1928 = vmul.f32 %v1921, %v1926
    %1930 = vrot.lane.b32.xlu0 %v1928, 32
    %v1931 = vpop.permute.xlu0 %1930
    %v1933 = vadd.f32 %v1923, %v1931
    %v1934 = vtanh.pop %v1933
    %1936 = vrot.lane.b32.xlu0 %v1934, 64
    %v1937 = vpop.permute.xlu0 %1936
    %v1939 = vmul.f32 %v1921, %v1937
    %1941 = vrot.lane.b32.xlu0 %v1939, 32
    %v1942 = vpop.permute.xlu0 %1941
    %1944 = vst.msk [vmem:[%s936] sm:$0xff] %vm95, %v1942
    %1945 = vst.msk [vmem:[%s1105] sm:$0xff] %vm95, %v1942
    %1947 = vrot.lane.b32.xlu0 %v1933, 96
    %v1948 = vpop.permute.xlu0 %1947
    %1950 = vst.msk [vmem:[%s1107] sm:$0xff] %vm95, %v1948
    %v1951 = vld [vmem:[#allocation4] sm:$0xff]
    %v1952 = vld [vmem:[#allocation4 + $0x8] sm:$0xff]
    %v1953 = vld [vmem:[#allocation4 + $0x10] sm:$0xff]
    %v1954 = vld [vmem:[#allocation4 + $0x18] sm:$0xff]
    %v1955 = vld [vmem:[#allocation4 + $0x20] sm:$0xff]
    %v1956 = vld [vmem:[#allocation4 + $0x28] sm:$0xff]
    %v1957 = vld [vmem:[#allocation4 + $0x30] sm:$0xff]
    %v1958 = vld [vmem:[#allocation4 + $0x38] sm:$0xff]
    %v1959 = vld [vmem:[#allocation12] sm:$0xff]
    %v1960 = vld [vmem:[#allocation12 + $0x8] sm:$0xff]
    %v1961 = vld [vmem:[#allocation12 + $0x10] sm:$0xff]
    %v1962 = vld [vmem:[#allocation12 + $0x18] sm:$0xff]
    %v1963 = vld [vmem:[%s5] sm:$0x1]
    %v1965 = vlaneseq
    %v1966 = vshrl.u32 %v1965, 7
    %v1967 = vsub.s32 0, %v1966
    %v1968 = vrot.slane %v1963, %v1967
    %v1971 = vsel %vm95, %v1951, 0
    %v1974 = vsel %vm95, %v1952, 0
    %v1977 = vsel %vm95, %v1953, 0
    %v1980 = vsel %vm95, %v1954, 0
    %v1983 = vsel %vm95, %v1955, 0
    %v1986 = vsel %vm95, %v1956, 0
    %v1989 = vsel %vm95, %v1957, 0
    %v1992 = vsel %vm95, %v1958, 0
    %1994 = vmatprep.subr.mxu0 0.0
    %1995 = vmatpush1.msra.mxu0 %v1959
    %1996 = vmatprep.subr.mxu0 0.0
    %1997 = vmatpush1.msra.mxu0 %v1960
    %1998 = vmatprep.subr.mxu0 0.0
    %1999 = vmatpush1.msra.mxu0 %v1961
    %2000 = vmatprep.subr.mxu0 0.0
    %2001 = vmatpush1.msra.mxu0 %v1962
    %2002 = vmatprep.subr.mxu0 0.0
    %2003 = vmatpush1.msra.mxu0 0.0
    %2004 = vmatprep.subr.mxu0 0.0
    %2005 = vmatpush1.msra.mxu0 0.0
    %2006 = vmatprep.subr.mxu0 0.0
    %2007 = vmatpush1.msra.mxu0 0.0
    %2008 = vmatprep.subr.mxu0 0.0
    %2009 = vmatpush1.msra.mxu0 0.0
    %2010 = vmatprep.subr.mxu0 0.0
    %2011 = vmatpush1.msra.mxu0 0.0
    %2012 = vmatprep.subr.mxu0 0.0
    %2013 = vmatpush1.msra.mxu0 0.0
    %2014 = vmatprep.subr.mxu0 0.0
    %2015 = vmatpush1.msra.mxu0 0.0
    %2016 = vmatprep.subr.mxu0 0.0
    %2017 = vmatpush1.msra.mxu0 0.0
    %2018 = vmatprep.subr.mxu0 0.0
    %2019 = vmatpush1.msra.mxu0 0.0
    %2020 = vmatprep.subr.mxu0 0.0
    %2021 = vmatpush1.msra.mxu0 0.0
    %2022 = vmatprep.subr.mxu0 0.0
    %2023 = vmatpush1.msra.mxu0 0.0
    %2024 = vmatprep.subr.mxu0 0.0
    %2025 = vmatpush1.msra.mxu0 0.0
    %2026 = vmatprep.subr.mxu0 0.0
    %2027 = vmatpush1.msra.mxu0 0.0
    %2028 = vmatprep.subr.mxu0 0.0
    %2029 = vmatpush1.msra.mxu0 0.0
    %2030 = vmatprep.subr.mxu0 0.0
    %2031 = vmatpush1.msra.mxu0 0.0
    %2032 = vmatprep.subr.mxu0 0.0
    %2033 = vmatpush1.msra.mxu0 0.0
    %2034 = vmatprep.subr.mxu0 0.0
    %2035 = vmatpush1.msra.mxu0 0.0
    %2036 = vmatprep.subr.mxu0 0.0
    %2037 = vmatpush1.msra.mxu0 0.0
    %2038 = vmatprep.subr.mxu0 0.0
    %2039 = vmatpush1.msra.mxu0 0.0
    %2040 = vmatprep.subr.mxu0 0.0
    %2041 = vmatpush1.msra.mxu0 0.0
    %2042 = vmatprep.subr.mxu0 0.0
    %2043 = vmatpush1.msra.mxu0 0.0
    %2044 = vmatprep.subr.mxu0 0.0
    %2045 = vmatpush1.msra.mxu0 0.0
    %2046 = vmatprep.subr.mxu0 0.0
    %2047 = vmatpush1.msra.mxu0 0.0
    %2048 = vmatprep.subr.mxu0 0.0
    %2049 = vmatpush1.msra.mxu0 0.0
    %2050 = vmatprep.subr.mxu0 0.0
    %2051 = vmatpush1.msra.mxu0 0.0
    %2052 = vmatprep.subr.mxu0 0.0
    %2053 = vmatpush1.msra.mxu0 0.0
    %2054 = vmatprep.subr.mxu0 0.0
    %2055 = vmatpush1.msra.mxu0 0.0
    %2056 = vmatprep.subr.mxu0 0.0
    %2057 = vmatpush1.msra.mxu0 0.0
    %2058 = vmatprep.mubr.f32.mxu0 0.0
    %2059 = vmatmul.mubr.f32.gmra.mrb[0].mxu0 %v1971
    %v2060 = vpop.f32.mrb[0].mxu0
    %v2061 = vadd.f32 %v1968, %v2060
    %v2062 = vpop.f32.mrb[0].mxu0
    %2063 = vmatprep.mubr.f32.mxu0 0.0
    %2064 = vmatmul.mubr.f32.gmra.mrb[0].mxu0 %v1974
    %v2065 = vpop.f32.mrb[0].mxu0
    %v2066 = vadd.f32 %v1968, %v2065
    %v2067 = vpop.f32.mrb[0].mxu0
    %2068 = vmatprep.mubr.f32.mxu0 0.0
    %2069 = vmatmul.mubr.f32.gmra.mrb[0].mxu0 %v1977
    %v2070 = vpop.f32.mrb[0].mxu0
    %v2071 = vadd.f32 %v1968, %v2070
    %v2072 = vpop.f32.mrb[0].mxu0
    %2073 = vmatprep.mubr.f32.mxu0 0.0
    %2074 = vmatmul.mubr.f32.gmra.mrb[0].mxu0 %v1980
    %v2075 = vpop.f32.mrb[0].mxu0
    %v2076 = vadd.f32 %v1968, %v2075
    %v2077 = vpop.f32.mrb[0].mxu0
    %2078 = vmatprep.mubr.f32.mxu0 0.0
    %2079 = vmatmul.mubr.f32.gmra.mrb[0].mxu0 %v1983
    %v2080 = vpop.f32.mrb[0].mxu0
    %v2081 = vadd.f32 %v1968, %v2080
    %v2082 = vpop.f32.mrb[0].mxu0
    %2083 = vmatprep.mubr.f32.mxu0 0.0
    %2084 = vmatmul.mubr.f32.gmra.mrb[0].mxu0 %v1986
    %v2085 = vpop.f32.mrb[0].mxu0
    %v2086 = vadd.f32 %v1968, %v2085
    %v2087 = vpop.f32.mrb[0].mxu0
    %2088 = vmatprep.mubr.f32.mxu0 0.0
    %2089 = vmatmul.mubr.f32.gmra.mrb[0].mxu0 %v1989
    %v2090 = vpop.f32.mrb[0].mxu0
    %v2091 = vadd.f32 %v1968, %v2090
    %v2092 = vpop.f32.mrb[0].mxu0
    %2093 = vmatprep.mubr.f32.mxu0 0.0
    %2094 = vmatmul.mubr.f32.gmra.mrb[0].mxu0 %v1992
    %v2095 = vpop.f32.mrb[0].mxu0
    %v2096 = vadd.f32 %v1968, %v2095
    %v2097 = vpop.f32.mrb[0].mxu0
    %2098 = vdwg.mxu0
    %v2100 = vcombine.high %v2061, %v2061
    %v2102 = vunpack.c.l.s4 1966171168
    %v2103 = vunpack.c.0.s8 %v2102
    %v2104 = vlaneseq
    %v2105 = vshrl.u32 %v2104, 7
    %v2106 = vsub.s32 %v2103, %v2105
    %v2107 = vrot.slane %v2061, %v2106
    %v2109 = vunpack.c.l.s4 1966171168
    %v2110 = vunpack.c.0.s8 %v2109
    %v2111 = vlaneseq
    %v2112 = vshrl.u32 %v2111, 7
    %v2113 = vsub.s32 %v2110, %v2112
    %v2114 = vrot.slane %v2100, %v2113
    %v2115 = vcombine.high %v2107, %v2107
    %v2116 = vcombine.high %v2114, %v2114
    %v2118 = vunpack.c.l.s4 1966171168
    %v2119 = vunpack.c.0.s8 %v2118
    %v2120 = vlaneseq
    %v2121 = vshrl.u32 %v2120, 7
    %v2122 = vsub.s32 %v2119, %v2121
    %v2123 = vrot.slane %v2107, %v2122
    %v2125 = vunpack.c.l.s4 1966171168
    %v2126 = vunpack.c.0.s8 %v2125
    %v2127 = vlaneseq
    %v2128 = vshrl.u32 %v2127, 7
    %v2129 = vsub.s32 %v2126, %v2128
    %v2130 = vrot.slane %v2114, %v2129
    %v2132 = vunpack.c.l.s4 1966171168
    %v2133 = vunpack.c.0.s8 %v2132
    %v2134 = vlaneseq
    %v2135 = vshrl.u32 %v2134, 7
    %v2136 = vsub.s32 %v2133, %v2135
    %v2137 = vrot.slane %v2115, %v2136
    %v2139 = vunpack.c.l.s4 1966171168
    %v2140 = vunpack.c.0.s8 %v2139
    %v2141 = vlaneseq
    %v2142 = vshrl.u32 %v2141, 7
    %v2143 = vsub.s32 %v2140, %v2142
    %v2144 = vrot.slane %v2116, %v2143
    %v2145 = vcombine.high %v2123, %v2123
    %v2146 = vcombine.high %v2130, %v2130
    %v2147 = vcombine.high %v2137, %v2137
    %v2148 = vcombine.high %v2144, %v2144
    %2157 = vst [vmem:[#allocation14] sm:$0x1] %v2123
    %2158 = vst [vmem:[#allocation14 + $0x8] sm:$0x1] %v2137
    %2159 = vst [vmem:[#allocation14 + $0x10] sm:$0x1] %v2145
    %2160 = vst [vmem:[#allocation14 + $0x18] sm:$0x1] %v2147
    %2161 = vst [vmem:[#allocation14 + $0x20] sm:$0x1] %v2130
    %2162 = vst [vmem:[#allocation14 + $0x28] sm:$0x1] %v2144
    %2163 = vst [vmem:[#allocation14 + $0x30] sm:$0x1] %v2146
    %2164 = vst [vmem:[#allocation14 + $0x38] sm:$0x1] %v2148
    %v2166 = vcombine.high %v2066, %v2066
    %v2168 = vunpack.c.l.s4 1966171168
    %v2169 = vunpack.c.0.s8 %v2168
    %v2170 = vlaneseq
    %v2171 = vshrl.u32 %v2170, 7
    %v2172 = vsub.s32 %v2169, %v2171
    %v2173 = vrot.slane %v2066, %v2172
    %v2175 = vunpack.c.l.s4 1966171168
    %v2176 = vunpack.c.0.s8 %v2175
    %v2177 = vlaneseq
    %v2178 = vshrl.u32 %v2177, 7
    %v2179 = vsub.s32 %v2176, %v2178
    %v2180 = vrot.slane %v2166, %v2179
    %v2181 = vcombine.high %v2173, %v2173
    %v2182 = vcombine.high %v2180, %v2180
    %v2184 = vunpack.c.l.s4 1966171168
    %v2185 = vunpack.c.0.s8 %v2184
    %v2186 = vlaneseq
    %v2187 = vshrl.u32 %v2186, 7
    %v2188 = vsub.s32 %v2185, %v2187
    %v2189 = vrot.slane %v2173, %v2188
    %v2191 = vunpack.c.l.s4 1966171168
    %v2192 = vunpack.c.0.s8 %v2191
    %v2193 = vlaneseq
    %v2194 = vshrl.u32 %v2193, 7
    %v2195 = vsub.s32 %v2192, %v2194
    %v2196 = vrot.slane %v2180, %v2195
    %v2198 = vunpack.c.l.s4 1966171168
    %v2199 = vunpack.c.0.s8 %v2198
    %v2200 = vlaneseq
    %v2201 = vshrl.u32 %v2200, 7
    %v2202 = vsub.s32 %v2199, %v2201
    %v2203 = vrot.slane %v2181, %v2202
    %v2205 = vunpack.c.l.s4 1966171168
    %v2206 = vunpack.c.0.s8 %v2205
    %v2207 = vlaneseq
    %v2208 = vshrl.u32 %v2207, 7
    %v2209 = vsub.s32 %v2206, %v2208
    %v2210 = vrot.slane %v2182, %v2209
    %v2211 = vcombine.high %v2189, %v2189
    %v2212 = vcombine.high %v2196, %v2196
    %v2213 = vcombine.high %v2203, %v2203
    %v2214 = vcombine.high %v2210, %v2210
    %2223 = vst [vmem:[#allocation14 + $0x1] sm:$0x1] %v2189
    %2224 = vst [vmem:[#allocation14 + $0x9] sm:$0x1] %v2203
    %2225 = vst [vmem:[#allocation14 + $0x11] sm:$0x1] %v2211
    %2226 = vst [vmem:[#allocation14 + $0x19] sm:$0x1] %v2213
    %2227 = vst [vmem:[#allocation14 + $0x21] sm:$0x1] %v2196
    %2228 = vst [vmem:[#allocation14 + $0x29] sm:$0x1] %v2210
    %2229 = vst [vmem:[#allocation14 + $0x31] sm:$0x1] %v2212
    %2230 = vst [vmem:[#allocation14 + $0x39] sm:$0x1] %v2214
    %v2232 = vcombine.high %v2071, %v2071
    %v2234 = vunpack.c.l.s4 1966171168
    %v2235 = vunpack.c.0.s8 %v2234
    %v2236 = vlaneseq
    %v2237 = vshrl.u32 %v2236, 7
    %v2238 = vsub.s32 %v2235, %v2237
    %v2239 = vrot.slane %v2071, %v2238
    %v2241 = vunpack.c.l.s4 1966171168
    %v2242 = vunpack.c.0.s8 %v2241
    %v2243 = vlaneseq
    %v2244 = vshrl.u32 %v2243, 7
    %v2245 = vsub.s32 %v2242, %v2244
    %v2246 = vrot.slane %v2232, %v2245
    %v2247 = vcombine.high %v2239, %v2239
    %v2248 = vcombine.high %v2246, %v2246
    %v2250 = vunpack.c.l.s4 1966171168
    %v2251 = vunpack.c.0.s8 %v2250
    %v2252 = vlaneseq
    %v2253 = vshrl.u32 %v2252, 7
    %v2254 = vsub.s32 %v2251, %v2253
    %v2255 = vrot.slane %v2239, %v2254
    %v2257 = vunpack.c.l.s4 1966171168
    %v2258 = vunpack.c.0.s8 %v2257
    %v2259 = vlaneseq
    %v2260 = vshrl.u32 %v2259, 7
    %v2261 = vsub.s32 %v2258, %v2260
    %v2262 = vrot.slane %v2246, %v2261
    %v2264 = vunpack.c.l.s4 1966171168
    %v2265 = vunpack.c.0.s8 %v2264
    %v2266 = vlaneseq
    %v2267 = vshrl.u32 %v2266, 7
    %v2268 = vsub.s32 %v2265, %v2267
    %v2269 = vrot.slane %v2247, %v2268
    %v2271 = vunpack.c.l.s4 1966171168
    %v2272 = vunpack.c.0.s8 %v2271
    %v2273 = vlaneseq
    %v2274 = vshrl.u32 %v2273, 7
    %v2275 = vsub.s32 %v2272, %v2274
    %v2276 = vrot.slane %v2248, %v2275
    %v2277 = vcombine.high %v2255, %v2255
    %v2278 = vcombine.high %v2262, %v2262
    %v2279 = vcombine.high %v2269, %v2269
    %v2280 = vcombine.high %v2276, %v2276
    %2289 = vst [vmem:[#allocation14 + $0x2] sm:$0x1] %v2255
    %2290 = vst [vmem:[#allocation14 + $0xa] sm:$0x1] %v2269
    %2291 = vst [vmem:[#allocation14 + $0x12] sm:$0x1] %v2277
    %2292 = vst [vmem:[#allocation14 + $0x1a] sm:$0x1] %v2279
    %2293 = vst [vmem:[#allocation14 + $0x22] sm:$0x1] %v2262
    %2294 = vst [vmem:[#allocation14 + $0x2a] sm:$0x1] %v2276
    %2295 = vst [vmem:[#allocation14 + $0x32] sm:$0x1] %v2278
    %2296 = vst [vmem:[#allocation14 + $0x3a] sm:$0x1] %v2280
    %v2298 = vcombine.high %v2076, %v2076
    %v2300 = vunpack.c.l.s4 1966171168
    %v2301 = vunpack.c.0.s8 %v2300
    %v2302 = vlaneseq
    %v2303 = vshrl.u32 %v2302, 7
    %v2304 = vsub.s32 %v2301, %v2303
    %v2305 = vrot.slane %v2076, %v2304
    %v2307 = vunpack.c.l.s4 1966171168
    %v2308 = vunpack.c.0.s8 %v2307
    %v2309 = vlaneseq
    %v2310 = vshrl.u32 %v2309, 7
    %v2311 = vsub.s32 %v2308, %v2310
    %v2312 = vrot.slane %v2298, %v2311
    %v2313 = vcombine.high %v2305, %v2305
    %v2314 = vcombine.high %v2312, %v2312
    %v2316 = vunpack.c.l.s4 1966171168
    %v2317 = vunpack.c.0.s8 %v2316
    %v2318 = vlaneseq
    %v2319 = vshrl.u32 %v2318, 7
    %v2320 = vsub.s32 %v2317, %v2319
    %v2321 = vrot.slane %v2305, %v2320
    %v2323 = vunpack.c.l.s4 1966171168
    %v2324 = vunpack.c.0.s8 %v2323
    %v2325 = vlaneseq
    %v2326 = vshrl.u32 %v2325, 7
    %v2327 = vsub.s32 %v2324, %v2326
    %v2328 = vrot.slane %v2312, %v2327
    %v2330 = vunpack.c.l.s4 1966171168
    %v2331 = vunpack.c.0.s8 %v2330
    %v2332 = vlaneseq
    %v2333 = vshrl.u32 %v2332, 7
    %v2334 = vsub.s32 %v2331, %v2333
    %v2335 = vrot.slane %v2313, %v2334
    %v2337 = vunpack.c.l.s4 1966171168
    %v2338 = vunpack.c.0.s8 %v2337
    %v2339 = vlaneseq
    %v2340 = vshrl.u32 %v2339, 7
    %v2341 = vsub.s32 %v2338, %v2340
    %v2342 = vrot.slane %v2314, %v2341
    %v2343 = vcombine.high %v2321, %v2321
    %v2344 = vcombine.high %v2328, %v2328
    %v2345 = vcombine.high %v2335, %v2335
    %v2346 = vcombine.high %v2342, %v2342
    %2355 = vst [vmem:[#allocation14 + $0x3] sm:$0x1] %v2321
    %2356 = vst [vmem:[#allocation14 + $0xb] sm:$0x1] %v2335
    %2357 = vst [vmem:[#allocation14 + $0x13] sm:$0x1] %v2343
    %2358 = vst [vmem:[#allocation14 + $0x1b] sm:$0x1] %v2345
    %2359 = vst [vmem:[#allocation14 + $0x23] sm:$0x1] %v2328
    %2360 = vst [vmem:[#allocation14 + $0x2b] sm:$0x1] %v2342
    %2361 = vst [vmem:[#allocation14 + $0x33] sm:$0x1] %v2344
    %2362 = vst [vmem:[#allocation14 + $0x3b] sm:$0x1] %v2346
    %v2364 = vcombine.high %v2081, %v2081
    %v2366 = vunpack.c.l.s4 1966171168
    %v2367 = vunpack.c.0.s8 %v2366
    %v2368 = vlaneseq
    %v2369 = vshrl.u32 %v2368, 7
    %v2370 = vsub.s32 %v2367, %v2369
    %v2371 = vrot.slane %v2081, %v2370
    %v2373 = vunpack.c.l.s4 1966171168
    %v2374 = vunpack.c.0.s8 %v2373
    %v2375 = vlaneseq
    %v2376 = vshrl.u32 %v2375, 7
    %v2377 = vsub.s32 %v2374, %v2376
    %v2378 = vrot.slane %v2364, %v2377
    %v2379 = vcombine.high %v2371, %v2371
    %v2380 = vcombine.high %v2378, %v2378
    %v2382 = vunpack.c.l.s4 1966171168
    %v2383 = vunpack.c.0.s8 %v2382
    %v2384 = vlaneseq
    %v2385 = vshrl.u32 %v2384, 7
    %v2386 = vsub.s32 %v2383, %v2385
    %v2387 = vrot.slane %v2371, %v2386
    %v2389 = vunpack.c.l.s4 1966171168
    %v2390 = vunpack.c.0.s8 %v2389
    %v2391 = vlaneseq
    %v2392 = vshrl.u32 %v2391, 7
    %v2393 = vsub.s32 %v2390, %v2392
    %v2394 = vrot.slane %v2378, %v2393
    %v2396 = vunpack.c.l.s4 1966171168
    %v2397 = vunpack.c.0.s8 %v2396
    %v2398 = vlaneseq
    %v2399 = vshrl.u32 %v2398, 7
    %v2400 = vsub.s32 %v2397, %v2399
    %v2401 = vrot.slane %v2379, %v2400
    %v2403 = vunpack.c.l.s4 1966171168
    %v2404 = vunpack.c.0.s8 %v2403
    %v2405 = vlaneseq
    %v2406 = vshrl.u32 %v2405, 7
    %v2407 = vsub.s32 %v2404, %v2406
    %v2408 = vrot.slane %v2380, %v2407
    %v2409 = vcombine.high %v2387, %v2387
    %v2410 = vcombine.high %v2394, %v2394
    %v2411 = vcombine.high %v2401, %v2401
    %v2412 = vcombine.high %v2408, %v2408
    %2421 = vst [vmem:[#allocation14 + $0x4] sm:$0x1] %v2387
    %2422 = vst [vmem:[#allocation14 + $0xc] sm:$0x1] %v2401
    %2423 = vst [vmem:[#allocation14 + $0x14] sm:$0x1] %v2409
    %2424 = vst [vmem:[#allocation14 + $0x1c] sm:$0x1] %v2411
    %2425 = vst [vmem:[#allocation14 + $0x24] sm:$0x1] %v2394
    %2426 = vst [vmem:[#allocation14 + $0x2c] sm:$0x1] %v2408
    %2427 = vst [vmem:[#allocation14 + $0x34] sm:$0x1] %v2410
    %2428 = vst [vmem:[#allocation14 + $0x3c] sm:$0x1] %v2412
    %v2430 = vcombine.high %v2086, %v2086
    %v2432 = vunpack.c.l.s4 1966171168
    %v2433 = vunpack.c.0.s8 %v2432
    %v2434 = vlaneseq
    %v2435 = vshrl.u32 %v2434, 7
    %v2436 = vsub.s32 %v2433, %v2435
    %v2437 = vrot.slane %v2086, %v2436
    %v2439 = vunpack.c.l.s4 1966171168
    %v2440 = vunpack.c.0.s8 %v2439
    %v2441 = vlaneseq
    %v2442 = vshrl.u32 %v2441, 7
    %v2443 = vsub.s32 %v2440, %v2442
    %v2444 = vrot.slane %v2430, %v2443
    %v2445 = vcombine.high %v2437, %v2437
    %v2446 = vcombine.high %v2444, %v2444
    %v2448 = vunpack.c.l.s4 1966171168
    %v2449 = vunpack.c.0.s8 %v2448
    %v2450 = vlaneseq
    %v2451 = vshrl.u32 %v2450, 7
    %v2452 = vsub.s32 %v2449, %v2451
    %v2453 = vrot.slane %v2437, %v2452
    %v2455 = vunpack.c.l.s4 1966171168
    %v2456 = vunpack.c.0.s8 %v2455
    %v2457 = vlaneseq
    %v2458 = vshrl.u32 %v2457, 7
    %v2459 = vsub.s32 %v2456, %v2458
    %v2460 = vrot.slane %v2444, %v2459
    %v2462 = vunpack.c.l.s4 1966171168
    %v2463 = vunpack.c.0.s8 %v2462
    %v2464 = vlaneseq
    %v2465 = vshrl.u32 %v2464, 7
    %v2466 = vsub.s32 %v2463, %v2465
    %v2467 = vrot.slane %v2445, %v2466
    %v2469 = vunpack.c.l.s4 1966171168
    %v2470 = vunpack.c.0.s8 %v2469
    %v2471 = vlaneseq
    %v2472 = vshrl.u32 %v2471, 7
    %v2473 = vsub.s32 %v2470, %v2472
    %v2474 = vrot.slane %v2446, %v2473
    %v2475 = vcombine.high %v2453, %v2453
    %v2476 = vcombine.high %v2460, %v2460
    %v2477 = vcombine.high %v2467, %v2467
    %v2478 = vcombine.high %v2474, %v2474
    %2487 = vst [vmem:[#allocation14 + $0x5] sm:$0x1] %v2453
    %2488 = vst [vmem:[#allocation14 + $0xd] sm:$0x1] %v2467
    %2489 = vst [vmem:[#allocation14 + $0x15] sm:$0x1] %v2475
    %2490 = vst [vmem:[#allocation14 + $0x1d] sm:$0x1] %v2477
    %2491 = vst [vmem:[#allocation14 + $0x25] sm:$0x1] %v2460
    %2492 = vst [vmem:[#allocation14 + $0x2d] sm:$0x1] %v2474
    %2493 = vst [vmem:[#allocation14 + $0x35] sm:$0x1] %v2476
    %2494 = vst [vmem:[#allocation14 + $0x3d] sm:$0x1] %v2478
    %v2496 = vcombine.high %v2091, %v2091
    %v2498 = vunpack.c.l.s4 1966171168
    %v2499 = vunpack.c.0.s8 %v2498
    %v2500 = vlaneseq
    %v2501 = vshrl.u32 %v2500, 7
    %v2502 = vsub.s32 %v2499, %v2501
    %v2503 = vrot.slane %v2091, %v2502
    %v2505 = vunpack.c.l.s4 1966171168
    %v2506 = vunpack.c.0.s8 %v2505
    %v2507 = vlaneseq
    %v2508 = vshrl.u32 %v2507, 7
    %v2509 = vsub.s32 %v2506, %v2508
    %v2510 = vrot.slane %v2496, %v2509
    %v2511 = vcombine.high %v2503, %v2503
    %v2512 = vcombine.high %v2510, %v2510
    %v2514 = vunpack.c.l.s4 1966171168
    %v2515 = vunpack.c.0.s8 %v2514
    %v2516 = vlaneseq
    %v2517 = vshrl.u32 %v2516, 7
    %v2518 = vsub.s32 %v2515, %v2517
    %v2519 = vrot.slane %v2503, %v2518
    %v2521 = vunpack.c.l.s4 1966171168
    %v2522 = vunpack.c.0.s8 %v2521
    %v2523 = vlaneseq
    %v2524 = vshrl.u32 %v2523, 7
    %v2525 = vsub.s32 %v2522, %v2524
    %v2526 = vrot.slane %v2510, %v2525
    %v2528 = vunpack.c.l.s4 1966171168
    %v2529 = vunpack.c.0.s8 %v2528
    %v2530 = vlaneseq
    %v2531 = vshrl.u32 %v2530, 7
    %v2532 = vsub.s32 %v2529, %v2531
    %v2533 = vrot.slane %v2511, %v2532
    %v2535 = vunpack.c.l.s4 1966171168
    %v2536 = vunpack.c.0.s8 %v2535
    %v2537 = vlaneseq
    %v2538 = vshrl.u32 %v2537, 7
    %v2539 = vsub.s32 %v2536, %v2538
    %v2540 = vrot.slane %v2512, %v2539
    %v2541 = vcombine.high %v2519, %v2519
    %v2542 = vcombine.high %v2526, %v2526
    %v2543 = vcombine.high %v2533, %v2533
    %v2544 = vcombine.high %v2540, %v2540
    %2553 = vst [vmem:[#allocation14 + $0x6] sm:$0x1] %v2519
    %2554 = vst [vmem:[#allocation14 + $0xe] sm:$0x1] %v2533
    %2555 = vst [vmem:[#allocation14 + $0x16] sm:$0x1] %v2541
    %2556 = vst [vmem:[#allocation14 + $0x1e] sm:$0x1] %v2543
    %2557 = vst [vmem:[#allocation14 + $0x26] sm:$0x1] %v2526
    %2558 = vst [vmem:[#allocation14 + $0x2e] sm:$0x1] %v2540
    %2559 = vst [vmem:[#allocation14 + $0x36] sm:$0x1] %v2542
    %2560 = vst [vmem:[#allocation14 + $0x3e] sm:$0x1] %v2544
    %v2562 = vcombine.high %v2096, %v2096
    %v2564 = vunpack.c.l.s4 1966171168
    %v2565 = vunpack.c.0.s8 %v2564
    %v2566 = vlaneseq
    %v2567 = vshrl.u32 %v2566, 7
    %v2568 = vsub.s32 %v2565, %v2567
    %v2569 = vrot.slane %v2096, %v2568
    %v2571 = vunpack.c.l.s4 1966171168
    %v2572 = vunpack.c.0.s8 %v2571
    %v2573 = vlaneseq
    %v2574 = vshrl.u32 %v2573, 7
    %v2575 = vsub.s32 %v2572, %v2574
    %v2576 = vrot.slane %v2562, %v2575
    %v2577 = vcombine.high %v2569, %v2569
    %v2578 = vcombine.high %v2576, %v2576
    %v2580 = vunpack.c.l.s4 1966171168
    %v2581 = vunpack.c.0.s8 %v2580
    %v2582 = vlaneseq
    %v2583 = vshrl.u32 %v2582, 7
    %v2584 = vsub.s32 %v2581, %v2583
    %v2585 = vrot.slane %v2569, %v2584
    %v2587 = vunpack.c.l.s4 1966171168
    %v2588 = vunpack.c.0.s8 %v2587
    %v2589 = vlaneseq
    %v2590 = vshrl.u32 %v2589, 7
    %v2591 = vsub.s32 %v2588, %v2590
    %v2592 = vrot.slane %v2576, %v2591
    %v2594 = vunpack.c.l.s4 1966171168
    %v2595 = vunpack.c.0.s8 %v2594
    %v2596 = vlaneseq
    %v2597 = vshrl.u32 %v2596, 7
    %v2598 = vsub.s32 %v2595, %v2597
    %v2599 = vrot.slane %v2577, %v2598
    %v2601 = vunpack.c.l.s4 1966171168
    %v2602 = vunpack.c.0.s8 %v2601
    %v2603 = vlaneseq
    %v2604 = vshrl.u32 %v2603, 7
    %v2605 = vsub.s32 %v2602, %v2604
    %v2606 = vrot.slane %v2578, %v2605
    %v2607 = vcombine.high %v2585, %v2585
    %v2608 = vcombine.high %v2592, %v2592
    %v2609 = vcombine.high %v2599, %v2599
    %v2610 = vcombine.high %v2606, %v2606
    %2619 = vst [vmem:[#allocation14 + $0x7] sm:$0x1] %v2585
    %2620 = vst [vmem:[#allocation14 + $0xf] sm:$0x1] %v2599
    %2621 = vst [vmem:[#allocation14 + $0x17] sm:$0x1] %v2607
    %2622 = vst [vmem:[#allocation14 + $0x1f] sm:$0x1] %v2609
    %2623 = vst [vmem:[#allocation14 + $0x27] sm:$0x1] %v2592
    %2624 = vst [vmem:[#allocation14 + $0x2f] sm:$0x1] %v2606
    %2625 = vst [vmem:[#allocation14 + $0x37] sm:$0x1] %v2608
    %2626 = vst [vmem:[#allocation14 + $0x3f] sm:$0x1] %v2610
    // Predicated region
    $region46: #{tpu_custom_call.1} parent=1 // pred_check
      _
    $region47: #{tpu_custom_call.1} parent=1 // pred_check_branch
      %2628 = sbr.rel (0) target = $region49
    $region48: #{tpu_custom_call.1} parent=1 // pred_region
      %s2630 = ssub.s32 1024, 1024
      %2631 = vsyncadd [#allocation8], %s2630
      %s2632 = sshll.u32 [#allocation14], 4
      %s2633 = int_to_ptr.vmem [resolvable:$true] %s2632
      %2638 = dma.vmem_to_hbm [thread:$0]  %s2633, 1024, %s6, [#allocation8], 128, 128, 8
    $region49: #{tpu_custom_call.1} parent=1 // pred_fallthru
      _
    // Predicated region
    $region50: #{tpu_custom_call.1} parent=1 // pred_check
      _
    $region51: #{tpu_custom_call.1} parent=1 // pred_check_branch
      %2640 = sbr.rel (0) target = $region53
    $region52: #{tpu_custom_call.1} parent=1 // pred_region
      %2641 = dma.done [#allocation8], 1024
    $region53: #{tpu_custom_call.1} parent=1 // pred_fallthru
      _
    %2642 = vsyncpa [#allocation7], 1
    %2643 = vsyncpa [#allocation10], 1
    %2644 = vsyncpa [#allocation13], 1
    %2645 = vsyncpa [#allocation8], 1

</llo_original>
